<compile_context>
chip_gen: v6e
topology: v6e:2x2x1
jax: 0.10.0
libtpu: 0.0.40
codegen_flags: <defaults>
</compile_context>

<pallas_src>
import functools

import numpy as np

import jax
import jax.numpy as jnp
from jax.experimental import pallas as pl
from jax.experimental.pallas import tpu as pltpu


# ----------------------------------------------------------------------------
# Gaussian kernel / Toeplitz construction (host-side numpy, jit-time constants)
# ----------------------------------------------------------------------------
def gaussian_kernel_1d(kernel_size: int, sigma: float) -> np.ndarray:
    # Mirrors tgm.image.gaussian.get_gaussian_kernel (which requires odd size).
    assert kernel_size % 2 == 1 and kernel_size > 0, "kernel_size must be a positive odd int"
    x = np.arange(kernel_size, dtype=np.float32) - kernel_size // 2
    g = np.exp(-(x ** 2) / (2.0 * np.float32(sigma) ** 2))
    return (g / g.sum()).astype(np.float32)


def blur_matrix(length: int, kernel_size: int, sigma: float) -> np.ndarray:
    """Toeplitz M with (x @ M)[..., i] == conv1d(x, k, padding=(K-1)//2)[..., i]."""
    k = gaussian_kernel_1d(kernel_size, sigma)
    pad = (kernel_size - 1) // 2
    j = np.arange(length)[:, None]   # input index
    i = np.arange(length)[None, :]   # output index
    idx = j - i + pad
    valid = (idx >= 0) & (idx < kernel_size)
    m = np.where(valid, k[np.clip(idx, 0, kernel_size - 1)], 0.0)
    return m.astype(np.float32)


# ----------------------------------------------------------------------------
# Fused kernel: all three blurs on a VMEM-resident (D, H, W) block per (b, c)
# ----------------------------------------------------------------------------
def _fused_blur_kernel(x_ref, mh_t_ref, mw_ref, md_t_ref, o_ref, acc_ref):
    # x_ref / o_ref: (1, D, H, W) block for one (b, c); acc_ref: (D, H, W) scratch.
    depth, height, _ = acc_ref.shape
    mh_t = mh_t_ref[...]   # (H, H) = Mh^T  (H blur as left-multiply -> no transpose)
    mw = mw_ref[...]       # (W, W)         (W blur as right-multiply)
    md_t = md_t_ref[...]   # (D, D) = Md^T  (D blur as left-multiply)

    # Phase 1: blur along H and W for every depth plane (2-D MXU matmuls).
    for di in range(depth):
        plane = x_ref[0, di]                                            # (H, W)
        r = jnp.dot(mh_t, plane, preferred_element_type=jnp.float32)    # H blur
        r = jnp.dot(r, mw, preferred_element_type=jnp.float32)          # W blur
        acc_ref[di] = r

    # Phase 2: blur along D, one height-slab at a time, straight to the output.
    for hi in range(height):
        slab = acc_ref[:, hi, :]                                        # (D, W)
        o_ref[0, :, hi, :] = jnp.dot(
            md_t, slab, preferred_element_type=jnp.float32
        ).astype(o_ref.dtype)


def _fused_blur(x5, mh_t, mw, md_t):
    b, c, d, h, w = x5.shape
    n = b * c
    xr = x5.reshape(n, d, h, w)                       # free reshape, no data movement

    # VMEM need: double-buffered in+out blocks + scratch + resident weights.
    blk_bytes = d * h * w * 4
    need = 5 * blk_bytes + 8 * (d * d + h * h + w * w)
    params = dict(dimension_semantics=("parallel",))
    if need > 12 * 1024 * 1024:
        params["vmem_limit_bytes"] = min(int(need * 1.25), 48 * 1024 * 1024)

    out = pl.pallas_call(
        _fused_blur_kernel,
        out_shape=jax.ShapeDtypeStruct((n, d, h, w), x5.dtype),
        grid_spec=pltpu.PrefetchScalarGridSpec(
            num_scalar_prefetch=0,
            grid=(n,),
            in_specs=[
                pl.BlockSpec((1, d, h, w), lambda i: (i, 0, 0, 0)),
                pl.BlockSpec((h, h), lambda i: (0, 0)),
                pl.BlockSpec((w, w), lambda i: (0, 0)),
                pl.BlockSpec((d, d), lambda i: (0, 0)),
            ],
            out_specs=pl.BlockSpec((1, d, h, w), lambda i: (i, 0, 0, 0)),
            scratch_shapes=[pltpu.VMEM((d, h, w), jnp.float32)],
        ),
        compiler_params=pltpu.CompilerParams(**params),
    )(xr, mh_t, mw, md_t)
    return out.reshape(b, c, d, h, w)


# ----------------------------------------------------------------------------
# Two-pass fallback (large volumes / small-VMEM chips): still no HBM transposes.
#   Pass 1: H + W blur on (H, W) planes.    Pass 2: D blur on lane-dense (D, H*W).
# ----------------------------------------------------------------------------
def _hw_blur_kernel(x_ref, mh_t_ref, mw_ref, o_ref):
    mh_t = mh_t_ref[...]
    mw = mw_ref[...]
    for i in range(x_ref.shape[0]):
        r = jnp.dot(mh_t, x_ref[i], preferred_element_type=jnp.float32)
        o_ref[i] = jnp.dot(r, mw, preferred_element_type=jnp.float32).astype(o_ref.dtype)


def _d_blur_kernel(x_ref, md_t_ref, o_ref):
    o_ref[0] = jnp.dot(
        md_t_ref[...], x_ref[0], preferred_element_type=jnp.float32
    ).astype(o_ref.dtype)


def _two_pass_blur(x5, mh_t, mw, md_t):
    b, c, d, h, w = x5.shape

    # --- Pass 1: blur H (left-multiply) and W (right-multiply) on each plane. ---
    planes = b * c * d
    xp = x5.reshape(planes, h, w)
    per_plane = h * w * 4
    dt = max(1, min(planes, 32, (2 * 1024 * 1024) // per_plane))
    y = pl.pallas_call(
        _hw_blur_kernel,
        out_shape=jax.ShapeDtypeStruct((planes, h, w), x5.dtype),
        grid_spec=pltpu.PrefetchScalarGridSpec(
            num_scalar_prefetch=0,
            grid=(pl.cdiv(planes, dt),),
            in_specs=[
                pl.BlockSpec((dt, h, w), lambda i: (i, 0, 0)),
                pl.BlockSpec((h, h), lambda i: (0, 0)),
                pl.BlockSpec((w, w), lambda i: (0, 0)),
            ],
            out_specs=pl.BlockSpec((dt, h, w), lambda i: (i, 0, 0)),
        ),
        compiler_params=pltpu.CompilerParams(dimension_semantics=("parallel",)),
    )(xp, mh_t, mw)

    # --- Pass 2: blur D on a lane-dense (D, H*W) presentation. ---
    n = b * c
    hw = h * w
    yr = y.reshape(n, d, hw)                          # free reshape
    if hw <= 2048:
        hw_tile = hw
    else:
        hw_tile = min(hw, max(128, ((2 * 1024 * 1024) // (d * 4)) // 128 * 128))
    out = pl.pallas_call(
        _d_blur_kernel,
        out_shape=jax.ShapeDtypeStruct((n, d, hw), x5.dtype),
        grid_spec=pltpu.PrefetchScalarGridSpec(
            num_scalar_prefetch=0,
            grid=(n, pl.cdiv(hw, hw_tile)),
            in_specs=[
                pl.BlockSpec((1, d, hw_tile), lambda i, j: (i, 0, j)),
                pl.BlockSpec((d, d), lambda i, j: (0, 0)),
            ],
            out_specs=pl.BlockSpec((1, d, hw_tile), lambda i, j: (i, 0, j)),
        ),
        compiler_params=pltpu.CompilerParams(
            dimension_semantics=("parallel", "parallel")),
    )(yr, md_t)
    return out.reshape(b, c, d, h, w)


# ----------------------------------------------------------------------------
# Gaussian3DBlur forward
# ----------------------------------------------------------------------------
_FUSED_VMEM_BUDGET = 40 * 1024 * 1024  # conservative for v7x's 64 MiB VMEM


def gaussian_3d_blur(x, kernel_size, sigma, force_two_pass=False):
    """Forward pass of Gaussian3DBlur: separable Gaussian blur along W, H, D."""
    b, c, d, h, w = x.shape
    mw = jnp.asarray(blur_matrix(w, kernel_size, sigma))        # (W, W) right-multiply
    mh_t = jnp.asarray(blur_matrix(h, kernel_size, sigma).T)    # (H, H) left-multiply
    md_t = jnp.asarray(blur_matrix(d, kernel_size, sigma).T)    # (D, D) left-multiply

    fused_need = 5 * d * h * w * 4
    if force_two_pass or fused_need > _FUSED_VMEM_BUDGET:
        return _two_pass_blur(x, mh_t, mw, md_t)
    return _fused_blur(x, mh_t, mw, md_t)


# ----------------------------------------------------------------------------
# Pure-JAX reference (no Pallas) for correctness checking
# ----------------------------------------------------------------------------
def gaussian_3d_blur_ref(x, kernel_size, sigma):
    b, c, d, h, w = x.shape
    ww = jnp.asarray(blur_matrix(w, kernel_size, sigma))
    wh = jnp.asarray(blur_matrix(h, kernel_size, sigma))
    wd = jnp.asarray(blur_matrix(d, kernel_size, sigma))
    x = jnp.einsum("bcdhw,wx->bcdhx", x, ww)
    x = jnp.einsum("bcdhw,hy->bcdyw", x, wh)
    x = jnp.einsum("bcdhw,dz->bczhw", x, wd)
    return x


if __name__ == "__main__":
    KERNEL = 5
    SIGMA = 1.5

    key = jax.random.PRNGKey(0)
    # Small NCDHW volume: batch=2, channels=4, depth=8, height=16, width=16.
    x = jax.random.normal(key, (2, 4, 8, 16, 16), dtype=jnp.float32)

    fused_fn = jax.jit(functools.partial(
        gaussian_3d_blur, kernel_size=KERNEL, sigma=SIGMA))
    two_pass_fn = jax.jit(functools.partial(
        gaussian_3d_blur, kernel_size=KERNEL, sigma=SIGMA, force_two_pass=True))

    out = jax.block_until_ready(fused_fn(x))
    out_tp = jax.block_until_ready(two_pass_fn(x))

    ref = gaussian_3d_blur_ref(x, KERNEL, SIGMA)
    assert out.shape == x.shape
    assert jnp.allclose(out, ref, atol=1e-4, rtol=1e-4)
    assert jnp.allclose(out_tp, ref, atol=1e-4, rtol=1e-4)

    print("KERNEL_OK")
</pallas_src>

<mosaic_0001>
module attributes {stable_mosaic.version = 11 : i64} {
  func.func @_fused_blur_kernel(%arg0: i32, %arg1: memref<1x8x16x16xf32, #tpu.memory_space<vmem>>, %arg2: memref<16x16xf32, #tpu.memory_space<vmem>>, %arg3: memref<16x16xf32, #tpu.memory_space<vmem>>, %arg4: memref<8x8xf32, #tpu.memory_space<vmem>>, %arg5: memref<1x8x16x16xf32, #tpu.memory_space<vmem>>, %arg6: memref<8x16x16xf32, #tpu.memory_space<vmem>>) attributes {dimension_semantics = [#tpu.dimension_semantics<parallel>], iteration_bounds = array<i64: 8>, scalar_prefetch = 0 : i64, scratch_operands = 1 : i64, tpu.core_type = #tpu.core_type<tc>, window_params = [{transform_indices = @transform_0, window_bounds = array<i64: 1, 8, 16, 16>}, {pipeline_mode = #tpu.pipeline_mode<synchronous>, transform_indices = @transform_1, window_bounds = array<i64: 16, 16>}, {pipeline_mode = #tpu.pipeline_mode<synchronous>, transform_indices = @transform_2, window_bounds = array<i64: 16, 16>}, {pipeline_mode = #tpu.pipeline_mode<synchronous>, transform_indices = @transform_3, window_bounds = array<i64: 8, 8>}, {transform_indices = @transform_4, window_bounds = array<i64: 1, 8, 16, 16>}]} {
    %c0 = arith.constant 0 : index
    %c0_0 = arith.constant 0 : index
    %0 = vector.load %arg2[%c0, %c0_0] : memref<16x16xf32, #tpu.memory_space<vmem>>, vector<16x16xf32>
    %c0_1 = arith.constant 0 : index
    %c0_2 = arith.constant 0 : index
    %1 = vector.load %arg3[%c0_1, %c0_2] : memref<16x16xf32, #tpu.memory_space<vmem>>, vector<16x16xf32>
    %c0_3 = arith.constant 0 : index
    %c0_4 = arith.constant 0 : index
    %2 = vector.load %arg4[%c0_3, %c0_4] : memref<8x8xf32, #tpu.memory_space<vmem>>, vector<8x8xf32>
    %c0_5 = arith.constant 0 : index
    %c0_6 = arith.constant 0 : index
    %c0_7 = arith.constant 0 : index
    %c0_8 = arith.constant 0 : index
    %3 = vector.load %arg1[%c0_5, %c0_6, %c0_7, %c0_8] : memref<1x8x16x16xf32, #tpu.memory_space<vmem>>, vector<1x1x16x16xf32>
    %4 = vector.shape_cast %3 : vector<1x1x16x16xf32> to vector<16x16xf32>
    %cst = arith.constant dense<0.000000e+00> : vector<16x16xf32>
    %5 = tpu.matmul %0, %4, %cst {dimension_numbers = #tpu.dot_dimension_numbers<[1], [0], [0], [1], [0, 0, 1, 1], [], []>} : vector<16x16xf32>, vector<16x16xf32>, vector<16x16xf32> -> vector<16x16xf32>
    %cst_9 = arith.constant dense<0.000000e+00> : vector<16x16xf32>
    %6 = tpu.matmul %5, %1, %cst_9 {dimension_numbers = #tpu.dot_dimension_numbers<[1], [0], [0], [1], [0, 0, 1, 1], [], []>} : vector<16x16xf32>, vector<16x16xf32>, vector<16x16xf32> -> vector<16x16xf32>
    %c0_10 = arith.constant 0 : index
    %c0_11 = arith.constant 0 : index
    %c0_12 = arith.constant 0 : index
    %7 = vector.load %arg6[%c0_10, %c0_11, %c0_12] : memref<8x16x16xf32, #tpu.memory_space<vmem>>, vector<1x16x16xf32>
    %8 = vector.shape_cast %7 : vector<1x16x16xf32> to vector<16x16xf32>
    %9 = vector.shape_cast %6 : vector<16x16xf32> to vector<1x16x16xf32>
    tpu.vector_store %arg6[%c0_10, %c0_11, %c0_12], %9 {strides = array<i32>} : memref<8x16x16xf32, #tpu.memory_space<vmem>>, vector<1x16x16xf32>,
    %c0_13 = arith.constant 0 : index
    %c1 = arith.constant 1 : index
    %c0_14 = arith.constant 0 : index
    %c0_15 = arith.constant 0 : index
    %10 = vector.load %arg1[%c0_13, %c1, %c0_14, %c0_15] : memref<1x8x16x16xf32, #tpu.memory_space<vmem>>, vector<1x1x16x16xf32>
    %11 = vector.shape_cast %10 : vector<1x1x16x16xf32> to vector<16x16xf32>
    %cst_16 = arith.constant dense<0.000000e+00> : vector<16x16xf32>
    %12 = tpu.matmul %0, %11, %cst_16 {dimension_numbers = #tpu.dot_dimension_numbers<[1], [0], [0], [1], [0, 0, 1, 1], [], []>} : vector<16x16xf32>, vector<16x16xf32>, vector<16x16xf32> -> vector<16x16xf32>
    %cst_17 = arith.constant dense<0.000000e+00> : vector<16x16xf32>
    %13 = tpu.matmul %12, %1, %cst_17 {dimension_numbers = #tpu.dot_dimension_numbers<[1], [0], [0], [1], [0, 0, 1, 1], [], []>} : vector<16x16xf32>, vector<16x16xf32>, vector<16x16xf32> -> vector<16x16xf32>
    %c1_18 = arith.constant 1 : index
    %c0_19 = arith.constant 0 : index
    %c0_20 = arith.constant 0 : index
    %14 = vector.load %arg6[%c1_18, %c0_19, %c0_20] : memref<8x16x16xf32, #tpu.memory_space<vmem>>, vector<1x16x16xf32>
    %15 = vector.shape_cast %14 : vector<1x16x16xf32> to vector<16x16xf32>
    %16 = vector.shape_cast %13 : vector<16x16xf32> to vector<1x16x16xf32>
    tpu.vector_store %arg6[%c1_18, %c0_19, %c0_20], %16 {strides = array<i32>} : memref<8x16x16xf32, #tpu.memory_space<vmem>>, vector<1x16x16xf32>,
    %c0_21 = arith.constant 0 : index
    %c2 = arith.constant 2 : index
    %c0_22 = arith.constant 0 : index
    %c0_23 = arith.constant 0 : index
    %17 = vector.load %arg1[%c0_21, %c2, %c0_22, %c0_23] : memref<1x8x16x16xf32, #tpu.memory_space<vmem>>, vector<1x1x16x16xf32>
    %18 = vector.shape_cast %17 : vector<1x1x16x16xf32> to vector<16x16xf32>
    %cst_24 = arith.constant dense<0.000000e+00> : vector<16x16xf32>
    %19 = tpu.matmul %0, %18, %cst_24 {dimension_numbers = #tpu.dot_dimension_numbers<[1], [0], [0], [1], [0, 0, 1, 1], [], []>} : vector<16x16xf32>, vector<16x16xf32>, vector<16x16xf32> -> vector<16x16xf32>
    %cst_25 = arith.constant dense<0.000000e+00> : vector<16x16xf32>
    %20 = tpu.matmul %19, %1, %cst_25 {dimension_numbers = #tpu.dot_dimension_numbers<[1], [0], [0], [1], [0, 0, 1, 1], [], []>} : vector<16x16xf32>, vector<16x16xf32>, vector<16x16xf32> -> vector<16x16xf32>
    %c2_26 = arith.constant 2 : index
    %c0_27 = arith.constant 0 : index
    %c0_28 = arith.constant 0 : index
    %21 = vector.load %arg6[%c2_26, %c0_27, %c0_28] : memref<8x16x16xf32, #tpu.memory_space<vmem>>, vector<1x16x16xf32>
    %22 = vector.shape_cast %21 : vector<1x16x16xf32> to vector<16x16xf32>
    %23 = vector.shape_cast %20 : vector<16x16xf32> to vector<1x16x16xf32>
    tpu.vector_store %arg6[%c2_26, %c0_27, %c0_28], %23 {strides = array<i32>} : memref<8x16x16xf32, #tpu.memory_space<vmem>>, vector<1x16x16xf32>,
    %c0_29 = arith.constant 0 : index
    %c3 = arith.constant 3 : index
    %c0_30 = arith.constant 0 : index
    %c0_31 = arith.constant 0 : index
    %24 = vector.load %arg1[%c0_29, %c3, %c0_30, %c0_31] : memref<1x8x16x16xf32, #tpu.memory_space<vmem>>, vector<1x1x16x16xf32>
    %25 = vector.shape_cast %24 : vector<1x1x16x16xf32> to vector<16x16xf32>
    %cst_32 = arith.constant dense<0.000000e+00> : vector<16x16xf32>
    %26 = tpu.matmul %0, %25, %cst_32 {dimension_numbers = #tpu.dot_dimension_numbers<[1], [0], [0], [1], [0, 0, 1, 1], [], []>} : vector<16x16xf32>, vector<16x16xf32>, vector<16x16xf32> -> vector<16x16xf32>
    %cst_33 = arith.constant dense<0.000000e+00> : vector<16x16xf32>
    %27 = tpu.matmul %26, %1, %cst_33 {dimension_numbers = #tpu.dot_dimension_numbers<[1], [0], [0], [1], [0, 0, 1, 1], [], []>} : vector<16x16xf32>, vector<16x16xf32>, vector<16x16xf32> -> vector<16x16xf32>
    %c3_34 = arith.constant 3 : index
    %c0_35 = arith.constant 0 : index
    %c0_36 = arith.constant 0 : index
    %28 = vector.load %arg6[%c3_34, %c0_35, %c0_36] : memref<8x16x16xf32, #tpu.memory_space<vmem>>, vector<1x16x16xf32>
    %29 = vector.shape_cast %28 : vector<1x16x16xf32> to vector<16x16xf32>
    %30 = vector.shape_cast %27 : vector<16x16xf32> to vector<1x16x16xf32>
    tpu.vector_store %arg6[%c3_34, %c0_35, %c0_36], %30 {strides = array<i32>} : memref<8x16x16xf32, #tpu.memory_space<vmem>>, vector<1x16x16xf32>,
    %c0_37 = arith.constant 0 : index
    %c4 = arith.constant 4 : index
    %c0_38 = arith.constant 0 : index
    %c0_39 = arith.constant 0 : index
    %31 = vector.load %arg1[%c0_37, %c4, %c0_38, %c0_39] : memref<1x8x16x16xf32, #tpu.memory_space<vmem>>, vector<1x1x16x16xf32>
    %32 = vector.shape_cast %31 : vector<1x1x16x16xf32> to vector<16x16xf32>
    %cst_40 = arith.constant dense<0.000000e+00> : vector<16x16xf32>
    %33 = tpu.matmul %0, %32, %cst_40 {dimension_numbers = #tpu.dot_dimension_numbers<[1], [0], [0], [1], [0, 0, 1, 1], [], []>} : vector<16x16xf32>, vector<16x16xf32>, vector<16x16xf32> -> vector<16x16xf32>
    %cst_41 = arith.constant dense<0.000000e+00> : vector<16x16xf32>
    %34 = tpu.matmul %33, %1, %cst_41 {dimension_numbers = #tpu.dot_dimension_numbers<[1], [0], [0], [1], [0, 0, 1, 1], [], []>} : vector<16x16xf32>, vector<16x16xf32>, vector<16x16xf32> -> vector<16x16xf32>
    %c4_42 = arith.constant 4 : index
    %c0_43 = arith.constant 0 : index
    %c0_44 = arith.constant 0 : index
    %35 = vector.load %arg6[%c4_42, %c0_43, %c0_44] : memref<8x16x16xf32, #tpu.memory_space<vmem>>, vector<1x16x16xf32>
    %36 = vector.shape_cast %35 : vector<1x16x16xf32> to vector<16x16xf32>
    %37 = vector.shape_cast %34 : vector<16x16xf32> to vector<1x16x16xf32>
    tpu.vector_store %arg6[%c4_42, %c0_43, %c0_44], %37 {strides = array<i32>} : memref<8x16x16xf32, #tpu.memory_space<vmem>>, vector<1x16x16xf32>,
    %c0_45 = arith.constant 0 : index
    %c5 = arith.constant 5 : index
    %c0_46 = arith.constant 0 : index
    %c0_47 = arith.constant 0 : index
    %38 = vector.load %arg1[%c0_45, %c5, %c0_46, %c0_47] : memref<1x8x16x16xf32, #tpu.memory_space<vmem>>, vector<1x1x16x16xf32>
    %39 = vector.shape_cast %38 : vector<1x1x16x16xf32> to vector<16x16xf32>
    %cst_48 = arith.constant dense<0.000000e+00> : vector<16x16xf32>
    %40 = tpu.matmul %0, %39, %cst_48 {dimension_numbers = #tpu.dot_dimension_numbers<[1], [0], [0], [1], [0, 0, 1, 1], [], []>} : vector<16x16xf32>, vector<16x16xf32>, vector<16x16xf32> -> vector<16x16xf32>
    %cst_49 = arith.constant dense<0.000000e+00> : vector<16x16xf32>
    %41 = tpu.matmul %40, %1, %cst_49 {dimension_numbers = #tpu.dot_dimension_numbers<[1], [0], [0], [1], [0, 0, 1, 1], [], []>} : vector<16x16xf32>, vector<16x16xf32>, vector<16x16xf32> -> vector<16x16xf32>
    %c5_50 = arith.constant 5 : index
    %c0_51 = arith.constant 0 : index
    %c0_52 = arith.constant 0 : index
    %42 = vector.load %arg6[%c5_50, %c0_51, %c0_52] : memref<8x16x16xf32, #tpu.memory_space<vmem>>, vector<1x16x16xf32>
    %43 = vector.shape_cast %42 : vector<1x16x16xf32> to vector<16x16xf32>
    %44 = vector.shape_cast %41 : vector<16x16xf32> to vector<1x16x16xf32>
    tpu.vector_store %arg6[%c5_50, %c0_51, %c0_52], %44 {strides = array<i32>} : memref<8x16x16xf32, #tpu.memory_space<vmem>>, vector<1x16x16xf32>,
    %c0_53 = arith.constant 0 : index
    %c6 = arith.constant 6 : index
    %c0_54 = arith.constant 0 : index
    %c0_55 = arith.constant 0 : index
    %45 = vector.load %arg1[%c0_53, %c6, %c0_54, %c0_55] : memref<1x8x16x16xf32, #tpu.memory_space<vmem>>, vector<1x1x16x16xf32>
    %46 = vector.shape_cast %45 : vector<1x1x16x16xf32> to vector<16x16xf32>
    %cst_56 = arith.constant dense<0.000000e+00> : vector<16x16xf32>
    %47 = tpu.matmul %0, %46, %cst_56 {dimension_numbers = #tpu.dot_dimension_numbers<[1], [0], [0], [1], [0, 0, 1, 1], [], []>} : vector<16x16xf32>, vector<16x16xf32>, vector<16x16xf32> -> vector<16x16xf32>
    %cst_57 = arith.constant dense<0.000000e+00> : vector<16x16xf32>
    %48 = tpu.matmul %47, %1, %cst_57 {dimension_numbers = #tpu.dot_dimension_numbers<[1], [0], [0], [1], [0, 0, 1, 1], [], []>} : vector<16x16xf32>, vector<16x16xf32>, vector<16x16xf32> -> vector<16x16xf32>
    %c6_58 = arith.constant 6 : index
    %c0_59 = arith.constant 0 : index
    %c0_60 = arith.constant 0 : index
    %49 = vector.load %arg6[%c6_58, %c0_59, %c0_60] : memref<8x16x16xf32, #tpu.memory_space<vmem>>, vector<1x16x16xf32>
    %50 = vector.shape_cast %49 : vector<1x16x16xf32> to vector<16x16xf32>
    %51 = vector.shape_cast %48 : vector<16x16xf32> to vector<1x16x16xf32>
    tpu.vector_store %arg6[%c6_58, %c0_59, %c0_60], %51 {strides = array<i32>} : memref<8x16x16xf32, #tpu.memory_space<vmem>>, vector<1x16x16xf32>,
    %c0_61 = arith.constant 0 : index
    %c7 = arith.constant 7 : index
    %c0_62 = arith.constant 0 : index
    %c0_63 = arith.constant 0 : index
    %52 = vector.load %arg1[%c0_61, %c7, %c0_62, %c0_63] : memref<1x8x16x16xf32, #tpu.memory_space<vmem>>, vector<1x1x16x16xf32>
    %53 = vector.shape_cast %52 : vector<1x1x16x16xf32> to vector<16x16xf32>
    %cst_64 = arith.constant dense<0.000000e+00> : vector<16x16xf32>
    %54 = tpu.matmul %0, %53, %cst_64 {dimension_numbers = #tpu.dot_dimension_numbers<[1], [0], [0], [1], [0, 0, 1, 1], [], []>} : vector<16x16xf32>, vector<16x16xf32>, vector<16x16xf32> -> vector<16x16xf32>
    %cst_65 = arith.constant dense<0.000000e+00> : vector<16x16xf32>
    %55 = tpu.matmul %54, %1, %cst_65 {dimension_numbers = #tpu.dot_dimension_numbers<[1], [0], [0], [1], [0, 0, 1, 1], [], []>} : vector<16x16xf32>, vector<16x16xf32>, vector<16x16xf32> -> vector<16x16xf32>
    %c7_66 = arith.constant 7 : index
    %c0_67 = arith.constant 0 : index
    %c0_68 = arith.constant 0 : index
    %56 = vector.load %arg6[%c7_66, %c0_67, %c0_68] : memref<8x16x16xf32, #tpu.memory_space<vmem>>, vector<1x16x16xf32>
    %57 = vector.shape_cast %56 : vector<1x16x16xf32> to vector<16x16xf32>
    %58 = vector.shape_cast %55 : vector<16x16xf32> to vector<1x16x16xf32>
    tpu.vector_store %arg6[%c7_66, %c0_67, %c0_68], %58 {strides = array<i32>} : memref<8x16x16xf32, #tpu.memory_space<vmem>>, vector<1x16x16xf32>,
    %c0_69 = arith.constant 0 : index
    %c0_70 = arith.constant 0 : index
    %c0_71 = arith.constant 0 : index
    %59 = vector.load %arg6[%c0_69, %c0_70, %c0_71] : memref<8x16x16xf32, #tpu.memory_space<vmem>>, vector<8x1x16xf32>
    %60 = vector.shape_cast %59 : vector<8x1x16xf32> to vector<8x16xf32>
    %cst_72 = arith.constant dense<0.000000e+00> : vector<8x16xf32>
    %61 = tpu.matmul %2, %60, %cst_72 {dimension_numbers = #tpu.dot_dimension_numbers<[1], [0], [0], [1], [0, 0, 1, 1], [], []>} : vector<8x8xf32>, vector<8x16xf32>, vector<8x16xf32> -> vector<8x16xf32>
    %c0_73 = arith.constant 0 : index
    %c0_74 = arith.constant 0 : index
    %c0_75 = arith.constant 0 : index
    %c0_76 = arith.constant 0 : index
    %62 = vector.load %arg5[%c0_73, %c0_74, %c0_75, %c0_76] : memref<1x8x16x16xf32, #tpu.memory_space<vmem>>, vector<1x8x1x16xf32>
    %63 = vector.shape_cast %62 : vector<1x8x1x16xf32> to vector<8x16xf32>
    %64 = vector.shape_cast %61 : vector<8x16xf32> to vector<1x8x1x16xf32>
    tpu.vector_store %arg5[%c0_73, %c0_74, %c0_75, %c0_76], %64 {strides = array<i32>} : memref<1x8x16x16xf32, #tpu.memory_space<vmem>>, vector<1x8x1x16xf32>,
    %c0_77 = arith.constant 0 : index
    %c1_78 = arith.constant 1 : index
    %c0_79 = arith.constant 0 : index
    %65 = vector.load %arg6[%c0_77, %c1_78, %c0_79] : memref<8x16x16xf32, #tpu.memory_space<vmem>>, vector<8x1x16xf32>
    %66 = vector.shape_cast %65 : vector<8x1x16xf32> to vector<8x16xf32>
    %cst_80 = arith.constant dense<0.000000e+00> : vector<8x16xf32>
    %67 = tpu.matmul %2, %66, %cst_80 {dimension_numbers = #tpu.dot_dimension_numbers<[1], [0], [0], [1], [0, 0, 1, 1], [], []>} : vector<8x8xf32>, vector<8x16xf32>, vector<8x16xf32> -> vector<8x16xf32>
    %c0_81 = arith.constant 0 : index
    %c0_82 = arith.constant 0 : index
    %c1_83 = arith.constant 1 : index
    %c0_84 = arith.constant 0 : index
    %68 = vector.load %arg5[%c0_81, %c0_82, %c1_83, %c0_84] : memref<1x8x16x16xf32, #tpu.memory_space<vmem>>, vector<1x8x1x16xf32>
    %69 = vector.shape_cast %68 : vector<1x8x1x16xf32> to vector<8x16xf32>
    %70 = vector.shape_cast %67 : vector<8x16xf32> to vector<1x8x1x16xf32>
    tpu.vector_store %arg5[%c0_81, %c0_82, %c1_83, %c0_84], %70 {strides = array<i32>} : memref<1x8x16x16xf32, #tpu.memory_space<vmem>>, vector<1x8x1x16xf32>,
    %c0_85 = arith.constant 0 : index
    %c2_86 = arith.constant 2 : index
    %c0_87 = arith.constant 0 : index
    %71 = vector.load %arg6[%c0_85, %c2_86, %c0_87] : memref<8x16x16xf32, #tpu.memory_space<vmem>>, vector<8x1x16xf32>
    %72 = vector.shape_cast %71 : vector<8x1x16xf32> to vector<8x16xf32>
    %cst_88 = arith.constant dense<0.000000e+00> : vector<8x16xf32>
    %73 = tpu.matmul %2, %72, %cst_88 {dimension_numbers = #tpu.dot_dimension_numbers<[1], [0], [0], [1], [0, 0, 1, 1], [], []>} : vector<8x8xf32>, vector<8x16xf32>, vector<8x16xf32> -> vector<8x16xf32>
    %c0_89 = arith.constant 0 : index
    %c0_90 = arith.constant 0 : index
    %c2_91 = arith.constant 2 : index
    %c0_92 = arith.constant 0 : index
    %74 = vector.load %arg5[%c0_89, %c0_90, %c2_91, %c0_92] : memref<1x8x16x16xf32, #tpu.memory_space<vmem>>, vector<1x8x1x16xf32>
    %75 = vector.shape_cast %74 : vector<1x8x1x16xf32> to vector<8x16xf32>
    %76 = vector.shape_cast %73 : vector<8x16xf32> to vector<1x8x1x16xf32>
    tpu.vector_store %arg5[%c0_89, %c0_90, %c2_91, %c0_92], %76 {strides = array<i32>} : memref<1x8x16x16xf32, #tpu.memory_space<vmem>>, vector<1x8x1x16xf32>,
    %c0_93 = arith.constant 0 : index
    %c3_94 = arith.constant 3 : index
    %c0_95 = arith.constant 0 : index
    %77 = vector.load %arg6[%c0_93, %c3_94, %c0_95] : memref<8x16x16xf32, #tpu.memory_space<vmem>>, vector<8x1x16xf32>
    %78 = vector.shape_cast %77 : vector<8x1x16xf32> to vector<8x16xf32>
    %cst_96 = arith.constant dense<0.000000e+00> : vector<8x16xf32>
    %79 = tpu.matmul %2, %78, %cst_96 {dimension_numbers = #tpu.dot_dimension_numbers<[1], [0], [0], [1], [0, 0, 1, 1], [], []>} : vector<8x8xf32>, vector<8x16xf32>, vector<8x16xf32> -> vector<8x16xf32>
    %c0_97 = arith.constant 0 : index
    %c0_98 = arith.constant 0 : index
    %c3_99 = arith.constant 3 : index
    %c0_100 = arith.constant 0 : index
    %80 = vector.load %arg5[%c0_97, %c0_98, %c3_99, %c0_100] : memref<1x8x16x16xf32, #tpu.memory_space<vmem>>, vector<1x8x1x16xf32>
    %81 = vector.shape_cast %80 : vector<1x8x1x16xf32> to vector<8x16xf32>
    %82 = vector.shape_cast %79 : vector<8x16xf32> to vector<1x8x1x16xf32>
    tpu.vector_store %arg5[%c0_97, %c0_98, %c3_99, %c0_100], %82 {strides = array<i32>} : memref<1x8x16x16xf32, #tpu.memory_space<vmem>>, vector<1x8x1x16xf32>,
    %c0_101 = arith.constant 0 : index
    %c4_102 = arith.constant 4 : index
    %c0_103 = arith.constant 0 : index
    %83 = vector.load %arg6[%c0_101, %c4_102, %c0_103] : memref<8x16x16xf32, #tpu.memory_space<vmem>>, vector<8x1x16xf32>
    %84 = vector.shape_cast %83 : vector<8x1x16xf32> to vector<8x16xf32>
    %cst_104 = arith.constant dense<0.000000e+00> : vector<8x16xf32>
    %85 = tpu.matmul %2, %84, %cst_104 {dimension_numbers = #tpu.dot_dimension_numbers<[1], [0], [0], [1], [0, 0, 1, 1], [], []>} : vector<8x8xf32>, vector<8x16xf32>, vector<8x16xf32> -> vector<8x16xf32>
    %c0_105 = arith.constant 0 : index
    %c0_106 = arith.constant 0 : index
    %c4_107 = arith.constant 4 : index
    %c0_108 = arith.constant 0 : index
    %86 = vector.load %arg5[%c0_105, %c0_106, %c4_107, %c0_108] : memref<1x8x16x16xf32, #tpu.memory_space<vmem>>, vector<1x8x1x16xf32>
    %87 = vector.shape_cast %86 : vector<1x8x1x16xf32> to vector<8x16xf32>
    %88 = vector.shape_cast %85 : vector<8x16xf32> to vector<1x8x1x16xf32>
    tpu.vector_store %arg5[%c0_105, %c0_106, %c4_107, %c0_108], %88 {strides = array<i32>} : memref<1x8x16x16xf32, #tpu.memory_space<vmem>>, vector<1x8x1x16xf32>,
    %c0_109 = arith.constant 0 : index
    %c5_110 = arith.constant 5 : index
    %c0_111 = arith.constant 0 : index
    %89 = vector.load %arg6[%c0_109, %c5_110, %c0_111] : memref<8x16x16xf32, #tpu.memory_space<vmem>>, vector<8x1x16xf32>
    %90 = vector.shape_cast %89 : vector<8x1x16xf32> to vector<8x16xf32>
    %cst_112 = arith.constant dense<0.000000e+00> : vector<8x16xf32>
    %91 = tpu.matmul %2, %90, %cst_112 {dimension_numbers = #tpu.dot_dimension_numbers<[1], [0], [0], [1], [0, 0, 1, 1], [], []>} : vector<8x8xf32>, vector<8x16xf32>, vector<8x16xf32> -> vector<8x16xf32>
    %c0_113 = arith.constant 0 : index
    %c0_114 = arith.constant 0 : index
    %c5_115 = arith.constant 5 : index
    %c0_116 = arith.constant 0 : index
    %92 = vector.load %arg5[%c0_113, %c0_114, %c5_115, %c0_116] : memref<1x8x16x16xf32, #tpu.memory_space<vmem>>, vector<1x8x1x16xf32>
    %93 = vector.shape_cast %92 : vector<1x8x1x16xf32> to vector<8x16xf32>
    %94 = vector.shape_cast %91 : vector<8x16xf32> to vector<1x8x1x16xf32>
    tpu.vector_store %arg5[%c0_113, %c0_114, %c5_115, %c0_116], %94 {strides = array<i32>} : memref<1x8x16x16xf32, #tpu.memory_space<vmem>>, vector<1x8x1x16xf32>,
    %c0_117 = arith.constant 0 : index
    %c6_118 = arith.constant 6 : index
    %c0_119 = arith.constant 0 : index
    %95 = vector.load %arg6[%c0_117, %c6_118, %c0_119] : memref<8x16x16xf32, #tpu.memory_space<vmem>>, vector<8x1x16xf32>
    %96 = vector.shape_cast %95 : vector<8x1x16xf32> to vector<8x16xf32>
    %cst_120 = arith.constant dense<0.000000e+00> : vector<8x16xf32>
    %97 = tpu.matmul %2, %96, %cst_120 {dimension_numbers = #tpu.dot_dimension_numbers<[1], [0], [0], [1], [0, 0, 1, 1], [], []>} : vector<8x8xf32>, vector<8x16xf32>, vector<8x16xf32> -> vector<8x16xf32>
    %c0_121 = arith.constant 0 : index
    %c0_122 = arith.constant 0 : index
    %c6_123 = arith.constant 6 : index
    %c0_124 = arith.constant 0 : index
    %98 = vector.load %arg5[%c0_121, %c0_122, %c6_123, %c0_124] : memref<1x8x16x16xf32, #tpu.memory_space<vmem>>, vector<1x8x1x16xf32>
    %99 = vector.shape_cast %98 : vector<1x8x1x16xf32> to vector<8x16xf32>
    %100 = vector.shape_cast %97 : vector<8x16xf32> to vector<1x8x1x16xf32>
    tpu.vector_store %arg5[%c0_121, %c0_122, %c6_123, %c0_124], %100 {strides = array<i32>} : memref<1x8x16x16xf32, #tpu.memory_space<vmem>>, vector<1x8x1x16xf32>,
    %c0_125 = arith.constant 0 : index
    %c7_126 = arith.constant 7 : index
    %c0_127 = arith.constant 0 : index
    %101 = vector.load %arg6[%c0_125, %c7_126, %c0_127] : memref<8x16x16xf32, #tpu.memory_space<vmem>>, vector<8x1x16xf32>
    %102 = vector.shape_cast %101 : vector<8x1x16xf32> to vector<8x16xf32>
    %cst_128 = arith.constant dense<0.000000e+00> : vector<8x16xf32>
    %103 = tpu.matmul %2, %102, %cst_128 {dimension_numbers = #tpu.dot_dimension_numbers<[1], [0], [0], [1], [0, 0, 1, 1], [], []>} : vector<8x8xf32>, vector<8x16xf32>, vector<8x16xf32> -> vector<8x16xf32>
    %c0_129 = arith.constant 0 : index
    %c0_130 = arith.constant 0 : index
    %c7_131 = arith.constant 7 : index
    %c0_132 = arith.constant 0 : index
    %104 = vector.load %arg5[%c0_129, %c0_130, %c7_131, %c0_132] : memref<1x8x16x16xf32, #tpu.memory_space<vmem>>, vector<1x8x1x16xf32>
    %105 = vector.shape_cast %104 : vector<1x8x1x16xf32> to vector<8x16xf32>
    %106 = vector.shape_cast %103 : vector<8x16xf32> to vector<1x8x1x16xf32>
    tpu.vector_store %arg5[%c0_129, %c0_130, %c7_131, %c0_132], %106 {strides = array<i32>} : memref<1x8x16x16xf32, #tpu.memory_space<vmem>>, vector<1x8x1x16xf32>,
    %c0_133 = arith.constant 0 : index
    %c8 = arith.constant 8 : index
    %c0_134 = arith.constant 0 : index
    %107 = vector.load %arg6[%c0_133, %c8, %c0_134] : memref<8x16x16xf32, #tpu.memory_space<vmem>>, vector<8x1x16xf32>
    %108 = vector.shape_cast %107 : vector<8x1x16xf32> to vector<8x16xf32>
    %cst_135 = arith.constant dense<0.000000e+00> : vector<8x16xf32>
    %109 = tpu.matmul %2, %108, %cst_135 {dimension_numbers = #tpu.dot_dimension_numbers<[1], [0], [0], [1], [0, 0, 1, 1], [], []>} : vector<8x8xf32>, vector<8x16xf32>, vector<8x16xf32> -> vector<8x16xf32>
    %c0_136 = arith.constant 0 : index
    %c0_137 = arith.constant 0 : index
    %c8_138 = arith.constant 8 : index
    %c0_139 = arith.constant 0 : index
    %110 = vector.load %arg5[%c0_136, %c0_137, %c8_138, %c0_139] : memref<1x8x16x16xf32, #tpu.memory_space<vmem>>, vector<1x8x1x16xf32>
    %111 = vector.shape_cast %110 : vector<1x8x1x16xf32> to vector<8x16xf32>
    %112 = vector.shape_cast %109 : vector<8x16xf32> to vector<1x8x1x16xf32>
    tpu.vector_store %arg5[%c0_136, %c0_137, %c8_138, %c0_139], %112 {strides = array<i32>} : memref<1x8x16x16xf32, #tpu.memory_space<vmem>>, vector<1x8x1x16xf32>,
    %c0_140 = arith.constant 0 : index
    %c9 = arith.constant 9 : index
    %c0_141 = arith.constant 0 : index
    %113 = vector.load %arg6[%c0_140, %c9, %c0_141] : memref<8x16x16xf32, #tpu.memory_space<vmem>>, vector<8x1x16xf32>
    %114 = vector.shape_cast %113 : vector<8x1x16xf32> to vector<8x16xf32>
    %cst_142 = arith.constant dense<0.000000e+00> : vector<8x16xf32>
    %115 = tpu.matmul %2, %114, %cst_142 {dimension_numbers = #tpu.dot_dimension_numbers<[1], [0], [0], [1], [0, 0, 1, 1], [], []>} : vector<8x8xf32>, vector<8x16xf32>, vector<8x16xf32> -> vector<8x16xf32>
    %c0_143 = arith.constant 0 : index
    %c0_144 = arith.constant 0 : index
    %c9_145 = arith.constant 9 : index
    %c0_146 = arith.constant 0 : index
    %116 = vector.load %arg5[%c0_143, %c0_144, %c9_145, %c0_146] : memref<1x8x16x16xf32, #tpu.memory_space<vmem>>, vector<1x8x1x16xf32>
    %117 = vector.shape_cast %116 : vector<1x8x1x16xf32> to vector<8x16xf32>
    %118 = vector.shape_cast %115 : vector<8x16xf32> to vector<1x8x1x16xf32>
    tpu.vector_store %arg5[%c0_143, %c0_144, %c9_145, %c0_146], %118 {strides = array<i32>} : memref<1x8x16x16xf32, #tpu.memory_space<vmem>>, vector<1x8x1x16xf32>,
    %c0_147 = arith.constant 0 : index
    %c10 = arith.constant 10 : index
    %c0_148 = arith.constant 0 : index
    %119 = vector.load %arg6[%c0_147, %c10, %c0_148] : memref<8x16x16xf32, #tpu.memory_space<vmem>>, vector<8x1x16xf32>
    %120 = vector.shape_cast %119 : vector<8x1x16xf32> to vector<8x16xf32>
    %cst_149 = arith.constant dense<0.000000e+00> : vector<8x16xf32>
    %121 = tpu.matmul %2, %120, %cst_149 {dimension_numbers = #tpu.dot_dimension_numbers<[1], [0], [0], [1], [0, 0, 1, 1], [], []>} : vector<8x8xf32>, vector<8x16xf32>, vector<8x16xf32> -> vector<8x16xf32>
    %c0_150 = arith.constant 0 : index
    %c0_151 = arith.constant 0 : index
    %c10_152 = arith.constant 10 : index
    %c0_153 = arith.constant 0 : index
    %122 = vector.load %arg5[%c0_150, %c0_151, %c10_152, %c0_153] : memref<1x8x16x16xf32, #tpu.memory_space<vmem>>, vector<1x8x1x16xf32>
    %123 = vector.shape_cast %122 : vector<1x8x1x16xf32> to vector<8x16xf32>
    %124 = vector.shape_cast %121 : vector<8x16xf32> to vector<1x8x1x16xf32>
    tpu.vector_store %arg5[%c0_150, %c0_151, %c10_152, %c0_153], %124 {strides = array<i32>} : memref<1x8x16x16xf32, #tpu.memory_space<vmem>>, vector<1x8x1x16xf32>,
    %c0_154 = arith.constant 0 : index
    %c11 = arith.constant 11 : index
    %c0_155 = arith.constant 0 : index
    %125 = vector.load %arg6[%c0_154, %c11, %c0_155] : memref<8x16x16xf32, #tpu.memory_space<vmem>>, vector<8x1x16xf32>
    %126 = vector.shape_cast %125 : vector<8x1x16xf32> to vector<8x16xf32>
    %cst_156 = arith.constant dense<0.000000e+00> : vector<8x16xf32>
    %127 = tpu.matmul %2, %126, %cst_156 {dimension_numbers = #tpu.dot_dimension_numbers<[1], [0], [0], [1], [0, 0, 1, 1], [], []>} : vector<8x8xf32>, vector<8x16xf32>, vector<8x16xf32> -> vector<8x16xf32>
    %c0_157 = arith.constant 0 : index
    %c0_158 = arith.constant 0 : index
    %c11_159 = arith.constant 11 : index
    %c0_160 = arith.constant 0 : index
    %128 = vector.load %arg5[%c0_157, %c0_158, %c11_159, %c0_160] : memref<1x8x16x16xf32, #tpu.memory_space<vmem>>, vector<1x8x1x16xf32>
    %129 = vector.shape_cast %128 : vector<1x8x1x16xf32> to vector<8x16xf32>
    %130 = vector.shape_cast %127 : vector<8x16xf32> to vector<1x8x1x16xf32>
    tpu.vector_store %arg5[%c0_157, %c0_158, %c11_159, %c0_160], %130 {strides = array<i32>} : memref<1x8x16x16xf32, #tpu.memory_space<vmem>>, vector<1x8x1x16xf32>,
    %c0_161 = arith.constant 0 : index
    %c12 = arith.constant 12 : index
    %c0_162 = arith.constant 0 : index
    %131 = vector.load %arg6[%c0_161, %c12, %c0_162] : memref<8x16x16xf32, #tpu.memory_space<vmem>>, vector<8x1x16xf32>
    %132 = vector.shape_cast %131 : vector<8x1x16xf32> to vector<8x16xf32>
    %cst_163 = arith.constant dense<0.000000e+00> : vector<8x16xf32>
    %133 = tpu.matmul %2, %132, %cst_163 {dimension_numbers = #tpu.dot_dimension_numbers<[1], [0], [0], [1], [0, 0, 1, 1], [], []>} : vector<8x8xf32>, vector<8x16xf32>, vector<8x16xf32> -> vector<8x16xf32>
    %c0_164 = arith.constant 0 : index
    %c0_165 = arith.constant 0 : index
    %c12_166 = arith.constant 12 : index
    %c0_167 = arith.constant 0 : index
    %134 = vector.load %arg5[%c0_164, %c0_165, %c12_166, %c0_167] : memref<1x8x16x16xf32, #tpu.memory_space<vmem>>, vector<1x8x1x16xf32>
    %135 = vector.shape_cast %134 : vector<1x8x1x16xf32> to vector<8x16xf32>
    %136 = vector.shape_cast %133 : vector<8x16xf32> to vector<1x8x1x16xf32>
    tpu.vector_store %arg5[%c0_164, %c0_165, %c12_166, %c0_167], %136 {strides = array<i32>} : memref<1x8x16x16xf32, #tpu.memory_space<vmem>>, vector<1x8x1x16xf32>,
    %c0_168 = arith.constant 0 : index
    %c13 = arith.constant 13 : index
    %c0_169 = arith.constant 0 : index
    %137 = vector.load %arg6[%c0_168, %c13, %c0_169] : memref<8x16x16xf32, #tpu.memory_space<vmem>>, vector<8x1x16xf32>
    %138 = vector.shape_cast %137 : vector<8x1x16xf32> to vector<8x16xf32>
    %cst_170 = arith.constant dense<0.000000e+00> : vector<8x16xf32>
    %139 = tpu.matmul %2, %138, %cst_170 {dimension_numbers = #tpu.dot_dimension_numbers<[1], [0], [0], [1], [0, 0, 1, 1], [], []>} : vector<8x8xf32>, vector<8x16xf32>, vector<8x16xf32> -> vector<8x16xf32>
    %c0_171 = arith.constant 0 : index
    %c0_172 = arith.constant 0 : index
    %c13_173 = arith.constant 13 : index
    %c0_174 = arith.constant 0 : index
    %140 = vector.load %arg5[%c0_171, %c0_172, %c13_173, %c0_174] : memref<1x8x16x16xf32, #tpu.memory_space<vmem>>, vector<1x8x1x16xf32>
    %141 = vector.shape_cast %140 : vector<1x8x1x16xf32> to vector<8x16xf32>
    %142 = vector.shape_cast %139 : vector<8x16xf32> to vector<1x8x1x16xf32>
    tpu.vector_store %arg5[%c0_171, %c0_172, %c13_173, %c0_174], %142 {strides = array<i32>} : memref<1x8x16x16xf32, #tpu.memory_space<vmem>>, vector<1x8x1x16xf32>,
    %c0_175 = arith.constant 0 : index
    %c14 = arith.constant 14 : index
    %c0_176 = arith.constant 0 : index
    %143 = vector.load %arg6[%c0_175, %c14, %c0_176] : memref<8x16x16xf32, #tpu.memory_space<vmem>>, vector<8x1x16xf32>
    %144 = vector.shape_cast %143 : vector<8x1x16xf32> to vector<8x16xf32>
    %cst_177 = arith.constant dense<0.000000e+00> : vector<8x16xf32>
    %145 = tpu.matmul %2, %144, %cst_177 {dimension_numbers = #tpu.dot_dimension_numbers<[1], [0], [0], [1], [0, 0, 1, 1], [], []>} : vector<8x8xf32>, vector<8x16xf32>, vector<8x16xf32> -> vector<8x16xf32>
    %c0_178 = arith.constant 0 : index
    %c0_179 = arith.constant 0 : index
    %c14_180 = arith.constant 14 : index
    %c0_181 = arith.constant 0 : index
    %146 = vector.load %arg5[%c0_178, %c0_179, %c14_180, %c0_181] : memref<1x8x16x16xf32, #tpu.memory_space<vmem>>, vector<1x8x1x16xf32>
    %147 = vector.shape_cast %146 : vector<1x8x1x16xf32> to vector<8x16xf32>
    %148 = vector.shape_cast %145 : vector<8x16xf32> to vector<1x8x1x16xf32>
    tpu.vector_store %arg5[%c0_178, %c0_179, %c14_180, %c0_181], %148 {strides = array<i32>} : memref<1x8x16x16xf32, #tpu.memory_space<vmem>>, vector<1x8x1x16xf32>,
    %c0_182 = arith.constant 0 : index
    %c15 = arith.constant 15 : index
    %c0_183 = arith.constant 0 : index
    %149 = vector.load %arg6[%c0_182, %c15, %c0_183] : memref<8x16x16xf32, #tpu.memory_space<vmem>>, vector<8x1x16xf32>
    %150 = vector.shape_cast %149 : vector<8x1x16xf32> to vector<8x16xf32>
    %cst_184 = arith.constant dense<0.000000e+00> : vector<8x16xf32>
    %151 = tpu.matmul %2, %150, %cst_184 {dimension_numbers = #tpu.dot_dimension_numbers<[1], [0], [0], [1], [0, 0, 1, 1], [], []>} : vector<8x8xf32>, vector<8x16xf32>, vector<8x16xf32> -> vector<8x16xf32>
    %c0_185 = arith.constant 0 : index
    %c0_186 = arith.constant 0 : index
    %c15_187 = arith.constant 15 : index
    %c0_188 = arith.constant 0 : index
    %152 = vector.load %arg5[%c0_185, %c0_186, %c15_187, %c0_188] : memref<1x8x16x16xf32, #tpu.memory_space<vmem>>, vector<1x8x1x16xf32>
    %153 = vector.shape_cast %152 : vector<1x8x1x16xf32> to vector<8x16xf32>
    %154 = vector.shape_cast %151 : vector<8x16xf32> to vector<1x8x1x16xf32>
    tpu.vector_store %arg5[%c0_185, %c0_186, %c15_187, %c0_188], %154 {strides = array<i32>} : memref<1x8x16x16xf32, #tpu.memory_space<vmem>>, vector<1x8x1x16xf32>,
    return
  }
  func.func @transform_0(%arg0: i32) -> (i32, i32, i32, i32) {
    %c0_i32 = arith.constant 0 : i32
    %c0_i32_0 = arith.constant 0 : i32
    %c0_i32_1 = arith.constant 0 : i32
    %c0_i32_2 = arith.constant 0 : i32
    return %arg0, %c0_i32, %c0_i32_0, %c0_i32_1 : i32, i32, i32, i32
  }
  func.func @transform_1(%arg0: i32) -> (i32, i32) {
    %c0_i32 = arith.constant 0 : i32
    %c0_i32_0 = arith.constant 0 : i32
    %c0_i32_1 = arith.constant 0 : i32
    return %c0_i32, %c0_i32_0 : i32, i32
  }
  func.func @transform_2(%arg0: i32) -> (i32, i32) {
    %c0_i32 = arith.constant 0 : i32
    %c0_i32_0 = arith.constant 0 : i32
    %c0_i32_1 = arith.constant 0 : i32
    return %c0_i32, %c0_i32_0 : i32, i32
  }
  func.func @transform_3(%arg0: i32) -> (i32, i32) {
    %c0_i32 = arith.constant 0 : i32
    %c0_i32_0 = arith.constant 0 : i32
    %c0_i32_1 = arith.constant 0 : i32
    return %c0_i32, %c0_i32_0 : i32, i32
  }
  func.func @transform_4(%arg0: i32) -> (i32, i32, i32, i32) {
    %c0_i32 = arith.constant 0 : i32
    %c0_i32_0 = arith.constant 0 : i32
    %c0_i32_1 = arith.constant 0 : i32
    %c0_i32_2 = arith.constant 0 : i32
    return %arg0, %c0_i32, %c0_i32_0, %c0_i32_1 : i32, i32, i32, i32
  }
}

</mosaic_0001>

<llo_original>
// kernel: gaussian_3d_blur.1
$region0: #{gaussian_3d_blur.1}
  #allocation0 [shape = 'u32[]', space=smem, size = 0x4, offset = 0x4, fixed_abs, tag = 'smem constant byte address 0x4 - core index']
  #allocation1 [shape = 'u32[144,128]{1,0:T(1,128)}', space=vmem, size = 0x12000, scoped, tag = 'internal scratch']
  #allocation2 [shape = 'f32[8,16,16]{2,1,0:T(8,128)}', space=vmem, size = 0x10000, scoped, tag = 'scratch operand']
  %s0 = inlined_call_operand.hbm [shape: f32[8,8,16,16], index: 0, kind: input, shape index: {}]
  %s1 = inlined_call_operand.hbm [shape: f32[16,16], index: 1, kind: input, shape index: {}, may-alias: {1,2}]
  %s2 = inlined_call_operand.hbm [shape: f32[16,16], index: 2, kind: input, shape index: {}, may-alias: {1,2}]
  %s3 = inlined_call_operand.hbm [shape: f32[8,8], index: 3, kind: input, shape index: {}]
  %s4 = inlined_call_operand.hbm [shape: f32[8,8,16,16], index: 4, kind: output, shape index: {}]
  %s5 = sld [smem:[#allocation0]]
  $region65: #{gaussian_3d_blur.1} parent=0
    _
  %s7 = ssub.s32 1, %s5
  %s8 = scalar_select 0, %s7, %s5
  $region1: #{gaussian_3d_blur.1} parent=0
    #allocation3 [shape = 'u8[131072]{0}', space=vmem, size = 0x20000, scoped, tag = 'input window, operand 0']
    #allocation4 [shape = 's32[2]{0}', space=sflag, size = 0x8, scoped, tag = 'scoped memory for gaussian_3d_blur.1']
    #allocation5 [shape = 's32[2]{0}', space=sflag, size = 0x8, scoped, tag = 'scoped memory for gaussian_3d_blur.1']
    #allocation6 [shape = 'u8[8192]{0}', space=vmem, size = 0x2000, scoped, tag = 'input window, operand 1, single buffered']
    #allocation7 [shape = 's32[1]{0}', space=sflag, size = 0x4, scoped, tag = 'scoped memory for gaussian_3d_blur.1']
    #allocation8 [shape = 'u8[8192]{0}', space=vmem, size = 0x2000, scoped, tag = 'input window, operand 2, single buffered']
    #allocation9 [shape = 'u8[4096]{0}', space=vmem, size = 0x1000, scoped, tag = 'input window, operand 3, single buffered']
    #allocation10 [shape = 's32[1]{0}', space=sflag, size = 0x4, scoped, tag = 'scoped memory for gaussian_3d_blur.1']
    #allocation11 [shape = 'u8[131072]{0}', space=vmem, size = 0x20000, scoped, tag = 'output window, operand 0']
    %9 = vsyncpa [#allocation4], 0
    %s10 = scalar_lea.sflag [#allocation4], 1
    %11 = vsyncpa %s10, 0
    %12 = vsyncpa [#allocation7], 0
    %13 = vsyncpa [#allocation10], 0
    %14 = vsyncpa [#allocation5], 0
    %s15 = scalar_lea.sflag [#allocation5], 1
    %16 = vsyncpa %s15, 0
    loop: start=0, step=1, limit=10
    $region2: #{gaussian_3d_blur.1} parent=1 // loop_pre_header
      _
    $region3: #{gaussian_3d_blur.1} parent=1 // loop_header
      %s18 = sphi 0, %s22
      %p19 = scmp.ge.s32.totalorder %s18, 10
      %s28 = sphi 0, %s30
      %s31 = sphi 0, %s28
      %s32 = sphi 0, %s31
      %s48 = sphi 0, %s32
      %s52 = sphi 0, %s52
      %s54 = sphi 0, %s52
      %s55 = sphi 0, %s54
      %s69 = sphi 0, %s55
      %s73 = sphi 0, %s73
      %s75 = sphi 0, %s73
      %s76 = sphi 0, %s75
      %s90 = sphi 0, %s76
      %s94 = sphi 0, %s94
      %s96 = sphi 0, %s94
      %s97 = sphi 0, %s96
      %s111 = sphi 0, %s97
      %s117 = sphi 0, %s119
      %s120 = sphi 0, %s117
      %s121 = sphi 0, %s120
      %s137 = sphi 0, %s121
    $region4: #{gaussian_3d_blur.1} parent=1 // loop_header_branch
      %21 = sbr.rel (%p19) target = $region8
    $region5: #{gaussian_3d_blur.1} parent=1 // loop_body
      %s23 = ssub.s32 %s18, 1
      %s24 = ssub.s32 %s18, 2
      %s25 = sadd.s32 %s18, 1
      %s26 = ssub.s32 %s18, %s25
      %p27 = scmp.eq.s32.totalorder %s26, 0
      %s29 = sadd.s32 %s28, 1
      %s30 = scalar_select %p27, %s28, %s29
      %p33 = pneg %p27
      %p34 = scmp.eq.s32.totalorder %s18, 7
      %p35 = por %p33, %p34
      %p36 = scmp.ne.s32.totalorder %s28, %s31
      %p37 = scmp.eq.s32.totalorder %s18, 0
      %p38 = por %p36, %p37
      %p39 = scmp.ne.s32.totalorder %s28, %s31
      %p40 = scmp.eq.s32.totalorder %s23, 7
      %p41 = por %p39, %p40
      %p42 = scmp.ne.s32.totalorder %s31, %s32
      %p43 = scmp.eq.s32.totalorder %s23, 0
      %p44 = por %p42, %p43
      %p45 = scmp.ne.s32.totalorder %s31, %s32
      %p46 = scmp.eq.s32.totalorder %s24, 7
      %p47 = por %p45, %p46
      %p49 = scmp.ne.s32.totalorder %s32, %s48
      %p50 = scmp.eq.s32.totalorder %s24, 0
      %p51 = por %p49, %p50
      %s53 = sadd.s32 %s52, 1
      %p56 = scmp.eq.s32.totalorder %s18, 7
      %p57 = scmp.ne.s32.totalorder %s52, %s54
      %p58 = scmp.eq.s32.totalorder %s18, 0
      %p59 = por %p57, %p58
      %p60 = scmp.ne.s32.totalorder %s52, %s54
      %p61 = scmp.eq.s32.totalorder %s23, 7
      %p62 = por %p60, %p61
      %p63 = scmp.ne.s32.totalorder %s54, %s55
      %p64 = scmp.eq.s32.totalorder %s23, 0
      %p65 = por %p63, %p64
      %p66 = scmp.ne.s32.totalorder %s54, %s55
      %p67 = scmp.eq.s32.totalorder %s24, 7
      %p68 = por %p66, %p67
      %p70 = scmp.ne.s32.totalorder %s55, %s69
      %p71 = scmp.eq.s32.totalorder %s24, 0
      %p72 = por %p70, %p71
      %s74 = sadd.s32 %s73, 1
      %p77 = scmp.eq.s32.totalorder %s18, 7
      %p78 = scmp.ne.s32.totalorder %s73, %s75
      %p79 = scmp.eq.s32.totalorder %s18, 0
      %p80 = por %p78, %p79
      %p81 = scmp.ne.s32.totalorder %s73, %s75
      %p82 = scmp.eq.s32.totalorder %s23, 7
      %p83 = por %p81, %p82
      %p84 = scmp.ne.s32.totalorder %s75, %s76
      %p85 = scmp.eq.s32.totalorder %s23, 0
      %p86 = por %p84, %p85
      %p87 = scmp.ne.s32.totalorder %s75, %s76
      %p88 = scmp.eq.s32.totalorder %s24, 7
      %p89 = por %p87, %p88
      %p91 = scmp.ne.s32.totalorder %s76, %s90
      %p92 = scmp.eq.s32.totalorder %s24, 0
      %p93 = por %p91, %p92
      %s95 = sadd.s32 %s94, 1
      %p98 = scmp.eq.s32.totalorder %s18, 7
      %p99 = scmp.ne.s32.totalorder %s94, %s96
      %p100 = scmp.eq.s32.totalorder %s18, 0
      %p101 = por %p99, %p100
      %p102 = scmp.ne.s32.totalorder %s94, %s96
      %p103 = scmp.eq.s32.totalorder %s23, 7
      %p104 = por %p102, %p103
      %p105 = scmp.ne.s32.totalorder %s96, %s97
      %p106 = scmp.eq.s32.totalorder %s23, 0
      %p107 = por %p105, %p106
      %p108 = scmp.ne.s32.totalorder %s96, %s97
      %p109 = scmp.eq.s32.totalorder %s24, 7
      %p110 = por %p108, %p109
      %p112 = scmp.ne.s32.totalorder %s97, %s111
      %p113 = scmp.eq.s32.totalorder %s24, 0
      %p114 = por %p112, %p113
      %s115 = ssub.s32 %s18, %s25
      %p116 = scmp.eq.s32.totalorder %s115, 0
      %s118 = sadd.s32 %s117, 1
      %s119 = scalar_select %p116, %s117, %s118
      %p122 = pneg %p116
      %p123 = scmp.eq.s32.totalorder %s18, 7
      %p124 = por %p122, %p123
      %p125 = scmp.ne.s32.totalorder %s117, %s120
      %p126 = scmp.eq.s32.totalorder %s18, 0
      %p127 = por %p125, %p126
      %p128 = scmp.ne.s32.totalorder %s117, %s120
      %p129 = scmp.eq.s32.totalorder %s23, 7
      %p130 = por %p128, %p129
      %p131 = scmp.ne.s32.totalorder %s120, %s121
      %p132 = scmp.eq.s32.totalorder %s23, 0
      %p133 = por %p131, %p132
      %p134 = scmp.ne.s32.totalorder %s120, %s121
      %p135 = scmp.eq.s32.totalorder %s24, 7
      %p136 = por %p134, %p135
      %p138 = scmp.ne.s32.totalorder %s121, %s137
      %p139 = scmp.eq.s32.totalorder %s24, 0
      %p140 = por %p138, %p139
      %p141 = scmp.le.s32.totalorder 1, %s18
      %p142 = scmp.lt.s32.totalorder %s18, 9
      %p143 = pnand %p141, %p142
      %p144 = pneg %p143
      // Predicated region
      $region9: #{gaussian_3d_blur.1} parent=5 // pred_check
        _
      $region10: #{gaussian_3d_blur.1} parent=5 // pred_check_branch
        %146 = sbr.rel (%p143) target = $region12
      $region11: #{gaussian_3d_blur.1} parent=5 // pred_region
        %s147 = ssub.s32 %s18, 1
        // Predicated region
        $region13: #{gaussian_3d_blur.1} parent=11 // pred_check
          %p148 = pneg %p65
        $region14: #{gaussian_3d_blur.1} parent=11 // pred_check_branch
          %150 = sbr.rel (%p148) target = $region16
        $region15: #{gaussian_3d_blur.1} parent=11 // pred_region
          %s152 = ssub.s32 256, 256
          %153 = vsyncadd [#allocation7], %s152
          %s154 = sshll.u32 [#allocation6], 4
          %s155 = int_to_ptr.vmem [resolvable:$true] %s154
          %160 = dma.hbm_to_vmem [thread:$0]  %s1, 256, %s155, [#allocation7], 128, 128, 8
        $region16: #{gaussian_3d_blur.1} parent=11 // pred_fallthru
          _
        // Predicated region
        $region17: #{gaussian_3d_blur.1} parent=11 // pred_check
          %p161 = pneg %p86
        $region18: #{gaussian_3d_blur.1} parent=11 // pred_check_branch
          %163 = sbr.rel (%p161) target = $region20
        $region19: #{gaussian_3d_blur.1} parent=11 // pred_region
          %s165 = ssub.s32 256, 256
          %166 = vsyncadd [#allocation7], %s165
          %s167 = sshll.u32 [#allocation8], 4
          %s168 = int_to_ptr.vmem [resolvable:$true] %s167
          %173 = dma.hbm_to_vmem [thread:$0]  %s2, 256, %s168, [#allocation7], 128, 128, 8
        $region20: #{gaussian_3d_blur.1} parent=11 // pred_fallthru
          _
        // Predicated region
        $region21: #{gaussian_3d_blur.1} parent=11 // pred_check
          %p174 = pneg %p107
        $region22: #{gaussian_3d_blur.1} parent=11 // pred_check_branch
          %176 = sbr.rel (%p174) target = $region24
        $region23: #{gaussian_3d_blur.1} parent=11 // pred_region
          %s178 = ssub.s32 128, 128
          %179 = vsyncadd [#allocation10], %s178
          %s181 = sshll.u32 [#allocation9], 4
          %s182 = int_to_ptr.vmem [resolvable:$true] %s181
          %184 = dma.hbm_to_vmem [thread:$0]  %s3, 128, %s182, [#allocation10]
        $region24: #{gaussian_3d_blur.1} parent=11 // pred_fallthru
          _
      $region12: #{gaussian_3d_blur.1} parent=5 // pred_fallthru
        _
      %p185 = scmp.lt.s32.totalorder %s18, 8
      // Predicated region
      $region25: #{gaussian_3d_blur.1} parent=5 // pred_check
        %p186 = pneg %p185
      $region26: #{gaussian_3d_blur.1} parent=5 // pred_check_branch
        %188 = sbr.rel (%p186) target = $region28
      $region27: #{gaussian_3d_blur.1} parent=5 // pred_region
        // Predicated region
        $region29: #{gaussian_3d_blur.1} parent=27 // pred_check
          %p189 = pneg %p38
        $region30: #{gaussian_3d_blur.1} parent=27 // pred_check_branch
          %191 = sbr.rel (%p189) target = $region32
        $region31: #{gaussian_3d_blur.1} parent=27 // pred_region
          %s192 = sand.u32 %s28, 1
          %s193 = scalar_lea.sflag [#allocation4], %s192
          %s194 = sand.u32 %s28, 1
          %s195 = smul.addr %s194, 128
          %s196 = scalar_lea.vmem [#allocation3], %s195
          %s198 = ssub.s32 2048, 2048
          %199 = vsyncadd %s193, %s198
          %s200 = smul.addr %s18, 16
          %s201 = smul.addr %s200, 128
          %s202 = scalar_lea.hbm %s0, %s201
          %s203 = sshll.u32 %s196, 4
          %s204 = int_to_ptr.vmem [resolvable:$true] %s203
          %209 = dma.hbm_to_vmem [thread:$0]  %s202, 2048, %s204, %s193, 128, 128, 8
        $region32: #{gaussian_3d_blur.1} parent=27 // pred_fallthru
          _
      $region28: #{gaussian_3d_blur.1} parent=5 // pred_fallthru
        _
      %p210 = scmp.le.s32.totalorder 1, %s18
      %p211 = scmp.lt.s32.totalorder %s18, 9
      %p212 = pnand %p210, %p211
      %p213 = pneg %p212
      // Predicated region
      $region33: #{gaussian_3d_blur.1} parent=5 // pred_check
        _
      $region34: #{gaussian_3d_blur.1} parent=5 // pred_check_branch
        %215 = sbr.rel (%p212) target = $region36
      $region35: #{gaussian_3d_blur.1} parent=5 // pred_region
        %s216 = ssub.s32 %s18, 1
        %s217 = sand.u32 %s31, 1
        %s218 = scalar_lea.sflag [#allocation4], %s217
        %s219 = sand.u32 %s31, 1
        %s220 = smul.addr %s219, 128
        %s221 = scalar_lea.vmem [#allocation3], %s220
        // Predicated region
        $region37: #{gaussian_3d_blur.1} parent=35 // pred_check
          %p222 = pneg %p44
        $region38: #{gaussian_3d_blur.1} parent=35 // pred_check_branch
          %224 = sbr.rel (%p222) target = $region40
        $region39: #{gaussian_3d_blur.1} parent=35 // pred_region
          %225 = dma.done %s218, 2048
        $region40: #{gaussian_3d_blur.1} parent=35 // pred_fallthru
          _
        // Predicated region
        $region41: #{gaussian_3d_blur.1} parent=35 // pred_check
          %p226 = pneg %p65
        $region42: #{gaussian_3d_blur.1} parent=35 // pred_check_branch
          %228 = sbr.rel (%p226) target = $region44
        $region43: #{gaussian_3d_blur.1} parent=35 // pred_region
          %229 = dma.done [#allocation7], 256
        $region44: #{gaussian_3d_blur.1} parent=35 // pred_fallthru
          _
        // Predicated region
        $region45: #{gaussian_3d_blur.1} parent=35 // pred_check
          %p230 = pneg %p86
        $region46: #{gaussian_3d_blur.1} parent=35 // pred_check_branch
          %232 = sbr.rel (%p230) target = $region48
        $region47: #{gaussian_3d_blur.1} parent=35 // pred_region
          %233 = dma.done [#allocation7], 256
        $region48: #{gaussian_3d_blur.1} parent=35 // pred_fallthru
          _
        // Predicated region
        $region49: #{gaussian_3d_blur.1} parent=35 // pred_check
          %p234 = pneg %p107
        $region50: #{gaussian_3d_blur.1} parent=35 // pred_check_branch
          %236 = sbr.rel (%p234) target = $region52
        $region51: #{gaussian_3d_blur.1} parent=35 // pred_region
          %237 = dma.done [#allocation10], 128
        $region52: #{gaussian_3d_blur.1} parent=35 // pred_fallthru
          _
        %s238 = sand.u32 %s31, 1
        %s239 = scalar_lea.sflag [#allocation4], %s238
        %s240 = sand.u32 %s31, 1
        %s241 = smul.addr %s240, 128
        %s242 = scalar_lea.vmem [#allocation3], %s241
        %p243 = pneg %p44
        %p244 = pneg %p41
        %p245 = pneg %p65
        %p246 = pneg %p62
        %p247 = pneg %p86
        %p248 = pneg %p83
        %p249 = pneg %p107
        %p250 = pneg %p104
        %p251 = pneg %p133
        %p252 = pneg %p130
        %s253 = sand.u32 %s120, 1
        %s254 = scalar_lea.sflag [#allocation5], %s253
        %s255 = sand.u32 %s120, 1
        %s256 = smul.addr %s255, 128
        %s257 = scalar_lea.vmem [#allocation11], %s256
        %v258 = vld [vmem:[#allocation6] sm:$0xff]
        %v259 = vld [vmem:[#allocation6 + $0x8] sm:$0xff]
        %v260 = vld [vmem:[#allocation8] sm:$0xff]
        %v261 = vld [vmem:[#allocation8 + $0x8] sm:$0xff]
        %v262 = vld [vmem:[#allocation9] sm:$0xff]
        %v263 = vld [vmem:[%s221] sm:$0xff]
        %v264 = vld [vmem:[%s221 + $0x8] sm:$0xff]
        %vm265 = vcmask 130048
        %v267 = vsel %vm265, %v258, 0
        %v270 = vsel %vm265, %v259, 0
        %272 = vmatprep.subr.mxu0 0.0
        %273 = vmatpush1.msra.mxu0 0.0
        %274 = vmatprep.subr.mxu0 0.0
        %275 = vmatpush1.msra.mxu0 0.0
        %276 = vmatprep.subr.mxu0 0.0
        %277 = vmatpush1.msra.mxu0 0.0
        %278 = vmatprep.subr.mxu0 0.0
        %279 = vmatpush1.msra.mxu0 0.0
        %280 = vmatprep.subr.mxu0 0.0
        %281 = vmatpush1.msra.mxu0 0.0
        %282 = vmatprep.subr.mxu0 0.0
        %283 = vmatpush1.msra.mxu0 0.0
        %284 = vmatprep.subr.mxu0 0.0
        %285 = vmatpush1.msra.mxu0 0.0
        %286 = vmatprep.subr.mxu0 0.0
        %287 = vmatpush1.msra.mxu0 0.0
        %288 = vmatprep.subr.mxu0 0.0
        %289 = vmatpush1.msra.mxu0 0.0
        %290 = vmatprep.subr.mxu0 0.0
        %291 = vmatpush1.msra.mxu0 0.0
        %292 = vmatprep.subr.mxu0 0.0
        %293 = vmatpush1.msra.mxu0 0.0
        %294 = vmatprep.subr.mxu0 0.0
        %295 = vmatpush1.msra.mxu0 0.0
        %296 = vmatprep.subr.mxu0 0.0
        %297 = vmatpush1.msra.mxu0 0.0
        %298 = vmatprep.subr.mxu0 0.0
        %299 = vmatpush1.msra.mxu0 0.0
        %300 = vmatprep.subr.mxu0 0.0
        %301 = vmatpush1.msra.mxu0 %v264
        %302 = vmatprep.subr.mxu0 0.0
        %303 = vmatpush1.msra.mxu0 %v263
        %304 = vmatprep.subr.mxu0 0.0
        %305 = vmatpush2.msra.mxu0 0.0
        %306 = vmatprep.subr.mxu0 0.0
        %307 = vmatpush2.msra.mxu0 0.0
        %308 = vmatprep.subr.mxu0 0.0
        %309 = vmatpush2.msra.mxu0 0.0
        %310 = vmatprep.subr.mxu0 0.0
        %311 = vmatpush2.msra.mxu0 0.0
        %312 = vmatprep.subr.mxu0 0.0
        %313 = vmatpush2.msra.mxu0 0.0
        %314 = vmatprep.subr.mxu0 0.0
        %315 = vmatpush2.msra.mxu0 0.0
        %316 = vmatprep.subr.mxu0 0.0
        %317 = vmatpush2.msra.mxu0 0.0
        %318 = vmatprep.subr.mxu0 0.0
        %319 = vmatpush2.msra.mxu0 0.0
        %320 = vmatprep.subr.mxu0 0.0
        %321 = vmatpush2.msra.mxu0 0.0
        %322 = vmatprep.subr.mxu0 0.0
        %323 = vmatpush2.msra.mxu0 0.0
        %324 = vmatprep.subr.mxu0 0.0
        %325 = vmatpush2.msra.mxu0 0.0
        %326 = vmatprep.subr.mxu0 0.0
        %327 = vmatpush2.msra.mxu0 0.0
        %328 = vmatprep.subr.mxu0 0.0
        %329 = vmatpush2.msra.mxu0 0.0
        %330 = vmatprep.subr.mxu0 0.0
        %331 = vmatpush2.msra.mxu0 0.0
        %332 = vmatprep.subr.mxu0 0.0
        %333 = vmatpush2.msra.mxu0 0.0
        %334 = vmatprep.subr.mxu0 0.0
        %335 = vmatpush2.msra.mxu0 0.0
        %336 = vmatprep.mubr.f32.mxu0 0.0
        %337 = vmatmul.mubr.f32.gmra.mxu0 %v267
        %v338 = vpop.f32.mrf.mxu0
        %v339 = vadd.f32 0.0, %v338
        %v340 = vpop.f32.mrf.mxu0
        %341 = vmatprep.mubr.f32.mxu0 0.0
        %342 = vmatmul.mubr.f32.gmra.mxu0 %v270
        %v343 = vpop.f32.mrf.mxu0
        %v344 = vadd.f32 0.0, %v343
        %v345 = vpop.f32.mrf.mxu0
        %346 = vdwg.mxu0
        %v348 = vsel %vm265, %v339, 0
        %v351 = vsel %vm265, %v344, 0
        %353 = vmatprep.subr.mxu0 0.0
        %354 = vmatpush1.msra.mxu0 0.0
        %355 = vmatprep.subr.mxu0 0.0
        %356 = vmatpush1.msra.mxu0 0.0
        %357 = vmatprep.subr.mxu0 0.0
        %358 = vmatpush1.msra.mxu0 0.0
        %359 = vmatprep.subr.mxu0 0.0
        %360 = vmatpush1.msra.mxu0 0.0
        %361 = vmatprep.subr.mxu0 0.0
        %362 = vmatpush1.msra.mxu0 0.0
        %363 = vmatprep.subr.mxu0 0.0
        %364 = vmatpush1.msra.mxu0 0.0
        %365 = vmatprep.subr.mxu0 0.0
        %366 = vmatpush1.msra.mxu0 0.0
        %367 = vmatprep.subr.mxu0 0.0
        %368 = vmatpush1.msra.mxu0 0.0
        %369 = vmatprep.subr.mxu0 0.0
        %370 = vmatpush1.msra.mxu0 0.0
        %371 = vmatprep.subr.mxu0 0.0
        %372 = vmatpush1.msra.mxu0 0.0
        %373 = vmatprep.subr.mxu0 0.0
        %374 = vmatpush1.msra.mxu0 0.0
        %375 = vmatprep.subr.mxu0 0.0
        %376 = vmatpush1.msra.mxu0 0.0
        %377 = vmatprep.subr.mxu0 0.0
        %378 = vmatpush1.msra.mxu0 0.0
        %379 = vmatprep.subr.mxu0 0.0
        %380 = vmatpush1.msra.mxu0 0.0
        %381 = vmatprep.subr.mxu0 0.0
        %382 = vmatpush1.msra.mxu0 %v261
        %383 = vmatprep.subr.mxu0 0.0
        %384 = vmatpush1.msra.mxu0 %v260
        %385 = vmatprep.subr.mxu0 0.0
        %386 = vmatpush2.msra.mxu0 0.0
        %387 = vmatprep.subr.mxu0 0.0
        %388 = vmatpush2.msra.mxu0 0.0
        %389 = vmatprep.subr.mxu0 0.0
        %390 = vmatpush2.msra.mxu0 0.0
        %391 = vmatprep.subr.mxu0 0.0
        %392 = vmatpush2.msra.mxu0 0.0
        %393 = vmatprep.subr.mxu0 0.0
        %394 = vmatpush2.msra.mxu0 0.0
        %395 = vmatprep.subr.mxu0 0.0
        %396 = vmatpush2.msra.mxu0 0.0
        %397 = vmatprep.subr.mxu0 0.0
        %398 = vmatpush2.msra.mxu0 0.0
        %399 = vmatprep.subr.mxu0 0.0
        %400 = vmatpush2.msra.mxu0 0.0
        %401 = vmatprep.subr.mxu0 0.0
        %402 = vmatpush2.msra.mxu0 0.0
        %403 = vmatprep.subr.mxu0 0.0
        %404 = vmatpush2.msra.mxu0 0.0
        %405 = vmatprep.subr.mxu0 0.0
        %406 = vmatpush2.msra.mxu0 0.0
        %407 = vmatprep.subr.mxu0 0.0
        %408 = vmatpush2.msra.mxu0 0.0
        %409 = vmatprep.subr.mxu0 0.0
        %410 = vmatpush2.msra.mxu0 0.0
        %411 = vmatprep.subr.mxu0 0.0
        %412 = vmatpush2.msra.mxu0 0.0
        %413 = vmatprep.subr.mxu0 0.0
        %414 = vmatpush2.msra.mxu0 0.0
        %415 = vmatprep.subr.mxu0 0.0
        %416 = vmatpush2.msra.mxu0 0.0
        %417 = vmatprep.mubr.f32.mxu0 0.0
        %418 = vmatmul.mubr.f32.gmra.mxu0 %v348
        %v419 = vpop.f32.mrf.mxu0
        %v420 = vadd.f32 0.0, %v419
        %v421 = vpop.f32.mrf.mxu0
        %422 = vmatprep.mubr.f32.mxu0 0.0
        %423 = vmatmul.mubr.f32.gmra.mxu0 %v351
        %v424 = vpop.f32.mrf.mxu0
        %v425 = vadd.f32 0.0, %v424
        %v426 = vpop.f32.mrf.mxu0
        %427 = vdwg.mxu0
        %428 = vst.msk [vmem:[#allocation2] sm:$0xff] %vm265, %v420
        %429 = vst.msk [vmem:[#allocation2 + $0x8] sm:$0xff] %vm265, %v425
        %s430 = scalar_lea.vmem %s221, 16 [#allocation3]
        %v431 = vld [vmem:[%s430] sm:$0xff]
        %v432 = vld [vmem:[%s430 + $0x8] sm:$0xff]
        %433 = vmatprep.subr.mxu0 0.0
        %434 = vmatpush1.msra.mxu0 0.0
        %435 = vmatprep.subr.mxu0 0.0
        %436 = vmatpush1.msra.mxu0 0.0
        %437 = vmatprep.subr.mxu0 0.0
        %438 = vmatpush1.msra.mxu0 0.0
        %439 = vmatprep.subr.mxu0 0.0
        %440 = vmatpush1.msra.mxu0 0.0
        %441 = vmatprep.subr.mxu0 0.0
        %442 = vmatpush1.msra.mxu0 0.0
        %443 = vmatprep.subr.mxu0 0.0
        %444 = vmatpush1.msra.mxu0 0.0
        %445 = vmatprep.subr.mxu0 0.0
        %446 = vmatpush1.msra.mxu0 0.0
        %447 = vmatprep.subr.mxu0 0.0
        %448 = vmatpush1.msra.mxu0 0.0
        %449 = vmatprep.subr.mxu0 0.0
        %450 = vmatpush1.msra.mxu0 0.0
        %451 = vmatprep.subr.mxu0 0.0
        %452 = vmatpush1.msra.mxu0 0.0
        %453 = vmatprep.subr.mxu0 0.0
        %454 = vmatpush1.msra.mxu0 0.0
        %455 = vmatprep.subr.mxu0 0.0
        %456 = vmatpush1.msra.mxu0 0.0
        %457 = vmatprep.subr.mxu0 0.0
        %458 = vmatpush1.msra.mxu0 0.0
        %459 = vmatprep.subr.mxu0 0.0
        %460 = vmatpush1.msra.mxu0 0.0
        %461 = vmatprep.subr.mxu0 0.0
        %462 = vmatpush1.msra.mxu0 %v432
        %463 = vmatprep.subr.mxu0 0.0
        %464 = vmatpush1.msra.mxu0 %v431
        %465 = vmatprep.subr.mxu0 0.0
        %466 = vmatpush2.msra.mxu0 0.0
        %467 = vmatprep.subr.mxu0 0.0
        %468 = vmatpush2.msra.mxu0 0.0
        %469 = vmatprep.subr.mxu0 0.0
        %470 = vmatpush2.msra.mxu0 0.0
        %471 = vmatprep.subr.mxu0 0.0
        %472 = vmatpush2.msra.mxu0 0.0
        %473 = vmatprep.subr.mxu0 0.0
        %474 = vmatpush2.msra.mxu0 0.0
        %475 = vmatprep.subr.mxu0 0.0
        %476 = vmatpush2.msra.mxu0 0.0
        %477 = vmatprep.subr.mxu0 0.0
        %478 = vmatpush2.msra.mxu0 0.0
        %479 = vmatprep.subr.mxu0 0.0
        %480 = vmatpush2.msra.mxu0 0.0
        %481 = vmatprep.subr.mxu0 0.0
        %482 = vmatpush2.msra.mxu0 0.0
        %483 = vmatprep.subr.mxu0 0.0
        %484 = vmatpush2.msra.mxu0 0.0
        %485 = vmatprep.subr.mxu0 0.0
        %486 = vmatpush2.msra.mxu0 0.0
        %487 = vmatprep.subr.mxu0 0.0
        %488 = vmatpush2.msra.mxu0 0.0
        %489 = vmatprep.subr.mxu0 0.0
        %490 = vmatpush2.msra.mxu0 0.0
        %491 = vmatprep.subr.mxu0 0.0
        %492 = vmatpush2.msra.mxu0 0.0
        %493 = vmatprep.subr.mxu0 0.0
        %494 = vmatpush2.msra.mxu0 0.0
        %495 = vmatprep.subr.mxu0 0.0
        %496 = vmatpush2.msra.mxu0 0.0
        %497 = vmatprep.mubr.f32.mxu0 0.0
        %498 = vmatmul.mubr.f32.gmra.mxu0 %v267
        %v499 = vpop.f32.mrf.mxu0
        %v500 = vadd.f32 0.0, %v499
        %v501 = vpop.f32.mrf.mxu0
        %502 = vmatprep.mubr.f32.mxu0 0.0
        %503 = vmatmul.mubr.f32.gmra.mxu0 %v270
        %v504 = vpop.f32.mrf.mxu0
        %v505 = vadd.f32 0.0, %v504
        %v506 = vpop.f32.mrf.mxu0
        %507 = vdwg.mxu0
        %v509 = vsel %vm265, %v500, 0
        %v512 = vsel %vm265, %v505, 0
        %514 = vmatprep.subr.mxu0 0.0
        %515 = vmatpush1.msra.mxu0 0.0
        %516 = vmatprep.subr.mxu0 0.0
        %517 = vmatpush1.msra.mxu0 0.0
        %518 = vmatprep.subr.mxu0 0.0
        %519 = vmatpush1.msra.mxu0 0.0
        %520 = vmatprep.subr.mxu0 0.0
        %521 = vmatpush1.msra.mxu0 0.0
        %522 = vmatprep.subr.mxu0 0.0
        %523 = vmatpush1.msra.mxu0 0.0
        %524 = vmatprep.subr.mxu0 0.0
        %525 = vmatpush1.msra.mxu0 0.0
        %526 = vmatprep.subr.mxu0 0.0
        %527 = vmatpush1.msra.mxu0 0.0
        %528 = vmatprep.subr.mxu0 0.0
        %529 = vmatpush1.msra.mxu0 0.0
        %530 = vmatprep.subr.mxu0 0.0
        %531 = vmatpush1.msra.mxu0 0.0
        %532 = vmatprep.subr.mxu0 0.0
        %533 = vmatpush1.msra.mxu0 0.0
        %534 = vmatprep.subr.mxu0 0.0
        %535 = vmatpush1.msra.mxu0 0.0
        %536 = vmatprep.subr.mxu0 0.0
        %537 = vmatpush1.msra.mxu0 0.0
        %538 = vmatprep.subr.mxu0 0.0
        %539 = vmatpush1.msra.mxu0 0.0
        %540 = vmatprep.subr.mxu0 0.0
        %541 = vmatpush1.msra.mxu0 0.0
        %542 = vmatprep.subr.mxu0 0.0
        %543 = vmatpush1.msra.mxu0 %v261
        %544 = vmatprep.subr.mxu0 0.0
        %545 = vmatpush1.msra.mxu0 %v260
        %546 = vmatprep.subr.mxu0 0.0
        %547 = vmatpush2.msra.mxu0 0.0
        %548 = vmatprep.subr.mxu0 0.0
        %549 = vmatpush2.msra.mxu0 0.0
        %550 = vmatprep.subr.mxu0 0.0
        %551 = vmatpush2.msra.mxu0 0.0
        %552 = vmatprep.subr.mxu0 0.0
        %553 = vmatpush2.msra.mxu0 0.0
        %554 = vmatprep.subr.mxu0 0.0
        %555 = vmatpush2.msra.mxu0 0.0
        %556 = vmatprep.subr.mxu0 0.0
        %557 = vmatpush2.msra.mxu0 0.0
        %558 = vmatprep.subr.mxu0 0.0
        %559 = vmatpush2.msra.mxu0 0.0
        %560 = vmatprep.subr.mxu0 0.0
        %561 = vmatpush2.msra.mxu0 0.0
        %562 = vmatprep.subr.mxu0 0.0
        %563 = vmatpush2.msra.mxu0 0.0
        %564 = vmatprep.subr.mxu0 0.0
        %565 = vmatpush2.msra.mxu0 0.0
        %566 = vmatprep.subr.mxu0 0.0
        %567 = vmatpush2.msra.mxu0 0.0
        %568 = vmatprep.subr.mxu0 0.0
        %569 = vmatpush2.msra.mxu0 0.0
        %570 = vmatprep.subr.mxu0 0.0
        %571 = vmatpush2.msra.mxu0 0.0
        %572 = vmatprep.subr.mxu0 0.0
        %573 = vmatpush2.msra.mxu0 0.0
        %574 = vmatprep.subr.mxu0 0.0
        %575 = vmatpush2.msra.mxu0 0.0
        %576 = vmatprep.subr.mxu0 0.0
        %577 = vmatpush2.msra.mxu0 0.0
        %578 = vmatprep.mubr.f32.mxu0 0.0
        %579 = vmatmul.mubr.f32.gmra.mxu0 %v509
        %v580 = vpop.f32.mrf.mxu0
        %v581 = vadd.f32 0.0, %v580
        %v582 = vpop.f32.mrf.mxu0
        %583 = vmatprep.mubr.f32.mxu0 0.0
        %584 = vmatmul.mubr.f32.gmra.mxu0 %v512
        %v585 = vpop.f32.mrf.mxu0
        %v586 = vadd.f32 0.0, %v585
        %v587 = vpop.f32.mrf.mxu0
        %588 = vdwg.mxu0
        %s589 = scalar_lea.vmem [#allocation2], 16
        %590 = vst.msk [vmem:[%s589] sm:$0xff] %vm265, %v581
        %591 = vst.msk [vmem:[%s589 + $0x8] sm:$0xff] %vm265, %v586
        %s592 = scalar_lea.vmem %s221, 32 [#allocation3]
        %v593 = vld [vmem:[%s592] sm:$0xff]
        %v594 = vld [vmem:[%s592 + $0x8] sm:$0xff]
        %595 = vmatprep.subr.mxu0 0.0
        %596 = vmatpush1.msra.mxu0 0.0
        %597 = vmatprep.subr.mxu0 0.0
        %598 = vmatpush1.msra.mxu0 0.0
        %599 = vmatprep.subr.mxu0 0.0
        %600 = vmatpush1.msra.mxu0 0.0
        %601 = vmatprep.subr.mxu0 0.0
        %602 = vmatpush1.msra.mxu0 0.0
        %603 = vmatprep.subr.mxu0 0.0
        %604 = vmatpush1.msra.mxu0 0.0
        %605 = vmatprep.subr.mxu0 0.0
        %606 = vmatpush1.msra.mxu0 0.0
        %607 = vmatprep.subr.mxu0 0.0
        %608 = vmatpush1.msra.mxu0 0.0
        %609 = vmatprep.subr.mxu0 0.0
        %610 = vmatpush1.msra.mxu0 0.0
        %611 = vmatprep.subr.mxu0 0.0
        %612 = vmatpush1.msra.mxu0 0.0
        %613 = vmatprep.subr.mxu0 0.0
        %614 = vmatpush1.msra.mxu0 0.0
        %615 = vmatprep.subr.mxu0 0.0
        %616 = vmatpush1.msra.mxu0 0.0
        %617 = vmatprep.subr.mxu0 0.0
        %618 = vmatpush1.msra.mxu0 0.0
        %619 = vmatprep.subr.mxu0 0.0
        %620 = vmatpush1.msra.mxu0 0.0
        %621 = vmatprep.subr.mxu0 0.0
        %622 = vmatpush1.msra.mxu0 0.0
        %623 = vmatprep.subr.mxu0 0.0
        %624 = vmatpush1.msra.mxu0 %v594
        %625 = vmatprep.subr.mxu0 0.0
        %626 = vmatpush1.msra.mxu0 %v593
        %627 = vmatprep.subr.mxu0 0.0
        %628 = vmatpush2.msra.mxu0 0.0
        %629 = vmatprep.subr.mxu0 0.0
        %630 = vmatpush2.msra.mxu0 0.0
        %631 = vmatprep.subr.mxu0 0.0
        %632 = vmatpush2.msra.mxu0 0.0
        %633 = vmatprep.subr.mxu0 0.0
        %634 = vmatpush2.msra.mxu0 0.0
        %635 = vmatprep.subr.mxu0 0.0
        %636 = vmatpush2.msra.mxu0 0.0
        %637 = vmatprep.subr.mxu0 0.0
        %638 = vmatpush2.msra.mxu0 0.0
        %639 = vmatprep.subr.mxu0 0.0
        %640 = vmatpush2.msra.mxu0 0.0
        %641 = vmatprep.subr.mxu0 0.0
        %642 = vmatpush2.msra.mxu0 0.0
        %643 = vmatprep.subr.mxu0 0.0
        %644 = vmatpush2.msra.mxu0 0.0
        %645 = vmatprep.subr.mxu0 0.0
        %646 = vmatpush2.msra.mxu0 0.0
        %647 = vmatprep.subr.mxu0 0.0
        %648 = vmatpush2.msra.mxu0 0.0
        %649 = vmatprep.subr.mxu0 0.0
        %650 = vmatpush2.msra.mxu0 0.0
        %651 = vmatprep.subr.mxu0 0.0
        %652 = vmatpush2.msra.mxu0 0.0
        %653 = vmatprep.subr.mxu0 0.0
        %654 = vmatpush2.msra.mxu0 0.0
        %655 = vmatprep.subr.mxu0 0.0
        %656 = vmatpush2.msra.mxu0 0.0
        %657 = vmatprep.subr.mxu0 0.0
        %658 = vmatpush2.msra.mxu0 0.0
        %659 = vmatprep.mubr.f32.mxu0 0.0
        %660 = vmatmul.mubr.f32.gmra.mxu0 %v267
        %v661 = vpop.f32.mrf.mxu0
        %v662 = vadd.f32 0.0, %v661
        %v663 = vpop.f32.mrf.mxu0
        %664 = vmatprep.mubr.f32.mxu0 0.0
        %665 = vmatmul.mubr.f32.gmra.mxu0 %v270
        %v666 = vpop.f32.mrf.mxu0
        %v667 = vadd.f32 0.0, %v666
        %v668 = vpop.f32.mrf.mxu0
        %669 = vdwg.mxu0
        %v671 = vsel %vm265, %v662, 0
        %v674 = vsel %vm265, %v667, 0
        %676 = vmatprep.subr.mxu0 0.0
        %677 = vmatpush1.msra.mxu0 0.0
        %678 = vmatprep.subr.mxu0 0.0
        %679 = vmatpush1.msra.mxu0 0.0
        %680 = vmatprep.subr.mxu0 0.0
        %681 = vmatpush1.msra.mxu0 0.0
        %682 = vmatprep.subr.mxu0 0.0
        %683 = vmatpush1.msra.mxu0 0.0
        %684 = vmatprep.subr.mxu0 0.0
        %685 = vmatpush1.msra.mxu0 0.0
        %686 = vmatprep.subr.mxu0 0.0
        %687 = vmatpush1.msra.mxu0 0.0
        %688 = vmatprep.subr.mxu0 0.0
        %689 = vmatpush1.msra.mxu0 0.0
        %690 = vmatprep.subr.mxu0 0.0
        %691 = vmatpush1.msra.mxu0 0.0
        %692 = vmatprep.subr.mxu0 0.0
        %693 = vmatpush1.msra.mxu0 0.0
        %694 = vmatprep.subr.mxu0 0.0
        %695 = vmatpush1.msra.mxu0 0.0
        %696 = vmatprep.subr.mxu0 0.0
        %697 = vmatpush1.msra.mxu0 0.0
        %698 = vmatprep.subr.mxu0 0.0
        %699 = vmatpush1.msra.mxu0 0.0
        %700 = vmatprep.subr.mxu0 0.0
        %701 = vmatpush1.msra.mxu0 0.0
        %702 = vmatprep.subr.mxu0 0.0
        %703 = vmatpush1.msra.mxu0 0.0
        %704 = vmatprep.subr.mxu0 0.0
        %705 = vmatpush1.msra.mxu0 %v261
        %706 = vmatprep.subr.mxu0 0.0
        %707 = vmatpush1.msra.mxu0 %v260
        %708 = vmatprep.subr.mxu0 0.0
        %709 = vmatpush2.msra.mxu0 0.0
        %710 = vmatprep.subr.mxu0 0.0
        %711 = vmatpush2.msra.mxu0 0.0
        %712 = vmatprep.subr.mxu0 0.0
        %713 = vmatpush2.msra.mxu0 0.0
        %714 = vmatprep.subr.mxu0 0.0
        %715 = vmatpush2.msra.mxu0 0.0
        %716 = vmatprep.subr.mxu0 0.0
        %717 = vmatpush2.msra.mxu0 0.0
        %718 = vmatprep.subr.mxu0 0.0
        %719 = vmatpush2.msra.mxu0 0.0
        %720 = vmatprep.subr.mxu0 0.0
        %721 = vmatpush2.msra.mxu0 0.0
        %722 = vmatprep.subr.mxu0 0.0
        %723 = vmatpush2.msra.mxu0 0.0
        %724 = vmatprep.subr.mxu0 0.0
        %725 = vmatpush2.msra.mxu0 0.0
        %726 = vmatprep.subr.mxu0 0.0
        %727 = vmatpush2.msra.mxu0 0.0
        %728 = vmatprep.subr.mxu0 0.0
        %729 = vmatpush2.msra.mxu0 0.0
        %730 = vmatprep.subr.mxu0 0.0
        %731 = vmatpush2.msra.mxu0 0.0
        %732 = vmatprep.subr.mxu0 0.0
        %733 = vmatpush2.msra.mxu0 0.0
        %734 = vmatprep.subr.mxu0 0.0
        %735 = vmatpush2.msra.mxu0 0.0
        %736 = vmatprep.subr.mxu0 0.0
        %737 = vmatpush2.msra.mxu0 0.0
        %738 = vmatprep.subr.mxu0 0.0
        %739 = vmatpush2.msra.mxu0 0.0
        %740 = vmatprep.mubr.f32.mxu0 0.0
        %741 = vmatmul.mubr.f32.gmra.mxu0 %v671
        %v742 = vpop.f32.mrf.mxu0
        %v743 = vadd.f32 0.0, %v742
        %v744 = vpop.f32.mrf.mxu0
        %745 = vmatprep.mubr.f32.mxu0 0.0
        %746 = vmatmul.mubr.f32.gmra.mxu0 %v674
        %v747 = vpop.f32.mrf.mxu0
        %v748 = vadd.f32 0.0, %v747
        %v749 = vpop.f32.mrf.mxu0
        %750 = vdwg.mxu0
        %s751 = scalar_lea.vmem [#allocation2], 32
        %752 = vst.msk [vmem:[%s751] sm:$0xff] %vm265, %v743
        %753 = vst.msk [vmem:[%s751 + $0x8] sm:$0xff] %vm265, %v748
        %s754 = scalar_lea.vmem %s221, 48 [#allocation3]
        %v755 = vld [vmem:[%s754] sm:$0xff]
        %v756 = vld [vmem:[%s754 + $0x8] sm:$0xff]
        %757 = vmatprep.subr.mxu0 0.0
        %758 = vmatpush1.msra.mxu0 0.0
        %759 = vmatprep.subr.mxu0 0.0
        %760 = vmatpush1.msra.mxu0 0.0
        %761 = vmatprep.subr.mxu0 0.0
        %762 = vmatpush1.msra.mxu0 0.0
        %763 = vmatprep.subr.mxu0 0.0
        %764 = vmatpush1.msra.mxu0 0.0
        %765 = vmatprep.subr.mxu0 0.0
        %766 = vmatpush1.msra.mxu0 0.0
        %767 = vmatprep.subr.mxu0 0.0
        %768 = vmatpush1.msra.mxu0 0.0
        %769 = vmatprep.subr.mxu0 0.0
        %770 = vmatpush1.msra.mxu0 0.0
        %771 = vmatprep.subr.mxu0 0.0
        %772 = vmatpush1.msra.mxu0 0.0
        %773 = vmatprep.subr.mxu0 0.0
        %774 = vmatpush1.msra.mxu0 0.0
        %775 = vmatprep.subr.mxu0 0.0
        %776 = vmatpush1.msra.mxu0 0.0
        %777 = vmatprep.subr.mxu0 0.0
        %778 = vmatpush1.msra.mxu0 0.0
        %779 = vmatprep.subr.mxu0 0.0
        %780 = vmatpush1.msra.mxu0 0.0
        %781 = vmatprep.subr.mxu0 0.0
        %782 = vmatpush1.msra.mxu0 0.0
        %783 = vmatprep.subr.mxu0 0.0
        %784 = vmatpush1.msra.mxu0 0.0
        %785 = vmatprep.subr.mxu0 0.0
        %786 = vmatpush1.msra.mxu0 %v756
        %787 = vmatprep.subr.mxu0 0.0
        %788 = vmatpush1.msra.mxu0 %v755
        %789 = vmatprep.subr.mxu0 0.0
        %790 = vmatpush2.msra.mxu0 0.0
        %791 = vmatprep.subr.mxu0 0.0
        %792 = vmatpush2.msra.mxu0 0.0
        %793 = vmatprep.subr.mxu0 0.0
        %794 = vmatpush2.msra.mxu0 0.0
        %795 = vmatprep.subr.mxu0 0.0
        %796 = vmatpush2.msra.mxu0 0.0
        %797 = vmatprep.subr.mxu0 0.0
        %798 = vmatpush2.msra.mxu0 0.0
        %799 = vmatprep.subr.mxu0 0.0
        %800 = vmatpush2.msra.mxu0 0.0
        %801 = vmatprep.subr.mxu0 0.0
        %802 = vmatpush2.msra.mxu0 0.0
        %803 = vmatprep.subr.mxu0 0.0
        %804 = vmatpush2.msra.mxu0 0.0
        %805 = vmatprep.subr.mxu0 0.0
        %806 = vmatpush2.msra.mxu0 0.0
        %807 = vmatprep.subr.mxu0 0.0
        %808 = vmatpush2.msra.mxu0 0.0
        %809 = vmatprep.subr.mxu0 0.0
        %810 = vmatpush2.msra.mxu0 0.0
        %811 = vmatprep.subr.mxu0 0.0
        %812 = vmatpush2.msra.mxu0 0.0
        %813 = vmatprep.subr.mxu0 0.0
        %814 = vmatpush2.msra.mxu0 0.0
        %815 = vmatprep.subr.mxu0 0.0
        %816 = vmatpush2.msra.mxu0 0.0
        %817 = vmatprep.subr.mxu0 0.0
        %818 = vmatpush2.msra.mxu0 0.0
        %819 = vmatprep.subr.mxu0 0.0
        %820 = vmatpush2.msra.mxu0 0.0
        %821 = vmatprep.mubr.f32.mxu0 0.0
        %822 = vmatmul.mubr.f32.gmra.mxu0 %v267
        %v823 = vpop.f32.mrf.mxu0
        %v824 = vadd.f32 0.0, %v823
        %v825 = vpop.f32.mrf.mxu0
        %826 = vmatprep.mubr.f32.mxu0 0.0
        %827 = vmatmul.mubr.f32.gmra.mxu0 %v270
        %v828 = vpop.f32.mrf.mxu0
        %v829 = vadd.f32 0.0, %v828
        %v830 = vpop.f32.mrf.mxu0
        %831 = vdwg.mxu0
        %v833 = vsel %vm265, %v824, 0
        %v836 = vsel %vm265, %v829, 0
        %838 = vmatprep.subr.mxu0 0.0
        %839 = vmatpush1.msra.mxu0 0.0
        %840 = vmatprep.subr.mxu0 0.0
        %841 = vmatpush1.msra.mxu0 0.0
        %842 = vmatprep.subr.mxu0 0.0
        %843 = vmatpush1.msra.mxu0 0.0
        %844 = vmatprep.subr.mxu0 0.0
        %845 = vmatpush1.msra.mxu0 0.0
        %846 = vmatprep.subr.mxu0 0.0
        %847 = vmatpush1.msra.mxu0 0.0
        %848 = vmatprep.subr.mxu0 0.0
        %849 = vmatpush1.msra.mxu0 0.0
        %850 = vmatprep.subr.mxu0 0.0
        %851 = vmatpush1.msra.mxu0 0.0
        %852 = vmatprep.subr.mxu0 0.0
        %853 = vmatpush1.msra.mxu0 0.0
        %854 = vmatprep.subr.mxu0 0.0
        %855 = vmatpush1.msra.mxu0 0.0
        %856 = vmatprep.subr.mxu0 0.0
        %857 = vmatpush1.msra.mxu0 0.0
        %858 = vmatprep.subr.mxu0 0.0
        %859 = vmatpush1.msra.mxu0 0.0
        %860 = vmatprep.subr.mxu0 0.0
        %861 = vmatpush1.msra.mxu0 0.0
        %862 = vmatprep.subr.mxu0 0.0
        %863 = vmatpush1.msra.mxu0 0.0
        %864 = vmatprep.subr.mxu0 0.0
        %865 = vmatpush1.msra.mxu0 0.0
        %866 = vmatprep.subr.mxu0 0.0
        %867 = vmatpush1.msra.mxu0 %v261
        %868 = vmatprep.subr.mxu0 0.0
        %869 = vmatpush1.msra.mxu0 %v260
        %870 = vmatprep.subr.mxu0 0.0
        %871 = vmatpush2.msra.mxu0 0.0
        %872 = vmatprep.subr.mxu0 0.0
        %873 = vmatpush2.msra.mxu0 0.0
        %874 = vmatprep.subr.mxu0 0.0
        %875 = vmatpush2.msra.mxu0 0.0
        %876 = vmatprep.subr.mxu0 0.0
        %877 = vmatpush2.msra.mxu0 0.0
        %878 = vmatprep.subr.mxu0 0.0
        %879 = vmatpush2.msra.mxu0 0.0
        %880 = vmatprep.subr.mxu0 0.0
        %881 = vmatpush2.msra.mxu0 0.0
        %882 = vmatprep.subr.mxu0 0.0
        %883 = vmatpush2.msra.mxu0 0.0
        %884 = vmatprep.subr.mxu0 0.0
        %885 = vmatpush2.msra.mxu0 0.0
        %886 = vmatprep.subr.mxu0 0.0
        %887 = vmatpush2.msra.mxu0 0.0
        %888 = vmatprep.subr.mxu0 0.0
        %889 = vmatpush2.msra.mxu0 0.0
        %890 = vmatprep.subr.mxu0 0.0
        %891 = vmatpush2.msra.mxu0 0.0
        %892 = vmatprep.subr.mxu0 0.0
        %893 = vmatpush2.msra.mxu0 0.0
        %894 = vmatprep.subr.mxu0 0.0
        %895 = vmatpush2.msra.mxu0 0.0
        %896 = vmatprep.subr.mxu0 0.0
        %897 = vmatpush2.msra.mxu0 0.0
        %898 = vmatprep.subr.mxu0 0.0
        %899 = vmatpush2.msra.mxu0 0.0
        %900 = vmatprep.subr.mxu0 0.0
        %901 = vmatpush2.msra.mxu0 0.0
        %902 = vmatprep.mubr.f32.mxu0 0.0
        %903 = vmatmul.mubr.f32.gmra.mxu0 %v833
        %v904 = vpop.f32.mrf.mxu0
        %v905 = vadd.f32 0.0, %v904
        %v906 = vpop.f32.mrf.mxu0
        %907 = vmatprep.mubr.f32.mxu0 0.0
        %908 = vmatmul.mubr.f32.gmra.mxu0 %v836
        %v909 = vpop.f32.mrf.mxu0
        %v910 = vadd.f32 0.0, %v909
        %v911 = vpop.f32.mrf.mxu0
        %912 = vdwg.mxu0
        %s913 = scalar_lea.vmem [#allocation2], 48
        %914 = vst.msk [vmem:[%s913] sm:$0xff] %vm265, %v905
        %915 = vst.msk [vmem:[%s913 + $0x8] sm:$0xff] %vm265, %v910
        %s916 = scalar_lea.vmem %s221, 64 [#allocation3]
        %v917 = vld [vmem:[%s916] sm:$0xff]
        %v918 = vld [vmem:[%s916 + $0x8] sm:$0xff]
        %919 = vmatprep.subr.mxu0 0.0
        %920 = vmatpush1.msra.mxu0 0.0
        %921 = vmatprep.subr.mxu0 0.0
        %922 = vmatpush1.msra.mxu0 0.0
        %923 = vmatprep.subr.mxu0 0.0
        %924 = vmatpush1.msra.mxu0 0.0
        %925 = vmatprep.subr.mxu0 0.0
        %926 = vmatpush1.msra.mxu0 0.0
        %927 = vmatprep.subr.mxu0 0.0
        %928 = vmatpush1.msra.mxu0 0.0
        %929 = vmatprep.subr.mxu0 0.0
        %930 = vmatpush1.msra.mxu0 0.0
        %931 = vmatprep.subr.mxu0 0.0
        %932 = vmatpush1.msra.mxu0 0.0
        %933 = vmatprep.subr.mxu0 0.0
        %934 = vmatpush1.msra.mxu0 0.0
        %935 = vmatprep.subr.mxu0 0.0
        %936 = vmatpush1.msra.mxu0 0.0
        %937 = vmatprep.subr.mxu0 0.0
        %938 = vmatpush1.msra.mxu0 0.0
        %939 = vmatprep.subr.mxu0 0.0
        %940 = vmatpush1.msra.mxu0 0.0
        %941 = vmatprep.subr.mxu0 0.0
        %942 = vmatpush1.msra.mxu0 0.0
        %943 = vmatprep.subr.mxu0 0.0
        %944 = vmatpush1.msra.mxu0 0.0
        %945 = vmatprep.subr.mxu0 0.0
        %946 = vmatpush1.msra.mxu0 0.0
        %947 = vmatprep.subr.mxu0 0.0
        %948 = vmatpush1.msra.mxu0 %v918
        %949 = vmatprep.subr.mxu0 0.0
        %950 = vmatpush1.msra.mxu0 %v917
        %951 = vmatprep.subr.mxu0 0.0
        %952 = vmatpush2.msra.mxu0 0.0
        %953 = vmatprep.subr.mxu0 0.0
        %954 = vmatpush2.msra.mxu0 0.0
        %955 = vmatprep.subr.mxu0 0.0
        %956 = vmatpush2.msra.mxu0 0.0
        %957 = vmatprep.subr.mxu0 0.0
        %958 = vmatpush2.msra.mxu0 0.0
        %959 = vmatprep.subr.mxu0 0.0
        %960 = vmatpush2.msra.mxu0 0.0
        %961 = vmatprep.subr.mxu0 0.0
        %962 = vmatpush2.msra.mxu0 0.0
        %963 = vmatprep.subr.mxu0 0.0
        %964 = vmatpush2.msra.mxu0 0.0
        %965 = vmatprep.subr.mxu0 0.0
        %966 = vmatpush2.msra.mxu0 0.0
        %967 = vmatprep.subr.mxu0 0.0
        %968 = vmatpush2.msra.mxu0 0.0
        %969 = vmatprep.subr.mxu0 0.0
        %970 = vmatpush2.msra.mxu0 0.0
        %971 = vmatprep.subr.mxu0 0.0
        %972 = vmatpush2.msra.mxu0 0.0
        %973 = vmatprep.subr.mxu0 0.0
        %974 = vmatpush2.msra.mxu0 0.0
        %975 = vmatprep.subr.mxu0 0.0
        %976 = vmatpush2.msra.mxu0 0.0
        %977 = vmatprep.subr.mxu0 0.0
        %978 = vmatpush2.msra.mxu0 0.0
        %979 = vmatprep.subr.mxu0 0.0
        %980 = vmatpush2.msra.mxu0 0.0
        %981 = vmatprep.subr.mxu0 0.0
        %982 = vmatpush2.msra.mxu0 0.0
        %983 = vmatprep.mubr.f32.mxu0 0.0
        %984 = vmatmul.mubr.f32.gmra.mxu0 %v267
        %v985 = vpop.f32.mrf.mxu0
        %v986 = vadd.f32 0.0, %v985
        %v987 = vpop.f32.mrf.mxu0
        %988 = vmatprep.mubr.f32.mxu0 0.0
        %989 = vmatmul.mubr.f32.gmra.mxu0 %v270
        %v990 = vpop.f32.mrf.mxu0
        %v991 = vadd.f32 0.0, %v990
        %v992 = vpop.f32.mrf.mxu0
        %993 = vdwg.mxu0
        %v995 = vsel %vm265, %v986, 0
        %v998 = vsel %vm265, %v991, 0
        %1000 = vmatprep.subr.mxu0 0.0
        %1001 = vmatpush1.msra.mxu0 0.0
        %1002 = vmatprep.subr.mxu0 0.0
        %1003 = vmatpush1.msra.mxu0 0.0
        %1004 = vmatprep.subr.mxu0 0.0
        %1005 = vmatpush1.msra.mxu0 0.0
        %1006 = vmatprep.subr.mxu0 0.0
        %1007 = vmatpush1.msra.mxu0 0.0
        %1008 = vmatprep.subr.mxu0 0.0
        %1009 = vmatpush1.msra.mxu0 0.0
        %1010 = vmatprep.subr.mxu0 0.0
        %1011 = vmatpush1.msra.mxu0 0.0
        %1012 = vmatprep.subr.mxu0 0.0
        %1013 = vmatpush1.msra.mxu0 0.0
        %1014 = vmatprep.subr.mxu0 0.0
        %1015 = vmatpush1.msra.mxu0 0.0
        %1016 = vmatprep.subr.mxu0 0.0
        %1017 = vmatpush1.msra.mxu0 0.0
        %1018 = vmatprep.subr.mxu0 0.0
        %1019 = vmatpush1.msra.mxu0 0.0
        %1020 = vmatprep.subr.mxu0 0.0
        %1021 = vmatpush1.msra.mxu0 0.0
        %1022 = vmatprep.subr.mxu0 0.0
        %1023 = vmatpush1.msra.mxu0 0.0
        %1024 = vmatprep.subr.mxu0 0.0
        %1025 = vmatpush1.msra.mxu0 0.0
        %1026 = vmatprep.subr.mxu0 0.0
        %1027 = vmatpush1.msra.mxu0 0.0
        %1028 = vmatprep.subr.mxu0 0.0
        %1029 = vmatpush1.msra.mxu0 %v261
        %1030 = vmatprep.subr.mxu0 0.0
        %1031 = vmatpush1.msra.mxu0 %v260
        %1032 = vmatprep.subr.mxu0 0.0
        %1033 = vmatpush2.msra.mxu0 0.0
        %1034 = vmatprep.subr.mxu0 0.0
        %1035 = vmatpush2.msra.mxu0 0.0
        %1036 = vmatprep.subr.mxu0 0.0
        %1037 = vmatpush2.msra.mxu0 0.0
        %1038 = vmatprep.subr.mxu0 0.0
        %1039 = vmatpush2.msra.mxu0 0.0
        %1040 = vmatprep.subr.mxu0 0.0
        %1041 = vmatpush2.msra.mxu0 0.0
        %1042 = vmatprep.subr.mxu0 0.0
        %1043 = vmatpush2.msra.mxu0 0.0
        %1044 = vmatprep.subr.mxu0 0.0
        %1045 = vmatpush2.msra.mxu0 0.0
        %1046 = vmatprep.subr.mxu0 0.0
        %1047 = vmatpush2.msra.mxu0 0.0
        %1048 = vmatprep.subr.mxu0 0.0
        %1049 = vmatpush2.msra.mxu0 0.0
        %1050 = vmatprep.subr.mxu0 0.0
        %1051 = vmatpush2.msra.mxu0 0.0
        %1052 = vmatprep.subr.mxu0 0.0
        %1053 = vmatpush2.msra.mxu0 0.0
        %1054 = vmatprep.subr.mxu0 0.0
        %1055 = vmatpush2.msra.mxu0 0.0
        %1056 = vmatprep.subr.mxu0 0.0
        %1057 = vmatpush2.msra.mxu0 0.0
        %1058 = vmatprep.subr.mxu0 0.0
        %1059 = vmatpush2.msra.mxu0 0.0
        %1060 = vmatprep.subr.mxu0 0.0
        %1061 = vmatpush2.msra.mxu0 0.0
        %1062 = vmatprep.subr.mxu0 0.0
        %1063 = vmatpush2.msra.mxu0 0.0
        %1064 = vmatprep.mubr.f32.mxu0 0.0
        %1065 = vmatmul.mubr.f32.gmra.mxu0 %v995
        %v1066 = vpop.f32.mrf.mxu0
        %v1067 = vadd.f32 0.0, %v1066
        %v1068 = vpop.f32.mrf.mxu0
        %1069 = vmatprep.mubr.f32.mxu0 0.0
        %1070 = vmatmul.mubr.f32.gmra.mxu0 %v998
        %v1071 = vpop.f32.mrf.mxu0
        %v1072 = vadd.f32 0.0, %v1071
        %v1073 = vpop.f32.mrf.mxu0
        %1074 = vdwg.mxu0
        %s1075 = scalar_lea.vmem [#allocation2], 64
        %1076 = vst.msk [vmem:[%s1075] sm:$0xff] %vm265, %v1067
        %1077 = vst.msk [vmem:[%s1075 + $0x8] sm:$0xff] %vm265, %v1072
        %s1078 = scalar_lea.vmem %s221, 80 [#allocation3]
        %v1079 = vld [vmem:[%s1078] sm:$0xff]
        %v1080 = vld [vmem:[%s1078 + $0x8] sm:$0xff]
        %1081 = vmatprep.subr.mxu0 0.0
        %1082 = vmatpush1.msra.mxu0 0.0
        %1083 = vmatprep.subr.mxu0 0.0
        %1084 = vmatpush1.msra.mxu0 0.0
        %1085 = vmatprep.subr.mxu0 0.0
        %1086 = vmatpush1.msra.mxu0 0.0
        %1087 = vmatprep.subr.mxu0 0.0
        %1088 = vmatpush1.msra.mxu0 0.0
        %1089 = vmatprep.subr.mxu0 0.0
        %1090 = vmatpush1.msra.mxu0 0.0
        %1091 = vmatprep.subr.mxu0 0.0
        %1092 = vmatpush1.msra.mxu0 0.0
        %1093 = vmatprep.subr.mxu0 0.0
        %1094 = vmatpush1.msra.mxu0 0.0
        %1095 = vmatprep.subr.mxu0 0.0
        %1096 = vmatpush1.msra.mxu0 0.0
        %1097 = vmatprep.subr.mxu0 0.0
        %1098 = vmatpush1.msra.mxu0 0.0
        %1099 = vmatprep.subr.mxu0 0.0
        %1100 = vmatpush1.msra.mxu0 0.0
        %1101 = vmatprep.subr.mxu0 0.0
        %1102 = vmatpush1.msra.mxu0 0.0
        %1103 = vmatprep.subr.mxu0 0.0
        %1104 = vmatpush1.msra.mxu0 0.0
        %1105 = vmatprep.subr.mxu0 0.0
        %1106 = vmatpush1.msra.mxu0 0.0
        %1107 = vmatprep.subr.mxu0 0.0
        %1108 = vmatpush1.msra.mxu0 0.0
        %1109 = vmatprep.subr.mxu0 0.0
        %1110 = vmatpush1.msra.mxu0 %v1080
        %1111 = vmatprep.subr.mxu0 0.0
        %1112 = vmatpush1.msra.mxu0 %v1079
        %1113 = vmatprep.subr.mxu0 0.0
        %1114 = vmatpush2.msra.mxu0 0.0
        %1115 = vmatprep.subr.mxu0 0.0
        %1116 = vmatpush2.msra.mxu0 0.0
        %1117 = vmatprep.subr.mxu0 0.0
        %1118 = vmatpush2.msra.mxu0 0.0
        %1119 = vmatprep.subr.mxu0 0.0
        %1120 = vmatpush2.msra.mxu0 0.0
        %1121 = vmatprep.subr.mxu0 0.0
        %1122 = vmatpush2.msra.mxu0 0.0
        %1123 = vmatprep.subr.mxu0 0.0
        %1124 = vmatpush2.msra.mxu0 0.0
        %1125 = vmatprep.subr.mxu0 0.0
        %1126 = vmatpush2.msra.mxu0 0.0
        %1127 = vmatprep.subr.mxu0 0.0
        %1128 = vmatpush2.msra.mxu0 0.0
        %1129 = vmatprep.subr.mxu0 0.0
        %1130 = vmatpush2.msra.mxu0 0.0
        %1131 = vmatprep.subr.mxu0 0.0
        %1132 = vmatpush2.msra.mxu0 0.0
        %1133 = vmatprep.subr.mxu0 0.0
        %1134 = vmatpush2.msra.mxu0 0.0
        %1135 = vmatprep.subr.mxu0 0.0
        %1136 = vmatpush2.msra.mxu0 0.0
        %1137 = vmatprep.subr.mxu0 0.0
        %1138 = vmatpush2.msra.mxu0 0.0
        %1139 = vmatprep.subr.mxu0 0.0
        %1140 = vmatpush2.msra.mxu0 0.0
        %1141 = vmatprep.subr.mxu0 0.0
        %1142 = vmatpush2.msra.mxu0 0.0
        %1143 = vmatprep.subr.mxu0 0.0
        %1144 = vmatpush2.msra.mxu0 0.0
        %1145 = vmatprep.mubr.f32.mxu0 0.0
        %1146 = vmatmul.mubr.f32.gmra.mxu0 %v267
        %v1147 = vpop.f32.mrf.mxu0
        %v1148 = vadd.f32 0.0, %v1147
        %v1149 = vpop.f32.mrf.mxu0
        %1150 = vmatprep.mubr.f32.mxu0 0.0
        %1151 = vmatmul.mubr.f32.gmra.mxu0 %v270
        %v1152 = vpop.f32.mrf.mxu0
        %v1153 = vadd.f32 0.0, %v1152
        %v1154 = vpop.f32.mrf.mxu0
        %1155 = vdwg.mxu0
        %v1157 = vsel %vm265, %v1148, 0
        %v1160 = vsel %vm265, %v1153, 0
        %1162 = vmatprep.subr.mxu0 0.0
        %1163 = vmatpush1.msra.mxu0 0.0
        %1164 = vmatprep.subr.mxu0 0.0
        %1165 = vmatpush1.msra.mxu0 0.0
        %1166 = vmatprep.subr.mxu0 0.0
        %1167 = vmatpush1.msra.mxu0 0.0
        %1168 = vmatprep.subr.mxu0 0.0
        %1169 = vmatpush1.msra.mxu0 0.0
        %1170 = vmatprep.subr.mxu0 0.0
        %1171 = vmatpush1.msra.mxu0 0.0
        %1172 = vmatprep.subr.mxu0 0.0
        %1173 = vmatpush1.msra.mxu0 0.0
        %1174 = vmatprep.subr.mxu0 0.0
        %1175 = vmatpush1.msra.mxu0 0.0
        %1176 = vmatprep.subr.mxu0 0.0
        %1177 = vmatpush1.msra.mxu0 0.0
        %1178 = vmatprep.subr.mxu0 0.0
        %1179 = vmatpush1.msra.mxu0 0.0
        %1180 = vmatprep.subr.mxu0 0.0
        %1181 = vmatpush1.msra.mxu0 0.0
        %1182 = vmatprep.subr.mxu0 0.0
        %1183 = vmatpush1.msra.mxu0 0.0
        %1184 = vmatprep.subr.mxu0 0.0
        %1185 = vmatpush1.msra.mxu0 0.0
        %1186 = vmatprep.subr.mxu0 0.0
        %1187 = vmatpush1.msra.mxu0 0.0
        %1188 = vmatprep.subr.mxu0 0.0
        %1189 = vmatpush1.msra.mxu0 0.0
        %1190 = vmatprep.subr.mxu0 0.0
        %1191 = vmatpush1.msra.mxu0 %v261
        %1192 = vmatprep.subr.mxu0 0.0
        %1193 = vmatpush1.msra.mxu0 %v260
        %1194 = vmatprep.subr.mxu0 0.0
        %1195 = vmatpush2.msra.mxu0 0.0
        %1196 = vmatprep.subr.mxu0 0.0
        %1197 = vmatpush2.msra.mxu0 0.0
        %1198 = vmatprep.subr.mxu0 0.0
        %1199 = vmatpush2.msra.mxu0 0.0
        %1200 = vmatprep.subr.mxu0 0.0
        %1201 = vmatpush2.msra.mxu0 0.0
        %1202 = vmatprep.subr.mxu0 0.0
        %1203 = vmatpush2.msra.mxu0 0.0
        %1204 = vmatprep.subr.mxu0 0.0
        %1205 = vmatpush2.msra.mxu0 0.0
        %1206 = vmatprep.subr.mxu0 0.0
        %1207 = vmatpush2.msra.mxu0 0.0
        %1208 = vmatprep.subr.mxu0 0.0
        %1209 = vmatpush2.msra.mxu0 0.0
        %1210 = vmatprep.subr.mxu0 0.0
        %1211 = vmatpush2.msra.mxu0 0.0
        %1212 = vmatprep.subr.mxu0 0.0
        %1213 = vmatpush2.msra.mxu0 0.0
        %1214 = vmatprep.subr.mxu0 0.0
        %1215 = vmatpush2.msra.mxu0 0.0
        %1216 = vmatprep.subr.mxu0 0.0
        %1217 = vmatpush2.msra.mxu0 0.0
        %1218 = vmatprep.subr.mxu0 0.0
        %1219 = vmatpush2.msra.mxu0 0.0
        %1220 = vmatprep.subr.mxu0 0.0
        %1221 = vmatpush2.msra.mxu0 0.0
        %1222 = vmatprep.subr.mxu0 0.0
        %1223 = vmatpush2.msra.mxu0 0.0
        %1224 = vmatprep.subr.mxu0 0.0
        %1225 = vmatpush2.msra.mxu0 0.0
        %1226 = vmatprep.mubr.f32.mxu0 0.0
        %1227 = vmatmul.mubr.f32.gmra.mxu0 %v1157
        %v1228 = vpop.f32.mrf.mxu0
        %v1229 = vadd.f32 0.0, %v1228
        %v1230 = vpop.f32.mrf.mxu0
        %1231 = vmatprep.mubr.f32.mxu0 0.0
        %1232 = vmatmul.mubr.f32.gmra.mxu0 %v1160
        %v1233 = vpop.f32.mrf.mxu0
        %v1234 = vadd.f32 0.0, %v1233
        %v1235 = vpop.f32.mrf.mxu0
        %1236 = vdwg.mxu0
        %s1237 = scalar_lea.vmem [#allocation2], 80
        %1238 = vst.msk [vmem:[%s1237] sm:$0xff] %vm265, %v1229
        %1239 = vst.msk [vmem:[%s1237 + $0x8] sm:$0xff] %vm265, %v1234
        %s1240 = scalar_lea.vmem %s221, 96 [#allocation3]
        %v1241 = vld [vmem:[%s1240] sm:$0xff]
        %v1242 = vld [vmem:[%s1240 + $0x8] sm:$0xff]
        %1243 = vmatprep.subr.mxu0 0.0
        %1244 = vmatpush1.msra.mxu0 0.0
        %1245 = vmatprep.subr.mxu0 0.0
        %1246 = vmatpush1.msra.mxu0 0.0
        %1247 = vmatprep.subr.mxu0 0.0
        %1248 = vmatpush1.msra.mxu0 0.0
        %1249 = vmatprep.subr.mxu0 0.0
        %1250 = vmatpush1.msra.mxu0 0.0
        %1251 = vmatprep.subr.mxu0 0.0
        %1252 = vmatpush1.msra.mxu0 0.0
        %1253 = vmatprep.subr.mxu0 0.0
        %1254 = vmatpush1.msra.mxu0 0.0
        %1255 = vmatprep.subr.mxu0 0.0
        %1256 = vmatpush1.msra.mxu0 0.0
        %1257 = vmatprep.subr.mxu0 0.0
        %1258 = vmatpush1.msra.mxu0 0.0
        %1259 = vmatprep.subr.mxu0 0.0
        %1260 = vmatpush1.msra.mxu0 0.0
        %1261 = vmatprep.subr.mxu0 0.0
        %1262 = vmatpush1.msra.mxu0 0.0
        %1263 = vmatprep.subr.mxu0 0.0
        %1264 = vmatpush1.msra.mxu0 0.0
        %1265 = vmatprep.subr.mxu0 0.0
        %1266 = vmatpush1.msra.mxu0 0.0
        %1267 = vmatprep.subr.mxu0 0.0
        %1268 = vmatpush1.msra.mxu0 0.0
        %1269 = vmatprep.subr.mxu0 0.0
        %1270 = vmatpush1.msra.mxu0 0.0
        %1271 = vmatprep.subr.mxu0 0.0
        %1272 = vmatpush1.msra.mxu0 %v1242
        %1273 = vmatprep.subr.mxu0 0.0
        %1274 = vmatpush1.msra.mxu0 %v1241
        %1275 = vmatprep.subr.mxu0 0.0
        %1276 = vmatpush2.msra.mxu0 0.0
        %1277 = vmatprep.subr.mxu0 0.0
        %1278 = vmatpush2.msra.mxu0 0.0
        %1279 = vmatprep.subr.mxu0 0.0
        %1280 = vmatpush2.msra.mxu0 0.0
        %1281 = vmatprep.subr.mxu0 0.0
        %1282 = vmatpush2.msra.mxu0 0.0
        %1283 = vmatprep.subr.mxu0 0.0
        %1284 = vmatpush2.msra.mxu0 0.0
        %1285 = vmatprep.subr.mxu0 0.0
        %1286 = vmatpush2.msra.mxu0 0.0
        %1287 = vmatprep.subr.mxu0 0.0
        %1288 = vmatpush2.msra.mxu0 0.0
        %1289 = vmatprep.subr.mxu0 0.0
        %1290 = vmatpush2.msra.mxu0 0.0
        %1291 = vmatprep.subr.mxu0 0.0
        %1292 = vmatpush2.msra.mxu0 0.0
        %1293 = vmatprep.subr.mxu0 0.0
        %1294 = vmatpush2.msra.mxu0 0.0
        %1295 = vmatprep.subr.mxu0 0.0
        %1296 = vmatpush2.msra.mxu0 0.0
        %1297 = vmatprep.subr.mxu0 0.0
        %1298 = vmatpush2.msra.mxu0 0.0
        %1299 = vmatprep.subr.mxu0 0.0
        %1300 = vmatpush2.msra.mxu0 0.0
        %1301 = vmatprep.subr.mxu0 0.0
        %1302 = vmatpush2.msra.mxu0 0.0
        %1303 = vmatprep.subr.mxu0 0.0
        %1304 = vmatpush2.msra.mxu0 0.0
        %1305 = vmatprep.subr.mxu0 0.0
        %1306 = vmatpush2.msra.mxu0 0.0
        %1307 = vmatprep.mubr.f32.mxu0 0.0
        %1308 = vmatmul.mubr.f32.gmra.mxu0 %v267
        %v1309 = vpop.f32.mrf.mxu0
        %v1310 = vadd.f32 0.0, %v1309
        %v1311 = vpop.f32.mrf.mxu0
        %1312 = vmatprep.mubr.f32.mxu0 0.0
        %1313 = vmatmul.mubr.f32.gmra.mxu0 %v270
        %v1314 = vpop.f32.mrf.mxu0
        %v1315 = vadd.f32 0.0, %v1314
        %v1316 = vpop.f32.mrf.mxu0
        %1317 = vdwg.mxu0
        %v1319 = vsel %vm265, %v1310, 0
        %v1322 = vsel %vm265, %v1315, 0
        %1324 = vmatprep.subr.mxu0 0.0
        %1325 = vmatpush1.msra.mxu0 0.0
        %1326 = vmatprep.subr.mxu0 0.0
        %1327 = vmatpush1.msra.mxu0 0.0
        %1328 = vmatprep.subr.mxu0 0.0
        %1329 = vmatpush1.msra.mxu0 0.0
        %1330 = vmatprep.subr.mxu0 0.0
        %1331 = vmatpush1.msra.mxu0 0.0
        %1332 = vmatprep.subr.mxu0 0.0
        %1333 = vmatpush1.msra.mxu0 0.0
        %1334 = vmatprep.subr.mxu0 0.0
        %1335 = vmatpush1.msra.mxu0 0.0
        %1336 = vmatprep.subr.mxu0 0.0
        %1337 = vmatpush1.msra.mxu0 0.0
        %1338 = vmatprep.subr.mxu0 0.0
        %1339 = vmatpush1.msra.mxu0 0.0
        %1340 = vmatprep.subr.mxu0 0.0
        %1341 = vmatpush1.msra.mxu0 0.0
        %1342 = vmatprep.subr.mxu0 0.0
        %1343 = vmatpush1.msra.mxu0 0.0
        %1344 = vmatprep.subr.mxu0 0.0
        %1345 = vmatpush1.msra.mxu0 0.0
        %1346 = vmatprep.subr.mxu0 0.0
        %1347 = vmatpush1.msra.mxu0 0.0
        %1348 = vmatprep.subr.mxu0 0.0
        %1349 = vmatpush1.msra.mxu0 0.0
        %1350 = vmatprep.subr.mxu0 0.0
        %1351 = vmatpush1.msra.mxu0 0.0
        %1352 = vmatprep.subr.mxu0 0.0
        %1353 = vmatpush1.msra.mxu0 %v261
        %1354 = vmatprep.subr.mxu0 0.0
        %1355 = vmatpush1.msra.mxu0 %v260
        %1356 = vmatprep.subr.mxu0 0.0
        %1357 = vmatpush2.msra.mxu0 0.0
        %1358 = vmatprep.subr.mxu0 0.0
        %1359 = vmatpush2.msra.mxu0 0.0
        %1360 = vmatprep.subr.mxu0 0.0
        %1361 = vmatpush2.msra.mxu0 0.0
        %1362 = vmatprep.subr.mxu0 0.0
        %1363 = vmatpush2.msra.mxu0 0.0
        %1364 = vmatprep.subr.mxu0 0.0
        %1365 = vmatpush2.msra.mxu0 0.0
        %1366 = vmatprep.subr.mxu0 0.0
        %1367 = vmatpush2.msra.mxu0 0.0
        %1368 = vmatprep.subr.mxu0 0.0
        %1369 = vmatpush2.msra.mxu0 0.0
        %1370 = vmatprep.subr.mxu0 0.0
        %1371 = vmatpush2.msra.mxu0 0.0
        %1372 = vmatprep.subr.mxu0 0.0
        %1373 = vmatpush2.msra.mxu0 0.0
        %1374 = vmatprep.subr.mxu0 0.0
        %1375 = vmatpush2.msra.mxu0 0.0
        %1376 = vmatprep.subr.mxu0 0.0
        %1377 = vmatpush2.msra.mxu0 0.0
        %1378 = vmatprep.subr.mxu0 0.0
        %1379 = vmatpush2.msra.mxu0 0.0
        %1380 = vmatprep.subr.mxu0 0.0
        %1381 = vmatpush2.msra.mxu0 0.0
        %1382 = vmatprep.subr.mxu0 0.0
        %1383 = vmatpush2.msra.mxu0 0.0
        %1384 = vmatprep.subr.mxu0 0.0
        %1385 = vmatpush2.msra.mxu0 0.0
        %1386 = vmatprep.subr.mxu0 0.0
        %1387 = vmatpush2.msra.mxu0 0.0
        %1388 = vmatprep.mubr.f32.mxu0 0.0
        %1389 = vmatmul.mubr.f32.gmra.mxu0 %v1319
        %v1390 = vpop.f32.mrf.mxu0
        %v1391 = vadd.f32 0.0, %v1390
        %v1392 = vpop.f32.mrf.mxu0
        %1393 = vmatprep.mubr.f32.mxu0 0.0
        %1394 = vmatmul.mubr.f32.gmra.mxu0 %v1322
        %v1395 = vpop.f32.mrf.mxu0
        %v1396 = vadd.f32 0.0, %v1395
        %v1397 = vpop.f32.mrf.mxu0
        %1398 = vdwg.mxu0
        %s1399 = scalar_lea.vmem [#allocation2], 96
        %1400 = vst.msk [vmem:[%s1399] sm:$0xff] %vm265, %v1391
        %1401 = vst.msk [vmem:[%s1399 + $0x8] sm:$0xff] %vm265, %v1396
        %s1402 = scalar_lea.vmem %s221, 112 [#allocation3]
        %v1403 = vld [vmem:[%s1402] sm:$0xff]
        %v1404 = vld [vmem:[%s1402 + $0x8] sm:$0xff]
        %1405 = vmatprep.subr.mxu0 0.0
        %1406 = vmatpush1.msra.mxu0 0.0
        %1407 = vmatprep.subr.mxu0 0.0
        %1408 = vmatpush1.msra.mxu0 0.0
        %1409 = vmatprep.subr.mxu0 0.0
        %1410 = vmatpush1.msra.mxu0 0.0
        %1411 = vmatprep.subr.mxu0 0.0
        %1412 = vmatpush1.msra.mxu0 0.0
        %1413 = vmatprep.subr.mxu0 0.0
        %1414 = vmatpush1.msra.mxu0 0.0
        %1415 = vmatprep.subr.mxu0 0.0
        %1416 = vmatpush1.msra.mxu0 0.0
        %1417 = vmatprep.subr.mxu0 0.0
        %1418 = vmatpush1.msra.mxu0 0.0
        %1419 = vmatprep.subr.mxu0 0.0
        %1420 = vmatpush1.msra.mxu0 0.0
        %1421 = vmatprep.subr.mxu0 0.0
        %1422 = vmatpush1.msra.mxu0 0.0
        %1423 = vmatprep.subr.mxu0 0.0
        %1424 = vmatpush1.msra.mxu0 0.0
        %1425 = vmatprep.subr.mxu0 0.0
        %1426 = vmatpush1.msra.mxu0 0.0
        %1427 = vmatprep.subr.mxu0 0.0
        %1428 = vmatpush1.msra.mxu0 0.0
        %1429 = vmatprep.subr.mxu0 0.0
        %1430 = vmatpush1.msra.mxu0 0.0
        %1431 = vmatprep.subr.mxu0 0.0
        %1432 = vmatpush1.msra.mxu0 0.0
        %1433 = vmatprep.subr.mxu0 0.0
        %1434 = vmatpush1.msra.mxu0 %v1404
        %1435 = vmatprep.subr.mxu0 0.0
        %1436 = vmatpush1.msra.mxu0 %v1403
        %1437 = vmatprep.subr.mxu0 0.0
        %1438 = vmatpush2.msra.mxu0 0.0
        %1439 = vmatprep.subr.mxu0 0.0
        %1440 = vmatpush2.msra.mxu0 0.0
        %1441 = vmatprep.subr.mxu0 0.0
        %1442 = vmatpush2.msra.mxu0 0.0
        %1443 = vmatprep.subr.mxu0 0.0
        %1444 = vmatpush2.msra.mxu0 0.0
        %1445 = vmatprep.subr.mxu0 0.0
        %1446 = vmatpush2.msra.mxu0 0.0
        %1447 = vmatprep.subr.mxu0 0.0
        %1448 = vmatpush2.msra.mxu0 0.0
        %1449 = vmatprep.subr.mxu0 0.0
        %1450 = vmatpush2.msra.mxu0 0.0
        %1451 = vmatprep.subr.mxu0 0.0
        %1452 = vmatpush2.msra.mxu0 0.0
        %1453 = vmatprep.subr.mxu0 0.0
        %1454 = vmatpush2.msra.mxu0 0.0
        %1455 = vmatprep.subr.mxu0 0.0
        %1456 = vmatpush2.msra.mxu0 0.0
        %1457 = vmatprep.subr.mxu0 0.0
        %1458 = vmatpush2.msra.mxu0 0.0
        %1459 = vmatprep.subr.mxu0 0.0
        %1460 = vmatpush2.msra.mxu0 0.0
        %1461 = vmatprep.subr.mxu0 0.0
        %1462 = vmatpush2.msra.mxu0 0.0
        %1463 = vmatprep.subr.mxu0 0.0
        %1464 = vmatpush2.msra.mxu0 0.0
        %1465 = vmatprep.subr.mxu0 0.0
        %1466 = vmatpush2.msra.mxu0 0.0
        %1467 = vmatprep.subr.mxu0 0.0
        %1468 = vmatpush2.msra.mxu0 0.0
        %1469 = vmatprep.mubr.f32.mxu0 0.0
        %1470 = vmatmul.mubr.f32.gmra.mxu0 %v267
        %v1471 = vpop.f32.mrf.mxu0
        %v1472 = vadd.f32 0.0, %v1471
        %v1473 = vpop.f32.mrf.mxu0
        %1474 = vmatprep.mubr.f32.mxu0 0.0
        %1475 = vmatmul.mubr.f32.gmra.mxu0 %v270
        %v1476 = vpop.f32.mrf.mxu0
        %v1477 = vadd.f32 0.0, %v1476
        %v1478 = vpop.f32.mrf.mxu0
        %1479 = vdwg.mxu0
        %v1481 = vsel %vm265, %v1472, 0
        %v1484 = vsel %vm265, %v1477, 0
        %1486 = vmatprep.subr.mxu0 0.0
        %1487 = vmatpush1.msra.mxu0 0.0
        %1488 = vmatprep.subr.mxu0 0.0
        %1489 = vmatpush1.msra.mxu0 0.0
        %1490 = vmatprep.subr.mxu0 0.0
        %1491 = vmatpush1.msra.mxu0 0.0
        %1492 = vmatprep.subr.mxu0 0.0
        %1493 = vmatpush1.msra.mxu0 0.0
        %1494 = vmatprep.subr.mxu0 0.0
        %1495 = vmatpush1.msra.mxu0 0.0
        %1496 = vmatprep.subr.mxu0 0.0
        %1497 = vmatpush1.msra.mxu0 0.0
        %1498 = vmatprep.subr.mxu0 0.0
        %1499 = vmatpush1.msra.mxu0 0.0
        %1500 = vmatprep.subr.mxu0 0.0
        %1501 = vmatpush1.msra.mxu0 0.0
        %1502 = vmatprep.subr.mxu0 0.0
        %1503 = vmatpush1.msra.mxu0 0.0
        %1504 = vmatprep.subr.mxu0 0.0
        %1505 = vmatpush1.msra.mxu0 0.0
        %1506 = vmatprep.subr.mxu0 0.0
        %1507 = vmatpush1.msra.mxu0 0.0
        %1508 = vmatprep.subr.mxu0 0.0
        %1509 = vmatpush1.msra.mxu0 0.0
        %1510 = vmatprep.subr.mxu0 0.0
        %1511 = vmatpush1.msra.mxu0 0.0
        %1512 = vmatprep.subr.mxu0 0.0
        %1513 = vmatpush1.msra.mxu0 0.0
        %1514 = vmatprep.subr.mxu0 0.0
        %1515 = vmatpush1.msra.mxu0 %v261
        %1516 = vmatprep.subr.mxu0 0.0
        %1517 = vmatpush1.msra.mxu0 %v260
        %1518 = vmatprep.subr.mxu0 0.0
        %1519 = vmatpush2.msra.mxu0 0.0
        %1520 = vmatprep.subr.mxu0 0.0
        %1521 = vmatpush2.msra.mxu0 0.0
        %1522 = vmatprep.subr.mxu0 0.0
        %1523 = vmatpush2.msra.mxu0 0.0
        %1524 = vmatprep.subr.mxu0 0.0
        %1525 = vmatpush2.msra.mxu0 0.0
        %1526 = vmatprep.subr.mxu0 0.0
        %1527 = vmatpush2.msra.mxu0 0.0
        %1528 = vmatprep.subr.mxu0 0.0
        %1529 = vmatpush2.msra.mxu0 0.0
        %1530 = vmatprep.subr.mxu0 0.0
        %1531 = vmatpush2.msra.mxu0 0.0
        %1532 = vmatprep.subr.mxu0 0.0
        %1533 = vmatpush2.msra.mxu0 0.0
        %1534 = vmatprep.subr.mxu0 0.0
        %1535 = vmatpush2.msra.mxu0 0.0
        %1536 = vmatprep.subr.mxu0 0.0
        %1537 = vmatpush2.msra.mxu0 0.0
        %1538 = vmatprep.subr.mxu0 0.0
        %1539 = vmatpush2.msra.mxu0 0.0
        %1540 = vmatprep.subr.mxu0 0.0
        %1541 = vmatpush2.msra.mxu0 0.0
        %1542 = vmatprep.subr.mxu0 0.0
        %1543 = vmatpush2.msra.mxu0 0.0
        %1544 = vmatprep.subr.mxu0 0.0
        %1545 = vmatpush2.msra.mxu0 0.0
        %1546 = vmatprep.subr.mxu0 0.0
        %1547 = vmatpush2.msra.mxu0 0.0
        %1548 = vmatprep.subr.mxu0 0.0
        %1549 = vmatpush2.msra.mxu0 0.0
        %1550 = vmatprep.mubr.f32.mxu0 0.0
        %1551 = vmatmul.mubr.f32.gmra.mxu0 %v1481
        %v1552 = vpop.f32.mrf.mxu0
        %v1553 = vadd.f32 0.0, %v1552
        %v1554 = vpop.f32.mrf.mxu0
        %1555 = vmatprep.mubr.f32.mxu0 0.0
        %1556 = vmatmul.mubr.f32.gmra.mxu0 %v1484
        %v1557 = vpop.f32.mrf.mxu0
        %v1558 = vadd.f32 0.0, %v1557
        %v1559 = vpop.f32.mrf.mxu0
        %1560 = vdwg.mxu0
        %s1561 = scalar_lea.vmem [#allocation2], 112
        %1562 = vst.msk [vmem:[%s1561] sm:$0xff] %vm265, %v1553
        %1563 = vst.msk [vmem:[%s1561 + $0x8] sm:$0xff] %vm265, %v1558
        %v1564 = vld [vmem:[#allocation2] sm:$0x1]
        %v1565 = vld [vmem:[#allocation2 + $0x10] sm:$0x1]
        %v1566 = vld [vmem:[#allocation2 + $0x20] sm:$0x1]
        %v1567 = vld [vmem:[#allocation2 + $0x30] sm:$0x1]
        %v1568 = vld [vmem:[#allocation2 + $0x40] sm:$0x1]
        %v1569 = vld [vmem:[#allocation2 + $0x50] sm:$0x1]
        %v1570 = vld [vmem:[#allocation2 + $0x60] sm:$0x1]
        %v1571 = vld [vmem:[#allocation2 + $0x70] sm:$0x1]
        %v1580 = vrot.slane %v1565, 7
        %vm1581 = vcmask 1041409
        %v1582 = vsel %vm1581, %v1580, %v1564
        %v1583 = vrot.slane %v1566, 6
        %vm1584 = vcmask 1042434
        %v1585 = vsel %vm1584, %v1583, %v1582
        %v1586 = vrot.slane %v1567, 5
        %vm1587 = vcmask 1043459
        %v1588 = vsel %vm1587, %v1586, %v1585
        %v1589 = vrot.slane %v1568, 4
        %vm1590 = vcmask 1044484
        %v1591 = vsel %vm1590, %v1589, %v1588
        %v1592 = vrot.slane %v1569, 3
        %vm1593 = vcmask 1045509
        %v1594 = vsel %vm1593, %v1592, %v1591
        %v1595 = vrot.slane %v1570, 2
        %vm1596 = vcmask 1046534
        %v1597 = vsel %vm1596, %v1595, %v1594
        %v1598 = vrot.slane %v1571, 1
        %vm1599 = vcmask 1047559
        %v1600 = vsel %vm1599, %v1598, %v1597
        %vm1602 = vcmask 64512
        %v1604 = vsel %vm1602, %v262, 0
        %1606 = vmatprep.subr.mxu0 0.0
        %1607 = vmatpush1.msra.mxu0 0.0
        %1608 = vmatprep.subr.mxu0 0.0
        %1609 = vmatpush1.msra.mxu0 0.0
        %1610 = vmatprep.subr.mxu0 0.0
        %1611 = vmatpush1.msra.mxu0 0.0
        %1612 = vmatprep.subr.mxu0 0.0
        %1613 = vmatpush1.msra.mxu0 0.0
        %1614 = vmatprep.subr.mxu0 0.0
        %1615 = vmatpush1.msra.mxu0 0.0
        %1616 = vmatprep.subr.mxu0 0.0
        %1617 = vmatpush1.msra.mxu0 0.0
        %1618 = vmatprep.subr.mxu0 0.0
        %1619 = vmatpush1.msra.mxu0 0.0
        %1620 = vmatprep.subr.mxu0 0.0
        %1621 = vmatpush1.msra.mxu0 0.0
        %1622 = vmatprep.subr.mxu0 0.0
        %1623 = vmatpush1.msra.mxu0 0.0
        %1624 = vmatprep.subr.mxu0 0.0
        %1625 = vmatpush1.msra.mxu0 0.0
        %1626 = vmatprep.subr.mxu0 0.0
        %1627 = vmatpush1.msra.mxu0 0.0
        %1628 = vmatprep.subr.mxu0 0.0
        %1629 = vmatpush1.msra.mxu0 0.0
        %1630 = vmatprep.subr.mxu0 0.0
        %1631 = vmatpush1.msra.mxu0 0.0
        %1632 = vmatprep.subr.mxu0 0.0
        %1633 = vmatpush1.msra.mxu0 0.0
        %1634 = vmatprep.subr.mxu0 0.0
        %1635 = vmatpush1.msra.mxu0 0.0
        %1636 = vmatprep.subr.mxu0 0.0
        %1637 = vmatpush1.msra.mxu0 %v1600
        %1638 = vmatprep.subr.mxu0 0.0
        %1639 = vmatpush2.msra.mxu0 0.0
        %1640 = vmatprep.subr.mxu0 0.0
        %1641 = vmatpush2.msra.mxu0 0.0
        %1642 = vmatprep.subr.mxu0 0.0
        %1643 = vmatpush2.msra.mxu0 0.0
        %1644 = vmatprep.subr.mxu0 0.0
        %1645 = vmatpush2.msra.mxu0 0.0
        %1646 = vmatprep.subr.mxu0 0.0
        %1647 = vmatpush2.msra.mxu0 0.0
        %1648 = vmatprep.subr.mxu0 0.0
        %1649 = vmatpush2.msra.mxu0 0.0
        %1650 = vmatprep.subr.mxu0 0.0
        %1651 = vmatpush2.msra.mxu0 0.0
        %1652 = vmatprep.subr.mxu0 0.0
        %1653 = vmatpush2.msra.mxu0 0.0
        %1654 = vmatprep.subr.mxu0 0.0
        %1655 = vmatpush2.msra.mxu0 0.0
        %1656 = vmatprep.subr.mxu0 0.0
        %1657 = vmatpush2.msra.mxu0 0.0
        %1658 = vmatprep.subr.mxu0 0.0
        %1659 = vmatpush2.msra.mxu0 0.0
        %1660 = vmatprep.subr.mxu0 0.0
        %1661 = vmatpush2.msra.mxu0 0.0
        %1662 = vmatprep.subr.mxu0 0.0
        %1663 = vmatpush2.msra.mxu0 0.0
        %1664 = vmatprep.subr.mxu0 0.0
        %1665 = vmatpush2.msra.mxu0 0.0
        %1666 = vmatprep.subr.mxu0 0.0
        %1667 = vmatpush2.msra.mxu0 0.0
        %1668 = vmatprep.subr.mxu0 0.0
        %1669 = vmatpush2.msra.mxu0 0.0
        %1670 = vmatprep.mubr.f32.mxu0 0.0
        %1671 = vmatmul.mubr.f32.gmra.mxu0 %v1604
        %v1672 = vpop.f32.mrf.mxu0
        %v1673 = vadd.f32 0.0, %v1672
        %v1674 = vpop.f32.mrf.mxu0
        %1675 = vdwg.mxu0
        %v1677 = vcombine.high %v1673, %v1673
        %v1679 = vunpack.c.l.s4 1966171168
        %v1680 = vunpack.c.0.s8 %v1679
        %v1681 = vlaneseq
        %v1682 = vshrl.u32 %v1681, 7
        %v1683 = vsub.s32 %v1680, %v1682
        %v1684 = vrot.slane %v1673, %v1683
        %v1686 = vunpack.c.l.s4 1966171168
        %v1687 = vunpack.c.0.s8 %v1686
        %v1688 = vlaneseq
        %v1689 = vshrl.u32 %v1688, 7
        %v1690 = vsub.s32 %v1687, %v1689
        %v1691 = vrot.slane %v1677, %v1690
        %v1692 = vcombine.high %v1684, %v1684
        %v1693 = vcombine.high %v1691, %v1691
        %v1695 = vunpack.c.l.s4 1966171168
        %v1696 = vunpack.c.0.s8 %v1695
        %v1697 = vlaneseq
        %v1698 = vshrl.u32 %v1697, 7
        %v1699 = vsub.s32 %v1696, %v1698
        %v1700 = vrot.slane %v1684, %v1699
        %v1702 = vunpack.c.l.s4 1966171168
        %v1703 = vunpack.c.0.s8 %v1702
        %v1704 = vlaneseq
        %v1705 = vshrl.u32 %v1704, 7
        %v1706 = vsub.s32 %v1703, %v1705
        %v1707 = vrot.slane %v1691, %v1706
        %v1709 = vunpack.c.l.s4 1966171168
        %v1710 = vunpack.c.0.s8 %v1709
        %v1711 = vlaneseq
        %v1712 = vshrl.u32 %v1711, 7
        %v1713 = vsub.s32 %v1710, %v1712
        %v1714 = vrot.slane %v1692, %v1713
        %v1716 = vunpack.c.l.s4 1966171168
        %v1717 = vunpack.c.0.s8 %v1716
        %v1718 = vlaneseq
        %v1719 = vshrl.u32 %v1718, 7
        %v1720 = vsub.s32 %v1717, %v1719
        %v1721 = vrot.slane %v1693, %v1720
        %v1722 = vcombine.high %v1700, %v1700
        %v1723 = vcombine.high %v1707, %v1707
        %v1724 = vcombine.high %v1714, %v1714
        %v1725 = vcombine.high %v1721, %v1721
        %vm1734 = vcmask 122880
        %1735 = vst.msk [vmem:[%s257] sm:$0x1] %vm1734, %v1700
        %1736 = vst.msk [vmem:[%s257 + $0x10] sm:$0x1] %vm1734, %v1714
        %1737 = vst.msk [vmem:[%s257 + $0x20] sm:$0x1] %vm1734, %v1722
        %1738 = vst.msk [vmem:[%s257 + $0x30] sm:$0x1] %vm1734, %v1724
        %1739 = vst.msk [vmem:[%s257 + $0x40] sm:$0x1] %vm1734, %v1707
        %1740 = vst.msk [vmem:[%s257 + $0x50] sm:$0x1] %vm1734, %v1721
        %1741 = vst.msk [vmem:[%s257 + $0x60] sm:$0x1] %vm1734, %v1723
        %1742 = vst.msk [vmem:[%s257 + $0x70] sm:$0x1] %vm1734, %v1725
        %v1743 = vld [vmem:[#allocation2 + $0x1] sm:$0x1]
        %v1744 = vld [vmem:[#allocation2 + $0x11] sm:$0x1]
        %v1745 = vld [vmem:[#allocation2 + $0x21] sm:$0x1]
        %v1746 = vld [vmem:[#allocation2 + $0x31] sm:$0x1]
        %v1747 = vld [vmem:[#allocation2 + $0x41] sm:$0x1]
        %v1748 = vld [vmem:[#allocation2 + $0x51] sm:$0x1]
        %v1749 = vld [vmem:[#allocation2 + $0x61] sm:$0x1]
        %v1750 = vld [vmem:[#allocation2 + $0x71] sm:$0x1]
        %v1759 = vrot.slane %v1744, 7
        %v1760 = vsel %vm1581, %v1759, %v1743
        %v1761 = vrot.slane %v1745, 6
        %v1762 = vsel %vm1584, %v1761, %v1760
        %v1763 = vrot.slane %v1746, 5
        %v1764 = vsel %vm1587, %v1763, %v1762
        %v1765 = vrot.slane %v1747, 4
        %v1766 = vsel %vm1590, %v1765, %v1764
        %v1767 = vrot.slane %v1748, 3
        %v1768 = vsel %vm1593, %v1767, %v1766
        %v1769 = vrot.slane %v1749, 2
        %v1770 = vsel %vm1596, %v1769, %v1768
        %v1771 = vrot.slane %v1750, 1
        %v1772 = vsel %vm1599, %v1771, %v1770
        %1774 = vmatprep.subr.mxu0 0.0
        %1775 = vmatpush1.msra.mxu0 0.0
        %1776 = vmatprep.subr.mxu0 0.0
        %1777 = vmatpush1.msra.mxu0 0.0
        %1778 = vmatprep.subr.mxu0 0.0
        %1779 = vmatpush1.msra.mxu0 0.0
        %1780 = vmatprep.subr.mxu0 0.0
        %1781 = vmatpush1.msra.mxu0 0.0
        %1782 = vmatprep.subr.mxu0 0.0
        %1783 = vmatpush1.msra.mxu0 0.0
        %1784 = vmatprep.subr.mxu0 0.0
        %1785 = vmatpush1.msra.mxu0 0.0
        %1786 = vmatprep.subr.mxu0 0.0
        %1787 = vmatpush1.msra.mxu0 0.0
        %1788 = vmatprep.subr.mxu0 0.0
        %1789 = vmatpush1.msra.mxu0 0.0
        %1790 = vmatprep.subr.mxu0 0.0
        %1791 = vmatpush1.msra.mxu0 0.0
        %1792 = vmatprep.subr.mxu0 0.0
        %1793 = vmatpush1.msra.mxu0 0.0
        %1794 = vmatprep.subr.mxu0 0.0
        %1795 = vmatpush1.msra.mxu0 0.0
        %1796 = vmatprep.subr.mxu0 0.0
        %1797 = vmatpush1.msra.mxu0 0.0
        %1798 = vmatprep.subr.mxu0 0.0
        %1799 = vmatpush1.msra.mxu0 0.0
        %1800 = vmatprep.subr.mxu0 0.0
        %1801 = vmatpush1.msra.mxu0 0.0
        %1802 = vmatprep.subr.mxu0 0.0
        %1803 = vmatpush1.msra.mxu0 0.0
        %1804 = vmatprep.subr.mxu0 0.0
        %1805 = vmatpush1.msra.mxu0 %v1772
        %1806 = vmatprep.subr.mxu0 0.0
        %1807 = vmatpush2.msra.mxu0 0.0
        %1808 = vmatprep.subr.mxu0 0.0
        %1809 = vmatpush2.msra.mxu0 0.0
        %1810 = vmatprep.subr.mxu0 0.0
        %1811 = vmatpush2.msra.mxu0 0.0
        %1812 = vmatprep.subr.mxu0 0.0
        %1813 = vmatpush2.msra.mxu0 0.0
        %1814 = vmatprep.subr.mxu0 0.0
        %1815 = vmatpush2.msra.mxu0 0.0
        %1816 = vmatprep.subr.mxu0 0.0
        %1817 = vmatpush2.msra.mxu0 0.0
        %1818 = vmatprep.subr.mxu0 0.0
        %1819 = vmatpush2.msra.mxu0 0.0
        %1820 = vmatprep.subr.mxu0 0.0
        %1821 = vmatpush2.msra.mxu0 0.0
        %1822 = vmatprep.subr.mxu0 0.0
        %1823 = vmatpush2.msra.mxu0 0.0
        %1824 = vmatprep.subr.mxu0 0.0
        %1825 = vmatpush2.msra.mxu0 0.0
        %1826 = vmatprep.subr.mxu0 0.0
        %1827 = vmatpush2.msra.mxu0 0.0
        %1828 = vmatprep.subr.mxu0 0.0
        %1829 = vmatpush2.msra.mxu0 0.0
        %1830 = vmatprep.subr.mxu0 0.0
        %1831 = vmatpush2.msra.mxu0 0.0
        %1832 = vmatprep.subr.mxu0 0.0
        %1833 = vmatpush2.msra.mxu0 0.0
        %1834 = vmatprep.subr.mxu0 0.0
        %1835 = vmatpush2.msra.mxu0 0.0
        %1836 = vmatprep.subr.mxu0 0.0
        %1837 = vmatpush2.msra.mxu0 0.0
        %1838 = vmatprep.mubr.f32.mxu0 0.0
        %1839 = vmatmul.mubr.f32.gmra.mxu0 %v1604
        %v1840 = vpop.f32.mrf.mxu0
        %v1841 = vadd.f32 0.0, %v1840
        %v1842 = vpop.f32.mrf.mxu0
        %1843 = vdwg.mxu0
        %v1845 = vcombine.high %v1841, %v1841
        %v1847 = vunpack.c.l.s4 1966171168
        %v1848 = vunpack.c.0.s8 %v1847
        %v1849 = vlaneseq
        %v1850 = vshrl.u32 %v1849, 7
        %v1851 = vsub.s32 %v1848, %v1850
        %v1852 = vrot.slane %v1841, %v1851
        %v1854 = vunpack.c.l.s4 1966171168
        %v1855 = vunpack.c.0.s8 %v1854
        %v1856 = vlaneseq
        %v1857 = vshrl.u32 %v1856, 7
        %v1858 = vsub.s32 %v1855, %v1857
        %v1859 = vrot.slane %v1845, %v1858
        %v1860 = vcombine.high %v1852, %v1852
        %v1861 = vcombine.high %v1859, %v1859
        %v1863 = vunpack.c.l.s4 1966171168
        %v1864 = vunpack.c.0.s8 %v1863
        %v1865 = vlaneseq
        %v1866 = vshrl.u32 %v1865, 7
        %v1867 = vsub.s32 %v1864, %v1866
        %v1868 = vrot.slane %v1852, %v1867
        %v1870 = vunpack.c.l.s4 1966171168
        %v1871 = vunpack.c.0.s8 %v1870
        %v1872 = vlaneseq
        %v1873 = vshrl.u32 %v1872, 7
        %v1874 = vsub.s32 %v1871, %v1873
        %v1875 = vrot.slane %v1859, %v1874
        %v1877 = vunpack.c.l.s4 1966171168
        %v1878 = vunpack.c.0.s8 %v1877
        %v1879 = vlaneseq
        %v1880 = vshrl.u32 %v1879, 7
        %v1881 = vsub.s32 %v1878, %v1880
        %v1882 = vrot.slane %v1860, %v1881
        %v1884 = vunpack.c.l.s4 1966171168
        %v1885 = vunpack.c.0.s8 %v1884
        %v1886 = vlaneseq
        %v1887 = vshrl.u32 %v1886, 7
        %v1888 = vsub.s32 %v1885, %v1887
        %v1889 = vrot.slane %v1861, %v1888
        %v1890 = vcombine.high %v1868, %v1868
        %v1891 = vcombine.high %v1875, %v1875
        %v1892 = vcombine.high %v1882, %v1882
        %v1893 = vcombine.high %v1889, %v1889
        %1902 = vst.msk [vmem:[%s257 + $0x1] sm:$0x1] %vm1734, %v1868
        %1903 = vst.msk [vmem:[%s257 + $0x11] sm:$0x1] %vm1734, %v1882
        %1904 = vst.msk [vmem:[%s257 + $0x21] sm:$0x1] %vm1734, %v1890
        %1905 = vst.msk [vmem:[%s257 + $0x31] sm:$0x1] %vm1734, %v1892
        %1906 = vst.msk [vmem:[%s257 + $0x41] sm:$0x1] %vm1734, %v1875
        %1907 = vst.msk [vmem:[%s257 + $0x51] sm:$0x1] %vm1734, %v1889
        %1908 = vst.msk [vmem:[%s257 + $0x61] sm:$0x1] %vm1734, %v1891
        %1909 = vst.msk [vmem:[%s257 + $0x71] sm:$0x1] %vm1734, %v1893
        %v1910 = vld [vmem:[#allocation2 + $0x2] sm:$0x1]
        %v1911 = vld [vmem:[#allocation2 + $0x12] sm:$0x1]
        %v1912 = vld [vmem:[#allocation2 + $0x22] sm:$0x1]
        %v1913 = vld [vmem:[#allocation2 + $0x32] sm:$0x1]
        %v1914 = vld [vmem:[#allocation2 + $0x42] sm:$0x1]
        %v1915 = vld [vmem:[#allocation2 + $0x52] sm:$0x1]
        %v1916 = vld [vmem:[#allocation2 + $0x62] sm:$0x1]
        %v1917 = vld [vmem:[#allocation2 + $0x72] sm:$0x1]
        %v1926 = vrot.slane %v1911, 7
        %v1927 = vsel %vm1581, %v1926, %v1910
        %v1928 = vrot.slane %v1912, 6
        %v1929 = vsel %vm1584, %v1928, %v1927
        %v1930 = vrot.slane %v1913, 5
        %v1931 = vsel %vm1587, %v1930, %v1929
        %v1932 = vrot.slane %v1914, 4
        %v1933 = vsel %vm1590, %v1932, %v1931
        %v1934 = vrot.slane %v1915, 3
        %v1935 = vsel %vm1593, %v1934, %v1933
        %v1936 = vrot.slane %v1916, 2
        %v1937 = vsel %vm1596, %v1936, %v1935
        %v1938 = vrot.slane %v1917, 1
        %v1939 = vsel %vm1599, %v1938, %v1937
        %1941 = vmatprep.subr.mxu0 0.0
        %1942 = vmatpush1.msra.mxu0 0.0
        %1943 = vmatprep.subr.mxu0 0.0
        %1944 = vmatpush1.msra.mxu0 0.0
        %1945 = vmatprep.subr.mxu0 0.0
        %1946 = vmatpush1.msra.mxu0 0.0
        %1947 = vmatprep.subr.mxu0 0.0
        %1948 = vmatpush1.msra.mxu0 0.0
        %1949 = vmatprep.subr.mxu0 0.0
        %1950 = vmatpush1.msra.mxu0 0.0
        %1951 = vmatprep.subr.mxu0 0.0
        %1952 = vmatpush1.msra.mxu0 0.0
        %1953 = vmatprep.subr.mxu0 0.0
        %1954 = vmatpush1.msra.mxu0 0.0
        %1955 = vmatprep.subr.mxu0 0.0
        %1956 = vmatpush1.msra.mxu0 0.0
        %1957 = vmatprep.subr.mxu0 0.0
        %1958 = vmatpush1.msra.mxu0 0.0
        %1959 = vmatprep.subr.mxu0 0.0
        %1960 = vmatpush1.msra.mxu0 0.0
        %1961 = vmatprep.subr.mxu0 0.0
        %1962 = vmatpush1.msra.mxu0 0.0
        %1963 = vmatprep.subr.mxu0 0.0
        %1964 = vmatpush1.msra.mxu0 0.0
        %1965 = vmatprep.subr.mxu0 0.0
        %1966 = vmatpush1.msra.mxu0 0.0
        %1967 = vmatprep.subr.mxu0 0.0
        %1968 = vmatpush1.msra.mxu0 0.0
        %1969 = vmatprep.subr.mxu0 0.0
        %1970 = vmatpush1.msra.mxu0 0.0
        %1971 = vmatprep.subr.mxu0 0.0
        %1972 = vmatpush1.msra.mxu0 %v1939
        %1973 = vmatprep.subr.mxu0 0.0
        %1974 = vmatpush2.msra.mxu0 0.0
        %1975 = vmatprep.subr.mxu0 0.0
        %1976 = vmatpush2.msra.mxu0 0.0
        %1977 = vmatprep.subr.mxu0 0.0
        %1978 = vmatpush2.msra.mxu0 0.0
        %1979 = vmatprep.subr.mxu0 0.0
        %1980 = vmatpush2.msra.mxu0 0.0
        %1981 = vmatprep.subr.mxu0 0.0
        %1982 = vmatpush2.msra.mxu0 0.0
        %1983 = vmatprep.subr.mxu0 0.0
        %1984 = vmatpush2.msra.mxu0 0.0
        %1985 = vmatprep.subr.mxu0 0.0
        %1986 = vmatpush2.msra.mxu0 0.0
        %1987 = vmatprep.subr.mxu0 0.0
        %1988 = vmatpush2.msra.mxu0 0.0
        %1989 = vmatprep.subr.mxu0 0.0
        %1990 = vmatpush2.msra.mxu0 0.0
        %1991 = vmatprep.subr.mxu0 0.0
        %1992 = vmatpush2.msra.mxu0 0.0
        %1993 = vmatprep.subr.mxu0 0.0
        %1994 = vmatpush2.msra.mxu0 0.0
        %1995 = vmatprep.subr.mxu0 0.0
        %1996 = vmatpush2.msra.mxu0 0.0
        %1997 = vmatprep.subr.mxu0 0.0
        %1998 = vmatpush2.msra.mxu0 0.0
        %1999 = vmatprep.subr.mxu0 0.0
        %2000 = vmatpush2.msra.mxu0 0.0
        %2001 = vmatprep.subr.mxu0 0.0
        %2002 = vmatpush2.msra.mxu0 0.0
        %2003 = vmatprep.subr.mxu0 0.0
        %2004 = vmatpush2.msra.mxu0 0.0
        %2005 = vmatprep.mubr.f32.mxu0 0.0
        %2006 = vmatmul.mubr.f32.gmra.mxu0 %v1604
        %v2007 = vpop.f32.mrf.mxu0
        %v2008 = vadd.f32 0.0, %v2007
        %v2009 = vpop.f32.mrf.mxu0
        %2010 = vdwg.mxu0
        %v2012 = vcombine.high %v2008, %v2008
        %v2014 = vunpack.c.l.s4 1966171168
        %v2015 = vunpack.c.0.s8 %v2014
        %v2016 = vlaneseq
        %v2017 = vshrl.u32 %v2016, 7
        %v2018 = vsub.s32 %v2015, %v2017
        %v2019 = vrot.slane %v2008, %v2018
        %v2021 = vunpack.c.l.s4 1966171168
        %v2022 = vunpack.c.0.s8 %v2021
        %v2023 = vlaneseq
        %v2024 = vshrl.u32 %v2023, 7
        %v2025 = vsub.s32 %v2022, %v2024
        %v2026 = vrot.slane %v2012, %v2025
        %v2027 = vcombine.high %v2019, %v2019
        %v2028 = vcombine.high %v2026, %v2026
        %v2030 = vunpack.c.l.s4 1966171168
        %v2031 = vunpack.c.0.s8 %v2030
        %v2032 = vlaneseq
        %v2033 = vshrl.u32 %v2032, 7
        %v2034 = vsub.s32 %v2031, %v2033
        %v2035 = vrot.slane %v2019, %v2034
        %v2037 = vunpack.c.l.s4 1966171168
        %v2038 = vunpack.c.0.s8 %v2037
        %v2039 = vlaneseq
        %v2040 = vshrl.u32 %v2039, 7
        %v2041 = vsub.s32 %v2038, %v2040
        %v2042 = vrot.slane %v2026, %v2041
        %v2044 = vunpack.c.l.s4 1966171168
        %v2045 = vunpack.c.0.s8 %v2044
        %v2046 = vlaneseq
        %v2047 = vshrl.u32 %v2046, 7
        %v2048 = vsub.s32 %v2045, %v2047
        %v2049 = vrot.slane %v2027, %v2048
        %v2051 = vunpack.c.l.s4 1966171168
        %v2052 = vunpack.c.0.s8 %v2051
        %v2053 = vlaneseq
        %v2054 = vshrl.u32 %v2053, 7
        %v2055 = vsub.s32 %v2052, %v2054
        %v2056 = vrot.slane %v2028, %v2055
        %v2057 = vcombine.high %v2035, %v2035
        %v2058 = vcombine.high %v2042, %v2042
        %v2059 = vcombine.high %v2049, %v2049
        %v2060 = vcombine.high %v2056, %v2056
        %2069 = vst.msk [vmem:[%s257 + $0x2] sm:$0x1] %vm1734, %v2035
        %2070 = vst.msk [vmem:[%s257 + $0x12] sm:$0x1] %vm1734, %v2049
        %2071 = vst.msk [vmem:[%s257 + $0x22] sm:$0x1] %vm1734, %v2057
        %2072 = vst.msk [vmem:[%s257 + $0x32] sm:$0x1] %vm1734, %v2059
        %2073 = vst.msk [vmem:[%s257 + $0x42] sm:$0x1] %vm1734, %v2042
        %2074 = vst.msk [vmem:[%s257 + $0x52] sm:$0x1] %vm1734, %v2056
        %2075 = vst.msk [vmem:[%s257 + $0x62] sm:$0x1] %vm1734, %v2058
        %2076 = vst.msk [vmem:[%s257 + $0x72] sm:$0x1] %vm1734, %v2060
        %v2077 = vld [vmem:[#allocation2 + $0x3] sm:$0x1]
        %v2078 = vld [vmem:[#allocation2 + $0x13] sm:$0x1]
        %v2079 = vld [vmem:[#allocation2 + $0x23] sm:$0x1]
        %v2080 = vld [vmem:[#allocation2 + $0x33] sm:$0x1]
        %v2081 = vld [vmem:[#allocation2 + $0x43] sm:$0x1]
        %v2082 = vld [vmem:[#allocation2 + $0x53] sm:$0x1]
        %v2083 = vld [vmem:[#allocation2 + $0x63] sm:$0x1]
        %v2084 = vld [vmem:[#allocation2 + $0x73] sm:$0x1]
        %v2093 = vrot.slane %v2078, 7
        %v2094 = vsel %vm1581, %v2093, %v2077
        %v2095 = vrot.slane %v2079, 6
        %v2096 = vsel %vm1584, %v2095, %v2094
        %v2097 = vrot.slane %v2080, 5
        %v2098 = vsel %vm1587, %v2097, %v2096
        %v2099 = vrot.slane %v2081, 4
        %v2100 = vsel %vm1590, %v2099, %v2098
        %v2101 = vrot.slane %v2082, 3
        %v2102 = vsel %vm1593, %v2101, %v2100
        %v2103 = vrot.slane %v2083, 2
        %v2104 = vsel %vm1596, %v2103, %v2102
        %v2105 = vrot.slane %v2084, 1
        %v2106 = vsel %vm1599, %v2105, %v2104
        %2108 = vmatprep.subr.mxu0 0.0
        %2109 = vmatpush1.msra.mxu0 0.0
        %2110 = vmatprep.subr.mxu0 0.0
        %2111 = vmatpush1.msra.mxu0 0.0
        %2112 = vmatprep.subr.mxu0 0.0
        %2113 = vmatpush1.msra.mxu0 0.0
        %2114 = vmatprep.subr.mxu0 0.0
        %2115 = vmatpush1.msra.mxu0 0.0
        %2116 = vmatprep.subr.mxu0 0.0
        %2117 = vmatpush1.msra.mxu0 0.0
        %2118 = vmatprep.subr.mxu0 0.0
        %2119 = vmatpush1.msra.mxu0 0.0
        %2120 = vmatprep.subr.mxu0 0.0
        %2121 = vmatpush1.msra.mxu0 0.0
        %2122 = vmatprep.subr.mxu0 0.0
        %2123 = vmatpush1.msra.mxu0 0.0
        %2124 = vmatprep.subr.mxu0 0.0
        %2125 = vmatpush1.msra.mxu0 0.0
        %2126 = vmatprep.subr.mxu0 0.0
        %2127 = vmatpush1.msra.mxu0 0.0
        %2128 = vmatprep.subr.mxu0 0.0
        %2129 = vmatpush1.msra.mxu0 0.0
        %2130 = vmatprep.subr.mxu0 0.0
        %2131 = vmatpush1.msra.mxu0 0.0
        %2132 = vmatprep.subr.mxu0 0.0
        %2133 = vmatpush1.msra.mxu0 0.0
        %2134 = vmatprep.subr.mxu0 0.0
        %2135 = vmatpush1.msra.mxu0 0.0
        %2136 = vmatprep.subr.mxu0 0.0
        %2137 = vmatpush1.msra.mxu0 0.0
        %2138 = vmatprep.subr.mxu0 0.0
        %2139 = vmatpush1.msra.mxu0 %v2106
        %2140 = vmatprep.subr.mxu0 0.0
        %2141 = vmatpush2.msra.mxu0 0.0
        %2142 = vmatprep.subr.mxu0 0.0
        %2143 = vmatpush2.msra.mxu0 0.0
        %2144 = vmatprep.subr.mxu0 0.0
        %2145 = vmatpush2.msra.mxu0 0.0
        %2146 = vmatprep.subr.mxu0 0.0
        %2147 = vmatpush2.msra.mxu0 0.0
        %2148 = vmatprep.subr.mxu0 0.0
        %2149 = vmatpush2.msra.mxu0 0.0
        %2150 = vmatprep.subr.mxu0 0.0
        %2151 = vmatpush2.msra.mxu0 0.0
        %2152 = vmatprep.subr.mxu0 0.0
        %2153 = vmatpush2.msra.mxu0 0.0
        %2154 = vmatprep.subr.mxu0 0.0
        %2155 = vmatpush2.msra.mxu0 0.0
        %2156 = vmatprep.subr.mxu0 0.0
        %2157 = vmatpush2.msra.mxu0 0.0
        %2158 = vmatprep.subr.mxu0 0.0
        %2159 = vmatpush2.msra.mxu0 0.0
        %2160 = vmatprep.subr.mxu0 0.0
        %2161 = vmatpush2.msra.mxu0 0.0
        %2162 = vmatprep.subr.mxu0 0.0
        %2163 = vmatpush2.msra.mxu0 0.0
        %2164 = vmatprep.subr.mxu0 0.0
        %2165 = vmatpush2.msra.mxu0 0.0
        %2166 = vmatprep.subr.mxu0 0.0
        %2167 = vmatpush2.msra.mxu0 0.0
        %2168 = vmatprep.subr.mxu0 0.0
        %2169 = vmatpush2.msra.mxu0 0.0
        %2170 = vmatprep.subr.mxu0 0.0
        %2171 = vmatpush2.msra.mxu0 0.0
        %2172 = vmatprep.mubr.f32.mxu0 0.0
        %2173 = vmatmul.mubr.f32.gmra.mxu0 %v1604
        %v2174 = vpop.f32.mrf.mxu0
        %v2175 = vadd.f32 0.0, %v2174
        %v2176 = vpop.f32.mrf.mxu0
        %2177 = vdwg.mxu0
        %v2179 = vcombine.high %v2175, %v2175
        %v2181 = vunpack.c.l.s4 1966171168
        %v2182 = vunpack.c.0.s8 %v2181
        %v2183 = vlaneseq
        %v2184 = vshrl.u32 %v2183, 7
        %v2185 = vsub.s32 %v2182, %v2184
        %v2186 = vrot.slane %v2175, %v2185
        %v2188 = vunpack.c.l.s4 1966171168
        %v2189 = vunpack.c.0.s8 %v2188
        %v2190 = vlaneseq
        %v2191 = vshrl.u32 %v2190, 7
        %v2192 = vsub.s32 %v2189, %v2191
        %v2193 = vrot.slane %v2179, %v2192
        %v2194 = vcombine.high %v2186, %v2186
        %v2195 = vcombine.high %v2193, %v2193
        %v2197 = vunpack.c.l.s4 1966171168
        %v2198 = vunpack.c.0.s8 %v2197
        %v2199 = vlaneseq
        %v2200 = vshrl.u32 %v2199, 7
        %v2201 = vsub.s32 %v2198, %v2200
        %v2202 = vrot.slane %v2186, %v2201
        %v2204 = vunpack.c.l.s4 1966171168
        %v2205 = vunpack.c.0.s8 %v2204
        %v2206 = vlaneseq
        %v2207 = vshrl.u32 %v2206, 7
        %v2208 = vsub.s32 %v2205, %v2207
        %v2209 = vrot.slane %v2193, %v2208
        %v2211 = vunpack.c.l.s4 1966171168
        %v2212 = vunpack.c.0.s8 %v2211
        %v2213 = vlaneseq
        %v2214 = vshrl.u32 %v2213, 7
        %v2215 = vsub.s32 %v2212, %v2214
        %v2216 = vrot.slane %v2194, %v2215
        %v2218 = vunpack.c.l.s4 1966171168
        %v2219 = vunpack.c.0.s8 %v2218
        %v2220 = vlaneseq
        %v2221 = vshrl.u32 %v2220, 7
        %v2222 = vsub.s32 %v2219, %v2221
        %v2223 = vrot.slane %v2195, %v2222
        %v2224 = vcombine.high %v2202, %v2202
        %v2225 = vcombine.high %v2209, %v2209
        %v2226 = vcombine.high %v2216, %v2216
        %v2227 = vcombine.high %v2223, %v2223
        %2236 = vst.msk [vmem:[%s257 + $0x3] sm:$0x1] %vm1734, %v2202
        %2237 = vst.msk [vmem:[%s257 + $0x13] sm:$0x1] %vm1734, %v2216
        %2238 = vst.msk [vmem:[%s257 + $0x23] sm:$0x1] %vm1734, %v2224
        %2239 = vst.msk [vmem:[%s257 + $0x33] sm:$0x1] %vm1734, %v2226
        %2240 = vst.msk [vmem:[%s257 + $0x43] sm:$0x1] %vm1734, %v2209
        %2241 = vst.msk [vmem:[%s257 + $0x53] sm:$0x1] %vm1734, %v2223
        %2242 = vst.msk [vmem:[%s257 + $0x63] sm:$0x1] %vm1734, %v2225
        %2243 = vst.msk [vmem:[%s257 + $0x73] sm:$0x1] %vm1734, %v2227
        %v2244 = vld [vmem:[#allocation2 + $0x4] sm:$0x1]
        %v2245 = vld [vmem:[#allocation2 + $0x14] sm:$0x1]
        %v2246 = vld [vmem:[#allocation2 + $0x24] sm:$0x1]
        %v2247 = vld [vmem:[#allocation2 + $0x34] sm:$0x1]
        %v2248 = vld [vmem:[#allocation2 + $0x44] sm:$0x1]
        %v2249 = vld [vmem:[#allocation2 + $0x54] sm:$0x1]
        %v2250 = vld [vmem:[#allocation2 + $0x64] sm:$0x1]
        %v2251 = vld [vmem:[#allocation2 + $0x74] sm:$0x1]
        %v2260 = vrot.slane %v2245, 7
        %v2261 = vsel %vm1581, %v2260, %v2244
        %v2262 = vrot.slane %v2246, 6
        %v2263 = vsel %vm1584, %v2262, %v2261
        %v2264 = vrot.slane %v2247, 5
        %v2265 = vsel %vm1587, %v2264, %v2263
        %v2266 = vrot.slane %v2248, 4
        %v2267 = vsel %vm1590, %v2266, %v2265
        %v2268 = vrot.slane %v2249, 3
        %v2269 = vsel %vm1593, %v2268, %v2267
        %v2270 = vrot.slane %v2250, 2
        %v2271 = vsel %vm1596, %v2270, %v2269
        %v2272 = vrot.slane %v2251, 1
        %v2273 = vsel %vm1599, %v2272, %v2271
        %2275 = vmatprep.subr.mxu0 0.0
        %2276 = vmatpush1.msra.mxu0 0.0
        %2277 = vmatprep.subr.mxu0 0.0
        %2278 = vmatpush1.msra.mxu0 0.0
        %2279 = vmatprep.subr.mxu0 0.0
        %2280 = vmatpush1.msra.mxu0 0.0
        %2281 = vmatprep.subr.mxu0 0.0
        %2282 = vmatpush1.msra.mxu0 0.0
        %2283 = vmatprep.subr.mxu0 0.0
        %2284 = vmatpush1.msra.mxu0 0.0
        %2285 = vmatprep.subr.mxu0 0.0
        %2286 = vmatpush1.msra.mxu0 0.0
        %2287 = vmatprep.subr.mxu0 0.0
        %2288 = vmatpush1.msra.mxu0 0.0
        %2289 = vmatprep.subr.mxu0 0.0
        %2290 = vmatpush1.msra.mxu0 0.0
        %2291 = vmatprep.subr.mxu0 0.0
        %2292 = vmatpush1.msra.mxu0 0.0
        %2293 = vmatprep.subr.mxu0 0.0
        %2294 = vmatpush1.msra.mxu0 0.0
        %2295 = vmatprep.subr.mxu0 0.0
        %2296 = vmatpush1.msra.mxu0 0.0
        %2297 = vmatprep.subr.mxu0 0.0
        %2298 = vmatpush1.msra.mxu0 0.0
        %2299 = vmatprep.subr.mxu0 0.0
        %2300 = vmatpush1.msra.mxu0 0.0
        %2301 = vmatprep.subr.mxu0 0.0
        %2302 = vmatpush1.msra.mxu0 0.0
        %2303 = vmatprep.subr.mxu0 0.0
        %2304 = vmatpush1.msra.mxu0 0.0
        %2305 = vmatprep.subr.mxu0 0.0
        %2306 = vmatpush1.msra.mxu0 %v2273
        %2307 = vmatprep.subr.mxu0 0.0
        %2308 = vmatpush2.msra.mxu0 0.0
        %2309 = vmatprep.subr.mxu0 0.0
        %2310 = vmatpush2.msra.mxu0 0.0
        %2311 = vmatprep.subr.mxu0 0.0
        %2312 = vmatpush2.msra.mxu0 0.0
        %2313 = vmatprep.subr.mxu0 0.0
        %2314 = vmatpush2.msra.mxu0 0.0
        %2315 = vmatprep.subr.mxu0 0.0
        %2316 = vmatpush2.msra.mxu0 0.0
        %2317 = vmatprep.subr.mxu0 0.0
        %2318 = vmatpush2.msra.mxu0 0.0
        %2319 = vmatprep.subr.mxu0 0.0
        %2320 = vmatpush2.msra.mxu0 0.0
        %2321 = vmatprep.subr.mxu0 0.0
        %2322 = vmatpush2.msra.mxu0 0.0
        %2323 = vmatprep.subr.mxu0 0.0
        %2324 = vmatpush2.msra.mxu0 0.0
        %2325 = vmatprep.subr.mxu0 0.0
        %2326 = vmatpush2.msra.mxu0 0.0
        %2327 = vmatprep.subr.mxu0 0.0
        %2328 = vmatpush2.msra.mxu0 0.0
        %2329 = vmatprep.subr.mxu0 0.0
        %2330 = vmatpush2.msra.mxu0 0.0
        %2331 = vmatprep.subr.mxu0 0.0
        %2332 = vmatpush2.msra.mxu0 0.0
        %2333 = vmatprep.subr.mxu0 0.0
        %2334 = vmatpush2.msra.mxu0 0.0
        %2335 = vmatprep.subr.mxu0 0.0
        %2336 = vmatpush2.msra.mxu0 0.0
        %2337 = vmatprep.subr.mxu0 0.0
        %2338 = vmatpush2.msra.mxu0 0.0
        %2339 = vmatprep.mubr.f32.mxu0 0.0
        %2340 = vmatmul.mubr.f32.gmra.mxu0 %v1604
        %v2341 = vpop.f32.mrf.mxu0
        %v2342 = vadd.f32 0.0, %v2341
        %v2343 = vpop.f32.mrf.mxu0
        %2344 = vdwg.mxu0
        %v2346 = vcombine.high %v2342, %v2342
        %v2348 = vunpack.c.l.s4 1966171168
        %v2349 = vunpack.c.0.s8 %v2348
        %v2350 = vlaneseq
        %v2351 = vshrl.u32 %v2350, 7
        %v2352 = vsub.s32 %v2349, %v2351
        %v2353 = vrot.slane %v2342, %v2352
        %v2355 = vunpack.c.l.s4 1966171168
        %v2356 = vunpack.c.0.s8 %v2355
        %v2357 = vlaneseq
        %v2358 = vshrl.u32 %v2357, 7
        %v2359 = vsub.s32 %v2356, %v2358
        %v2360 = vrot.slane %v2346, %v2359
        %v2361 = vcombine.high %v2353, %v2353
        %v2362 = vcombine.high %v2360, %v2360
        %v2364 = vunpack.c.l.s4 1966171168
        %v2365 = vunpack.c.0.s8 %v2364
        %v2366 = vlaneseq
        %v2367 = vshrl.u32 %v2366, 7
        %v2368 = vsub.s32 %v2365, %v2367
        %v2369 = vrot.slane %v2353, %v2368
        %v2371 = vunpack.c.l.s4 1966171168
        %v2372 = vunpack.c.0.s8 %v2371
        %v2373 = vlaneseq
        %v2374 = vshrl.u32 %v2373, 7
        %v2375 = vsub.s32 %v2372, %v2374
        %v2376 = vrot.slane %v2360, %v2375
        %v2378 = vunpack.c.l.s4 1966171168
        %v2379 = vunpack.c.0.s8 %v2378
        %v2380 = vlaneseq
        %v2381 = vshrl.u32 %v2380, 7
        %v2382 = vsub.s32 %v2379, %v2381
        %v2383 = vrot.slane %v2361, %v2382
        %v2385 = vunpack.c.l.s4 1966171168
        %v2386 = vunpack.c.0.s8 %v2385
        %v2387 = vlaneseq
        %v2388 = vshrl.u32 %v2387, 7
        %v2389 = vsub.s32 %v2386, %v2388
        %v2390 = vrot.slane %v2362, %v2389
        %v2391 = vcombine.high %v2369, %v2369
        %v2392 = vcombine.high %v2376, %v2376
        %v2393 = vcombine.high %v2383, %v2383
        %v2394 = vcombine.high %v2390, %v2390
        %2403 = vst.msk [vmem:[%s257 + $0x4] sm:$0x1] %vm1734, %v2369
        %2404 = vst.msk [vmem:[%s257 + $0x14] sm:$0x1] %vm1734, %v2383
        %2405 = vst.msk [vmem:[%s257 + $0x24] sm:$0x1] %vm1734, %v2391
        %2406 = vst.msk [vmem:[%s257 + $0x34] sm:$0x1] %vm1734, %v2393
        %2407 = vst.msk [vmem:[%s257 + $0x44] sm:$0x1] %vm1734, %v2376
        %2408 = vst.msk [vmem:[%s257 + $0x54] sm:$0x1] %vm1734, %v2390
        %2409 = vst.msk [vmem:[%s257 + $0x64] sm:$0x1] %vm1734, %v2392
        %2410 = vst.msk [vmem:[%s257 + $0x74] sm:$0x1] %vm1734, %v2394
        %v2411 = vld [vmem:[#allocation2 + $0x5] sm:$0x1]
        %v2412 = vld [vmem:[#allocation2 + $0x15] sm:$0x1]
        %v2413 = vld [vmem:[#allocation2 + $0x25] sm:$0x1]
        %v2414 = vld [vmem:[#allocation2 + $0x35] sm:$0x1]
        %v2415 = vld [vmem:[#allocation2 + $0x45] sm:$0x1]
        %v2416 = vld [vmem:[#allocation2 + $0x55] sm:$0x1]
        %v2417 = vld [vmem:[#allocation2 + $0x65] sm:$0x1]
        %v2418 = vld [vmem:[#allocation2 + $0x75] sm:$0x1]
        %v2427 = vrot.slane %v2412, 7
        %v2428 = vsel %vm1581, %v2427, %v2411
        %v2429 = vrot.slane %v2413, 6
        %v2430 = vsel %vm1584, %v2429, %v2428
        %v2431 = vrot.slane %v2414, 5
        %v2432 = vsel %vm1587, %v2431, %v2430
        %v2433 = vrot.slane %v2415, 4
        %v2434 = vsel %vm1590, %v2433, %v2432
        %v2435 = vrot.slane %v2416, 3
        %v2436 = vsel %vm1593, %v2435, %v2434
        %v2437 = vrot.slane %v2417, 2
        %v2438 = vsel %vm1596, %v2437, %v2436
        %v2439 = vrot.slane %v2418, 1
        %v2440 = vsel %vm1599, %v2439, %v2438
        %2442 = vmatprep.subr.mxu0 0.0
        %2443 = vmatpush1.msra.mxu0 0.0
        %2444 = vmatprep.subr.mxu0 0.0
        %2445 = vmatpush1.msra.mxu0 0.0
        %2446 = vmatprep.subr.mxu0 0.0
        %2447 = vmatpush1.msra.mxu0 0.0
        %2448 = vmatprep.subr.mxu0 0.0
        %2449 = vmatpush1.msra.mxu0 0.0
        %2450 = vmatprep.subr.mxu0 0.0
        %2451 = vmatpush1.msra.mxu0 0.0
        %2452 = vmatprep.subr.mxu0 0.0
        %2453 = vmatpush1.msra.mxu0 0.0
        %2454 = vmatprep.subr.mxu0 0.0
        %2455 = vmatpush1.msra.mxu0 0.0
        %2456 = vmatprep.subr.mxu0 0.0
        %2457 = vmatpush1.msra.mxu0 0.0
        %2458 = vmatprep.subr.mxu0 0.0
        %2459 = vmatpush1.msra.mxu0 0.0
        %2460 = vmatprep.subr.mxu0 0.0
        %2461 = vmatpush1.msra.mxu0 0.0
        %2462 = vmatprep.subr.mxu0 0.0
        %2463 = vmatpush1.msra.mxu0 0.0
        %2464 = vmatprep.subr.mxu0 0.0
        %2465 = vmatpush1.msra.mxu0 0.0
        %2466 = vmatprep.subr.mxu0 0.0
        %2467 = vmatpush1.msra.mxu0 0.0
        %2468 = vmatprep.subr.mxu0 0.0
        %2469 = vmatpush1.msra.mxu0 0.0
        %2470 = vmatprep.subr.mxu0 0.0
        %2471 = vmatpush1.msra.mxu0 0.0
        %2472 = vmatprep.subr.mxu0 0.0
        %2473 = vmatpush1.msra.mxu0 %v2440
        %2474 = vmatprep.subr.mxu0 0.0
        %2475 = vmatpush2.msra.mxu0 0.0
        %2476 = vmatprep.subr.mxu0 0.0
        %2477 = vmatpush2.msra.mxu0 0.0
        %2478 = vmatprep.subr.mxu0 0.0
        %2479 = vmatpush2.msra.mxu0 0.0
        %2480 = vmatprep.subr.mxu0 0.0
        %2481 = vmatpush2.msra.mxu0 0.0
        %2482 = vmatprep.subr.mxu0 0.0
        %2483 = vmatpush2.msra.mxu0 0.0
        %2484 = vmatprep.subr.mxu0 0.0
        %2485 = vmatpush2.msra.mxu0 0.0
        %2486 = vmatprep.subr.mxu0 0.0
        %2487 = vmatpush2.msra.mxu0 0.0
        %2488 = vmatprep.subr.mxu0 0.0
        %2489 = vmatpush2.msra.mxu0 0.0
        %2490 = vmatprep.subr.mxu0 0.0
        %2491 = vmatpush2.msra.mxu0 0.0
        %2492 = vmatprep.subr.mxu0 0.0
        %2493 = vmatpush2.msra.mxu0 0.0
        %2494 = vmatprep.subr.mxu0 0.0
        %2495 = vmatpush2.msra.mxu0 0.0
        %2496 = vmatprep.subr.mxu0 0.0
        %2497 = vmatpush2.msra.mxu0 0.0
        %2498 = vmatprep.subr.mxu0 0.0
        %2499 = vmatpush2.msra.mxu0 0.0
        %2500 = vmatprep.subr.mxu0 0.0
        %2501 = vmatpush2.msra.mxu0 0.0
        %2502 = vmatprep.subr.mxu0 0.0
        %2503 = vmatpush2.msra.mxu0 0.0
        %2504 = vmatprep.subr.mxu0 0.0
        %2505 = vmatpush2.msra.mxu0 0.0
        %2506 = vmatprep.mubr.f32.mxu0 0.0
        %2507 = vmatmul.mubr.f32.gmra.mxu0 %v1604
        %v2508 = vpop.f32.mrf.mxu0
        %v2509 = vadd.f32 0.0, %v2508
        %v2510 = vpop.f32.mrf.mxu0
        %2511 = vdwg.mxu0
        %v2513 = vcombine.high %v2509, %v2509
        %v2515 = vunpack.c.l.s4 1966171168
        %v2516 = vunpack.c.0.s8 %v2515
        %v2517 = vlaneseq
        %v2518 = vshrl.u32 %v2517, 7
        %v2519 = vsub.s32 %v2516, %v2518
        %v2520 = vrot.slane %v2509, %v2519
        %v2522 = vunpack.c.l.s4 1966171168
        %v2523 = vunpack.c.0.s8 %v2522
        %v2524 = vlaneseq
        %v2525 = vshrl.u32 %v2524, 7
        %v2526 = vsub.s32 %v2523, %v2525
        %v2527 = vrot.slane %v2513, %v2526
        %v2528 = vcombine.high %v2520, %v2520
        %v2529 = vcombine.high %v2527, %v2527
        %v2531 = vunpack.c.l.s4 1966171168
        %v2532 = vunpack.c.0.s8 %v2531
        %v2533 = vlaneseq
        %v2534 = vshrl.u32 %v2533, 7
        %v2535 = vsub.s32 %v2532, %v2534
        %v2536 = vrot.slane %v2520, %v2535
        %v2538 = vunpack.c.l.s4 1966171168
        %v2539 = vunpack.c.0.s8 %v2538
        %v2540 = vlaneseq
        %v2541 = vshrl.u32 %v2540, 7
        %v2542 = vsub.s32 %v2539, %v2541
        %v2543 = vrot.slane %v2527, %v2542
        %v2545 = vunpack.c.l.s4 1966171168
        %v2546 = vunpack.c.0.s8 %v2545
        %v2547 = vlaneseq
        %v2548 = vshrl.u32 %v2547, 7
        %v2549 = vsub.s32 %v2546, %v2548
        %v2550 = vrot.slane %v2528, %v2549
        %v2552 = vunpack.c.l.s4 1966171168
        %v2553 = vunpack.c.0.s8 %v2552
        %v2554 = vlaneseq
        %v2555 = vshrl.u32 %v2554, 7
        %v2556 = vsub.s32 %v2553, %v2555
        %v2557 = vrot.slane %v2529, %v2556
        %v2558 = vcombine.high %v2536, %v2536
        %v2559 = vcombine.high %v2543, %v2543
        %v2560 = vcombine.high %v2550, %v2550
        %v2561 = vcombine.high %v2557, %v2557
        %2570 = vst.msk [vmem:[%s257 + $0x5] sm:$0x1] %vm1734, %v2536
        %2571 = vst.msk [vmem:[%s257 + $0x15] sm:$0x1] %vm1734, %v2550
        %2572 = vst.msk [vmem:[%s257 + $0x25] sm:$0x1] %vm1734, %v2558
        %2573 = vst.msk [vmem:[%s257 + $0x35] sm:$0x1] %vm1734, %v2560
        %2574 = vst.msk [vmem:[%s257 + $0x45] sm:$0x1] %vm1734, %v2543
        %2575 = vst.msk [vmem:[%s257 + $0x55] sm:$0x1] %vm1734, %v2557
        %2576 = vst.msk [vmem:[%s257 + $0x65] sm:$0x1] %vm1734, %v2559
        %2577 = vst.msk [vmem:[%s257 + $0x75] sm:$0x1] %vm1734, %v2561
        %v2578 = vld [vmem:[#allocation2 + $0x6] sm:$0x1]
        %v2579 = vld [vmem:[#allocation2 + $0x16] sm:$0x1]
        %v2580 = vld [vmem:[#allocation2 + $0x26] sm:$0x1]
        %v2581 = vld [vmem:[#allocation2 + $0x36] sm:$0x1]
        %v2582 = vld [vmem:[#allocation2 + $0x46] sm:$0x1]
        %v2583 = vld [vmem:[#allocation2 + $0x56] sm:$0x1]
        %v2584 = vld [vmem:[#allocation2 + $0x66] sm:$0x1]
        %v2585 = vld [vmem:[#allocation2 + $0x76] sm:$0x1]
        %v2594 = vrot.slane %v2579, 7
        %v2595 = vsel %vm1581, %v2594, %v2578
        %v2596 = vrot.slane %v2580, 6
        %v2597 = vsel %vm1584, %v2596, %v2595
        %v2598 = vrot.slane %v2581, 5
        %v2599 = vsel %vm1587, %v2598, %v2597
        %v2600 = vrot.slane %v2582, 4
        %v2601 = vsel %vm1590, %v2600, %v2599
        %v2602 = vrot.slane %v2583, 3
        %v2603 = vsel %vm1593, %v2602, %v2601
        %v2604 = vrot.slane %v2584, 2
        %v2605 = vsel %vm1596, %v2604, %v2603
        %v2606 = vrot.slane %v2585, 1
        %v2607 = vsel %vm1599, %v2606, %v2605
        %2609 = vmatprep.subr.mxu0 0.0
        %2610 = vmatpush1.msra.mxu0 0.0
        %2611 = vmatprep.subr.mxu0 0.0
        %2612 = vmatpush1.msra.mxu0 0.0
        %2613 = vmatprep.subr.mxu0 0.0
        %2614 = vmatpush1.msra.mxu0 0.0
        %2615 = vmatprep.subr.mxu0 0.0
        %2616 = vmatpush1.msra.mxu0 0.0
        %2617 = vmatprep.subr.mxu0 0.0
        %2618 = vmatpush1.msra.mxu0 0.0
        %2619 = vmatprep.subr.mxu0 0.0
        %2620 = vmatpush1.msra.mxu0 0.0
        %2621 = vmatprep.subr.mxu0 0.0
        %2622 = vmatpush1.msra.mxu0 0.0
        %2623 = vmatprep.subr.mxu0 0.0
        %2624 = vmatpush1.msra.mxu0 0.0
        %2625 = vmatprep.subr.mxu0 0.0
        %2626 = vmatpush1.msra.mxu0 0.0
        %2627 = vmatprep.subr.mxu0 0.0
        %2628 = vmatpush1.msra.mxu0 0.0
        %2629 = vmatprep.subr.mxu0 0.0
        %2630 = vmatpush1.msra.mxu0 0.0
        %2631 = vmatprep.subr.mxu0 0.0
        %2632 = vmatpush1.msra.mxu0 0.0
        %2633 = vmatprep.subr.mxu0 0.0
        %2634 = vmatpush1.msra.mxu0 0.0
        %2635 = vmatprep.subr.mxu0 0.0
        %2636 = vmatpush1.msra.mxu0 0.0
        %2637 = vmatprep.subr.mxu0 0.0
        %2638 = vmatpush1.msra.mxu0 0.0
        %2639 = vmatprep.subr.mxu0 0.0
        %2640 = vmatpush1.msra.mxu0 %v2607
        %2641 = vmatprep.subr.mxu0 0.0
        %2642 = vmatpush2.msra.mxu0 0.0
        %2643 = vmatprep.subr.mxu0 0.0
        %2644 = vmatpush2.msra.mxu0 0.0
        %2645 = vmatprep.subr.mxu0 0.0
        %2646 = vmatpush2.msra.mxu0 0.0
        %2647 = vmatprep.subr.mxu0 0.0
        %2648 = vmatpush2.msra.mxu0 0.0
        %2649 = vmatprep.subr.mxu0 0.0
        %2650 = vmatpush2.msra.mxu0 0.0
        %2651 = vmatprep.subr.mxu0 0.0
        %2652 = vmatpush2.msra.mxu0 0.0
        %2653 = vmatprep.subr.mxu0 0.0
        %2654 = vmatpush2.msra.mxu0 0.0
        %2655 = vmatprep.subr.mxu0 0.0
        %2656 = vmatpush2.msra.mxu0 0.0
        %2657 = vmatprep.subr.mxu0 0.0
        %2658 = vmatpush2.msra.mxu0 0.0
        %2659 = vmatprep.subr.mxu0 0.0
        %2660 = vmatpush2.msra.mxu0 0.0
        %2661 = vmatprep.subr.mxu0 0.0
        %2662 = vmatpush2.msra.mxu0 0.0
        %2663 = vmatprep.subr.mxu0 0.0
        %2664 = vmatpush2.msra.mxu0 0.0
        %2665 = vmatprep.subr.mxu0 0.0
        %2666 = vmatpush2.msra.mxu0 0.0
        %2667 = vmatprep.subr.mxu0 0.0
        %2668 = vmatpush2.msra.mxu0 0.0
        %2669 = vmatprep.subr.mxu0 0.0
        %2670 = vmatpush2.msra.mxu0 0.0
        %2671 = vmatprep.subr.mxu0 0.0
        %2672 = vmatpush2.msra.mxu0 0.0
        %2673 = vmatprep.mubr.f32.mxu0 0.0
        %2674 = vmatmul.mubr.f32.gmra.mxu0 %v1604
        %v2675 = vpop.f32.mrf.mxu0
        %v2676 = vadd.f32 0.0, %v2675
        %v2677 = vpop.f32.mrf.mxu0
        %2678 = vdwg.mxu0
        %v2680 = vcombine.high %v2676, %v2676
        %v2682 = vunpack.c.l.s4 1966171168
        %v2683 = vunpack.c.0.s8 %v2682
        %v2684 = vlaneseq
        %v2685 = vshrl.u32 %v2684, 7
        %v2686 = vsub.s32 %v2683, %v2685
        %v2687 = vrot.slane %v2676, %v2686
        %v2689 = vunpack.c.l.s4 1966171168
        %v2690 = vunpack.c.0.s8 %v2689
        %v2691 = vlaneseq
        %v2692 = vshrl.u32 %v2691, 7
        %v2693 = vsub.s32 %v2690, %v2692
        %v2694 = vrot.slane %v2680, %v2693
        %v2695 = vcombine.high %v2687, %v2687
        %v2696 = vcombine.high %v2694, %v2694
        %v2698 = vunpack.c.l.s4 1966171168
        %v2699 = vunpack.c.0.s8 %v2698
        %v2700 = vlaneseq
        %v2701 = vshrl.u32 %v2700, 7
        %v2702 = vsub.s32 %v2699, %v2701
        %v2703 = vrot.slane %v2687, %v2702
        %v2705 = vunpack.c.l.s4 1966171168
        %v2706 = vunpack.c.0.s8 %v2705
        %v2707 = vlaneseq
        %v2708 = vshrl.u32 %v2707, 7
        %v2709 = vsub.s32 %v2706, %v2708
        %v2710 = vrot.slane %v2694, %v2709
        %v2712 = vunpack.c.l.s4 1966171168
        %v2713 = vunpack.c.0.s8 %v2712
        %v2714 = vlaneseq
        %v2715 = vshrl.u32 %v2714, 7
        %v2716 = vsub.s32 %v2713, %v2715
        %v2717 = vrot.slane %v2695, %v2716
        %v2719 = vunpack.c.l.s4 1966171168
        %v2720 = vunpack.c.0.s8 %v2719
        %v2721 = vlaneseq
        %v2722 = vshrl.u32 %v2721, 7
        %v2723 = vsub.s32 %v2720, %v2722
        %v2724 = vrot.slane %v2696, %v2723
        %v2725 = vcombine.high %v2703, %v2703
        %v2726 = vcombine.high %v2710, %v2710
        %v2727 = vcombine.high %v2717, %v2717
        %v2728 = vcombine.high %v2724, %v2724
        %2737 = vst.msk [vmem:[%s257 + $0x6] sm:$0x1] %vm1734, %v2703
        %2738 = vst.msk [vmem:[%s257 + $0x16] sm:$0x1] %vm1734, %v2717
        %2739 = vst.msk [vmem:[%s257 + $0x26] sm:$0x1] %vm1734, %v2725
        %2740 = vst.msk [vmem:[%s257 + $0x36] sm:$0x1] %vm1734, %v2727
        %2741 = vst.msk [vmem:[%s257 + $0x46] sm:$0x1] %vm1734, %v2710
        %2742 = vst.msk [vmem:[%s257 + $0x56] sm:$0x1] %vm1734, %v2724
        %2743 = vst.msk [vmem:[%s257 + $0x66] sm:$0x1] %vm1734, %v2726
        %2744 = vst.msk [vmem:[%s257 + $0x76] sm:$0x1] %vm1734, %v2728
        %v2745 = vld [vmem:[#allocation2 + $0x7] sm:$0x1]
        %v2746 = vld [vmem:[#allocation2 + $0x17] sm:$0x1]
        %v2747 = vld [vmem:[#allocation2 + $0x27] sm:$0x1]
        %v2748 = vld [vmem:[#allocation2 + $0x37] sm:$0x1]
        %v2749 = vld [vmem:[#allocation2 + $0x47] sm:$0x1]
        %v2750 = vld [vmem:[#allocation2 + $0x57] sm:$0x1]
        %v2751 = vld [vmem:[#allocation2 + $0x67] sm:$0x1]
        %v2752 = vld [vmem:[#allocation2 + $0x77] sm:$0x1]
        %v2761 = vrot.slane %v2746, 7
        %v2762 = vsel %vm1581, %v2761, %v2745
        %v2763 = vrot.slane %v2747, 6
        %v2764 = vsel %vm1584, %v2763, %v2762
        %v2765 = vrot.slane %v2748, 5
        %v2766 = vsel %vm1587, %v2765, %v2764
        %v2767 = vrot.slane %v2749, 4
        %v2768 = vsel %vm1590, %v2767, %v2766
        %v2769 = vrot.slane %v2750, 3
        %v2770 = vsel %vm1593, %v2769, %v2768
        %v2771 = vrot.slane %v2751, 2
        %v2772 = vsel %vm1596, %v2771, %v2770
        %v2773 = vrot.slane %v2752, 1
        %v2774 = vsel %vm1599, %v2773, %v2772
        %2776 = vmatprep.subr.mxu0 0.0
        %2777 = vmatpush1.msra.mxu0 0.0
        %2778 = vmatprep.subr.mxu0 0.0
        %2779 = vmatpush1.msra.mxu0 0.0
        %2780 = vmatprep.subr.mxu0 0.0
        %2781 = vmatpush1.msra.mxu0 0.0
        %2782 = vmatprep.subr.mxu0 0.0
        %2783 = vmatpush1.msra.mxu0 0.0
        %2784 = vmatprep.subr.mxu0 0.0
        %2785 = vmatpush1.msra.mxu0 0.0
        %2786 = vmatprep.subr.mxu0 0.0
        %2787 = vmatpush1.msra.mxu0 0.0
        %2788 = vmatprep.subr.mxu0 0.0
        %2789 = vmatpush1.msra.mxu0 0.0
        %2790 = vmatprep.subr.mxu0 0.0
        %2791 = vmatpush1.msra.mxu0 0.0
        %2792 = vmatprep.subr.mxu0 0.0
        %2793 = vmatpush1.msra.mxu0 0.0
        %2794 = vmatprep.subr.mxu0 0.0
        %2795 = vmatpush1.msra.mxu0 0.0
        %2796 = vmatprep.subr.mxu0 0.0
        %2797 = vmatpush1.msra.mxu0 0.0
        %2798 = vmatprep.subr.mxu0 0.0
        %2799 = vmatpush1.msra.mxu0 0.0
        %2800 = vmatprep.subr.mxu0 0.0
        %2801 = vmatpush1.msra.mxu0 0.0
        %2802 = vmatprep.subr.mxu0 0.0
        %2803 = vmatpush1.msra.mxu0 0.0
        %2804 = vmatprep.subr.mxu0 0.0
        %2805 = vmatpush1.msra.mxu0 0.0
        %2806 = vmatprep.subr.mxu0 0.0
        %2807 = vmatpush1.msra.mxu0 %v2774
        %2808 = vmatprep.subr.mxu0 0.0
        %2809 = vmatpush2.msra.mxu0 0.0
        %2810 = vmatprep.subr.mxu0 0.0
        %2811 = vmatpush2.msra.mxu0 0.0
        %2812 = vmatprep.subr.mxu0 0.0
        %2813 = vmatpush2.msra.mxu0 0.0
        %2814 = vmatprep.subr.mxu0 0.0
        %2815 = vmatpush2.msra.mxu0 0.0
        %2816 = vmatprep.subr.mxu0 0.0
        %2817 = vmatpush2.msra.mxu0 0.0
        %2818 = vmatprep.subr.mxu0 0.0
        %2819 = vmatpush2.msra.mxu0 0.0
        %2820 = vmatprep.subr.mxu0 0.0
        %2821 = vmatpush2.msra.mxu0 0.0
        %2822 = vmatprep.subr.mxu0 0.0
        %2823 = vmatpush2.msra.mxu0 0.0
        %2824 = vmatprep.subr.mxu0 0.0
        %2825 = vmatpush2.msra.mxu0 0.0
        %2826 = vmatprep.subr.mxu0 0.0
        %2827 = vmatpush2.msra.mxu0 0.0
        %2828 = vmatprep.subr.mxu0 0.0
        %2829 = vmatpush2.msra.mxu0 0.0
        %2830 = vmatprep.subr.mxu0 0.0
        %2831 = vmatpush2.msra.mxu0 0.0
        %2832 = vmatprep.subr.mxu0 0.0
        %2833 = vmatpush2.msra.mxu0 0.0
        %2834 = vmatprep.subr.mxu0 0.0
        %2835 = vmatpush2.msra.mxu0 0.0
        %2836 = vmatprep.subr.mxu0 0.0
        %2837 = vmatpush2.msra.mxu0 0.0
        %2838 = vmatprep.subr.mxu0 0.0
        %2839 = vmatpush2.msra.mxu0 0.0
        %2840 = vmatprep.mubr.f32.mxu0 0.0
        %2841 = vmatmul.mubr.f32.gmra.mxu0 %v1604
        %v2842 = vpop.f32.mrf.mxu0
        %v2843 = vadd.f32 0.0, %v2842
        %v2844 = vpop.f32.mrf.mxu0
        %2845 = vdwg.mxu0
        %v2847 = vcombine.high %v2843, %v2843
        %v2849 = vunpack.c.l.s4 1966171168
        %v2850 = vunpack.c.0.s8 %v2849
        %v2851 = vlaneseq
        %v2852 = vshrl.u32 %v2851, 7
        %v2853 = vsub.s32 %v2850, %v2852
        %v2854 = vrot.slane %v2843, %v2853
        %v2856 = vunpack.c.l.s4 1966171168
        %v2857 = vunpack.c.0.s8 %v2856
        %v2858 = vlaneseq
        %v2859 = vshrl.u32 %v2858, 7
        %v2860 = vsub.s32 %v2857, %v2859
        %v2861 = vrot.slane %v2847, %v2860
        %v2862 = vcombine.high %v2854, %v2854
        %v2863 = vcombine.high %v2861, %v2861
        %v2865 = vunpack.c.l.s4 1966171168
        %v2866 = vunpack.c.0.s8 %v2865
        %v2867 = vlaneseq
        %v2868 = vshrl.u32 %v2867, 7
        %v2869 = vsub.s32 %v2866, %v2868
        %v2870 = vrot.slane %v2854, %v2869
        %v2872 = vunpack.c.l.s4 1966171168
        %v2873 = vunpack.c.0.s8 %v2872
        %v2874 = vlaneseq
        %v2875 = vshrl.u32 %v2874, 7
        %v2876 = vsub.s32 %v2873, %v2875
        %v2877 = vrot.slane %v2861, %v2876
        %v2879 = vunpack.c.l.s4 1966171168
        %v2880 = vunpack.c.0.s8 %v2879
        %v2881 = vlaneseq
        %v2882 = vshrl.u32 %v2881, 7
        %v2883 = vsub.s32 %v2880, %v2882
        %v2884 = vrot.slane %v2862, %v2883
        %v2886 = vunpack.c.l.s4 1966171168
        %v2887 = vunpack.c.0.s8 %v2886
        %v2888 = vlaneseq
        %v2889 = vshrl.u32 %v2888, 7
        %v2890 = vsub.s32 %v2887, %v2889
        %v2891 = vrot.slane %v2863, %v2890
        %v2892 = vcombine.high %v2870, %v2870
        %v2893 = vcombine.high %v2877, %v2877
        %v2894 = vcombine.high %v2884, %v2884
        %v2895 = vcombine.high %v2891, %v2891
        %2904 = vst.msk [vmem:[%s257 + $0x7] sm:$0x1] %vm1734, %v2870
        %2905 = vst.msk [vmem:[%s257 + $0x17] sm:$0x1] %vm1734, %v2884
        %2906 = vst.msk [vmem:[%s257 + $0x27] sm:$0x1] %vm1734, %v2892
        %2907 = vst.msk [vmem:[%s257 + $0x37] sm:$0x1] %vm1734, %v2894
        %2908 = vst.msk [vmem:[%s257 + $0x47] sm:$0x1] %vm1734, %v2877
        %2909 = vst.msk [vmem:[%s257 + $0x57] sm:$0x1] %vm1734, %v2891
        %2910 = vst.msk [vmem:[%s257 + $0x67] sm:$0x1] %vm1734, %v2893
        %2911 = vst.msk [vmem:[%s257 + $0x77] sm:$0x1] %vm1734, %v2895
        %v2912 = vld [vmem:[#allocation2 + $0x8] sm:$0x1]
        %v2913 = vld [vmem:[#allocation2 + $0x18] sm:$0x1]
        %v2914 = vld [vmem:[#allocation2 + $0x28] sm:$0x1]
        %v2915 = vld [vmem:[#allocation2 + $0x38] sm:$0x1]
        %v2916 = vld [vmem:[#allocation2 + $0x48] sm:$0x1]
        %v2917 = vld [vmem:[#allocation2 + $0x58] sm:$0x1]
        %v2918 = vld [vmem:[#allocation2 + $0x68] sm:$0x1]
        %v2919 = vld [vmem:[#allocation2 + $0x78] sm:$0x1]
        %v2928 = vrot.slane %v2913, 7
        %v2929 = vsel %vm1581, %v2928, %v2912
        %v2930 = vrot.slane %v2914, 6
        %v2931 = vsel %vm1584, %v2930, %v2929
        %v2932 = vrot.slane %v2915, 5
        %v2933 = vsel %vm1587, %v2932, %v2931
        %v2934 = vrot.slane %v2916, 4
        %v2935 = vsel %vm1590, %v2934, %v2933
        %v2936 = vrot.slane %v2917, 3
        %v2937 = vsel %vm1593, %v2936, %v2935
        %v2938 = vrot.slane %v2918, 2
        %v2939 = vsel %vm1596, %v2938, %v2937
        %v2940 = vrot.slane %v2919, 1
        %v2941 = vsel %vm1599, %v2940, %v2939
        %2943 = vmatprep.subr.mxu0 0.0
        %2944 = vmatpush1.msra.mxu0 0.0
        %2945 = vmatprep.subr.mxu0 0.0
        %2946 = vmatpush1.msra.mxu0 0.0
        %2947 = vmatprep.subr.mxu0 0.0
        %2948 = vmatpush1.msra.mxu0 0.0
        %2949 = vmatprep.subr.mxu0 0.0
        %2950 = vmatpush1.msra.mxu0 0.0
        %2951 = vmatprep.subr.mxu0 0.0
        %2952 = vmatpush1.msra.mxu0 0.0
        %2953 = vmatprep.subr.mxu0 0.0
        %2954 = vmatpush1.msra.mxu0 0.0
        %2955 = vmatprep.subr.mxu0 0.0
        %2956 = vmatpush1.msra.mxu0 0.0
        %2957 = vmatprep.subr.mxu0 0.0
        %2958 = vmatpush1.msra.mxu0 0.0
        %2959 = vmatprep.subr.mxu0 0.0
        %2960 = vmatpush1.msra.mxu0 0.0
        %2961 = vmatprep.subr.mxu0 0.0
        %2962 = vmatpush1.msra.mxu0 0.0
        %2963 = vmatprep.subr.mxu0 0.0
        %2964 = vmatpush1.msra.mxu0 0.0
        %2965 = vmatprep.subr.mxu0 0.0
        %2966 = vmatpush1.msra.mxu0 0.0
        %2967 = vmatprep.subr.mxu0 0.0
        %2968 = vmatpush1.msra.mxu0 0.0
        %2969 = vmatprep.subr.mxu0 0.0
        %2970 = vmatpush1.msra.mxu0 0.0
        %2971 = vmatprep.subr.mxu0 0.0
        %2972 = vmatpush1.msra.mxu0 0.0
        %2973 = vmatprep.subr.mxu0 0.0
        %2974 = vmatpush1.msra.mxu0 %v2941
        %2975 = vmatprep.subr.mxu0 0.0
        %2976 = vmatpush2.msra.mxu0 0.0
        %2977 = vmatprep.subr.mxu0 0.0
        %2978 = vmatpush2.msra.mxu0 0.0
        %2979 = vmatprep.subr.mxu0 0.0
        %2980 = vmatpush2.msra.mxu0 0.0
        %2981 = vmatprep.subr.mxu0 0.0
        %2982 = vmatpush2.msra.mxu0 0.0
        %2983 = vmatprep.subr.mxu0 0.0
        %2984 = vmatpush2.msra.mxu0 0.0
        %2985 = vmatprep.subr.mxu0 0.0
        %2986 = vmatpush2.msra.mxu0 0.0
        %2987 = vmatprep.subr.mxu0 0.0
        %2988 = vmatpush2.msra.mxu0 0.0
        %2989 = vmatprep.subr.mxu0 0.0
        %2990 = vmatpush2.msra.mxu0 0.0
        %2991 = vmatprep.subr.mxu0 0.0
        %2992 = vmatpush2.msra.mxu0 0.0
        %2993 = vmatprep.subr.mxu0 0.0
        %2994 = vmatpush2.msra.mxu0 0.0
        %2995 = vmatprep.subr.mxu0 0.0
        %2996 = vmatpush2.msra.mxu0 0.0
        %2997 = vmatprep.subr.mxu0 0.0
        %2998 = vmatpush2.msra.mxu0 0.0
        %2999 = vmatprep.subr.mxu0 0.0
        %3000 = vmatpush2.msra.mxu0 0.0
        %3001 = vmatprep.subr.mxu0 0.0
        %3002 = vmatpush2.msra.mxu0 0.0
        %3003 = vmatprep.subr.mxu0 0.0
        %3004 = vmatpush2.msra.mxu0 0.0
        %3005 = vmatprep.subr.mxu0 0.0
        %3006 = vmatpush2.msra.mxu0 0.0
        %3007 = vmatprep.mubr.f32.mxu0 0.0
        %3008 = vmatmul.mubr.f32.gmra.mxu0 %v1604
        %v3009 = vpop.f32.mrf.mxu0
        %v3010 = vadd.f32 0.0, %v3009
        %v3011 = vpop.f32.mrf.mxu0
        %3012 = vdwg.mxu0
        %v3014 = vcombine.high %v3010, %v3010
        %v3016 = vunpack.c.l.s4 1966171168
        %v3017 = vunpack.c.0.s8 %v3016
        %v3018 = vlaneseq
        %v3019 = vshrl.u32 %v3018, 7
        %v3020 = vsub.s32 %v3017, %v3019
        %v3021 = vrot.slane %v3010, %v3020
        %v3023 = vunpack.c.l.s4 1966171168
        %v3024 = vunpack.c.0.s8 %v3023
        %v3025 = vlaneseq
        %v3026 = vshrl.u32 %v3025, 7
        %v3027 = vsub.s32 %v3024, %v3026
        %v3028 = vrot.slane %v3014, %v3027
        %v3029 = vcombine.high %v3021, %v3021
        %v3030 = vcombine.high %v3028, %v3028
        %v3032 = vunpack.c.l.s4 1966171168
        %v3033 = vunpack.c.0.s8 %v3032
        %v3034 = vlaneseq
        %v3035 = vshrl.u32 %v3034, 7
        %v3036 = vsub.s32 %v3033, %v3035
        %v3037 = vrot.slane %v3021, %v3036
        %v3039 = vunpack.c.l.s4 1966171168
        %v3040 = vunpack.c.0.s8 %v3039
        %v3041 = vlaneseq
        %v3042 = vshrl.u32 %v3041, 7
        %v3043 = vsub.s32 %v3040, %v3042
        %v3044 = vrot.slane %v3028, %v3043
        %v3046 = vunpack.c.l.s4 1966171168
        %v3047 = vunpack.c.0.s8 %v3046
        %v3048 = vlaneseq
        %v3049 = vshrl.u32 %v3048, 7
        %v3050 = vsub.s32 %v3047, %v3049
        %v3051 = vrot.slane %v3029, %v3050
        %v3053 = vunpack.c.l.s4 1966171168
        %v3054 = vunpack.c.0.s8 %v3053
        %v3055 = vlaneseq
        %v3056 = vshrl.u32 %v3055, 7
        %v3057 = vsub.s32 %v3054, %v3056
        %v3058 = vrot.slane %v3030, %v3057
        %v3059 = vcombine.high %v3037, %v3037
        %v3060 = vcombine.high %v3044, %v3044
        %v3061 = vcombine.high %v3051, %v3051
        %v3062 = vcombine.high %v3058, %v3058
        %3071 = vst.msk [vmem:[%s257 + $0x8] sm:$0x1] %vm1734, %v3037
        %3072 = vst.msk [vmem:[%s257 + $0x18] sm:$0x1] %vm1734, %v3051
        %3073 = vst.msk [vmem:[%s257 + $0x28] sm:$0x1] %vm1734, %v3059
        %3074 = vst.msk [vmem:[%s257 + $0x38] sm:$0x1] %vm1734, %v3061
        %3075 = vst.msk [vmem:[%s257 + $0x48] sm:$0x1] %vm1734, %v3044
        %3076 = vst.msk [vmem:[%s257 + $0x58] sm:$0x1] %vm1734, %v3058
        %3077 = vst.msk [vmem:[%s257 + $0x68] sm:$0x1] %vm1734, %v3060
        %3078 = vst.msk [vmem:[%s257 + $0x78] sm:$0x1] %vm1734, %v3062
        %v3079 = vld [vmem:[#allocation2 + $0x9] sm:$0x1]
        %v3080 = vld [vmem:[#allocation2 + $0x19] sm:$0x1]
        %v3081 = vld [vmem:[#allocation2 + $0x29] sm:$0x1]
        %v3082 = vld [vmem:[#allocation2 + $0x39] sm:$0x1]
        %v3083 = vld [vmem:[#allocation2 + $0x49] sm:$0x1]
        %v3084 = vld [vmem:[#allocation2 + $0x59] sm:$0x1]
        %v3085 = vld [vmem:[#allocation2 + $0x69] sm:$0x1]
        %v3086 = vld [vmem:[#allocation2 + $0x79] sm:$0x1]
        %v3095 = vrot.slane %v3080, 7
        %v3096 = vsel %vm1581, %v3095, %v3079
        %v3097 = vrot.slane %v3081, 6
        %v3098 = vsel %vm1584, %v3097, %v3096
        %v3099 = vrot.slane %v3082, 5
        %v3100 = vsel %vm1587, %v3099, %v3098
        %v3101 = vrot.slane %v3083, 4
        %v3102 = vsel %vm1590, %v3101, %v3100
        %v3103 = vrot.slane %v3084, 3
        %v3104 = vsel %vm1593, %v3103, %v3102
        %v3105 = vrot.slane %v3085, 2
        %v3106 = vsel %vm1596, %v3105, %v3104
        %v3107 = vrot.slane %v3086, 1
        %v3108 = vsel %vm1599, %v3107, %v3106
        %3110 = vmatprep.subr.mxu0 0.0
        %3111 = vmatpush1.msra.mxu0 0.0
        %3112 = vmatprep.subr.mxu0 0.0
        %3113 = vmatpush1.msra.mxu0 0.0
        %3114 = vmatprep.subr.mxu0 0.0
        %3115 = vmatpush1.msra.mxu0 0.0
        %3116 = vmatprep.subr.mxu0 0.0
        %3117 = vmatpush1.msra.mxu0 0.0
        %3118 = vmatprep.subr.mxu0 0.0
        %3119 = vmatpush1.msra.mxu0 0.0
        %3120 = vmatprep.subr.mxu0 0.0
        %3121 = vmatpush1.msra.mxu0 0.0
        %3122 = vmatprep.subr.mxu0 0.0
        %3123 = vmatpush1.msra.mxu0 0.0
        %3124 = vmatprep.subr.mxu0 0.0
        %3125 = vmatpush1.msra.mxu0 0.0
        %3126 = vmatprep.subr.mxu0 0.0
        %3127 = vmatpush1.msra.mxu0 0.0
        %3128 = vmatprep.subr.mxu0 0.0
        %3129 = vmatpush1.msra.mxu0 0.0
        %3130 = vmatprep.subr.mxu0 0.0
        %3131 = vmatpush1.msra.mxu0 0.0
        %3132 = vmatprep.subr.mxu0 0.0
        %3133 = vmatpush1.msra.mxu0 0.0
        %3134 = vmatprep.subr.mxu0 0.0
        %3135 = vmatpush1.msra.mxu0 0.0
        %3136 = vmatprep.subr.mxu0 0.0
        %3137 = vmatpush1.msra.mxu0 0.0
        %3138 = vmatprep.subr.mxu0 0.0
        %3139 = vmatpush1.msra.mxu0 0.0
        %3140 = vmatprep.subr.mxu0 0.0
        %3141 = vmatpush1.msra.mxu0 %v3108
        %3142 = vmatprep.subr.mxu0 0.0
        %3143 = vmatpush2.msra.mxu0 0.0
        %3144 = vmatprep.subr.mxu0 0.0
        %3145 = vmatpush2.msra.mxu0 0.0
        %3146 = vmatprep.subr.mxu0 0.0
        %3147 = vmatpush2.msra.mxu0 0.0
        %3148 = vmatprep.subr.mxu0 0.0
        %3149 = vmatpush2.msra.mxu0 0.0
        %3150 = vmatprep.subr.mxu0 0.0
        %3151 = vmatpush2.msra.mxu0 0.0
        %3152 = vmatprep.subr.mxu0 0.0
        %3153 = vmatpush2.msra.mxu0 0.0
        %3154 = vmatprep.subr.mxu0 0.0
        %3155 = vmatpush2.msra.mxu0 0.0
        %3156 = vmatprep.subr.mxu0 0.0
        %3157 = vmatpush2.msra.mxu0 0.0
        %3158 = vmatprep.subr.mxu0 0.0
        %3159 = vmatpush2.msra.mxu0 0.0
        %3160 = vmatprep.subr.mxu0 0.0
        %3161 = vmatpush2.msra.mxu0 0.0
        %3162 = vmatprep.subr.mxu0 0.0
        %3163 = vmatpush2.msra.mxu0 0.0
        %3164 = vmatprep.subr.mxu0 0.0
        %3165 = vmatpush2.msra.mxu0 0.0
        %3166 = vmatprep.subr.mxu0 0.0
        %3167 = vmatpush2.msra.mxu0 0.0
        %3168 = vmatprep.subr.mxu0 0.0
        %3169 = vmatpush2.msra.mxu0 0.0
        %3170 = vmatprep.subr.mxu0 0.0
        %3171 = vmatpush2.msra.mxu0 0.0
        %3172 = vmatprep.subr.mxu0 0.0
        %3173 = vmatpush2.msra.mxu0 0.0
        %3174 = vmatprep.mubr.f32.mxu0 0.0
        %3175 = vmatmul.mubr.f32.gmra.mxu0 %v1604
        %v3176 = vpop.f32.mrf.mxu0
        %v3177 = vadd.f32 0.0, %v3176
        %v3178 = vpop.f32.mrf.mxu0
        %3179 = vdwg.mxu0
        %v3181 = vcombine.high %v3177, %v3177
        %v3183 = vunpack.c.l.s4 1966171168
        %v3184 = vunpack.c.0.s8 %v3183
        %v3185 = vlaneseq
        %v3186 = vshrl.u32 %v3185, 7
        %v3187 = vsub.s32 %v3184, %v3186
        %v3188 = vrot.slane %v3177, %v3187
        %v3190 = vunpack.c.l.s4 1966171168
        %v3191 = vunpack.c.0.s8 %v3190
        %v3192 = vlaneseq
        %v3193 = vshrl.u32 %v3192, 7
        %v3194 = vsub.s32 %v3191, %v3193
        %v3195 = vrot.slane %v3181, %v3194
        %v3196 = vcombine.high %v3188, %v3188
        %v3197 = vcombine.high %v3195, %v3195
        %v3199 = vunpack.c.l.s4 1966171168
        %v3200 = vunpack.c.0.s8 %v3199
        %v3201 = vlaneseq
        %v3202 = vshrl.u32 %v3201, 7
        %v3203 = vsub.s32 %v3200, %v3202
        %v3204 = vrot.slane %v3188, %v3203
        %v3206 = vunpack.c.l.s4 1966171168
        %v3207 = vunpack.c.0.s8 %v3206
        %v3208 = vlaneseq
        %v3209 = vshrl.u32 %v3208, 7
        %v3210 = vsub.s32 %v3207, %v3209
        %v3211 = vrot.slane %v3195, %v3210
        %v3213 = vunpack.c.l.s4 1966171168
        %v3214 = vunpack.c.0.s8 %v3213
        %v3215 = vlaneseq
        %v3216 = vshrl.u32 %v3215, 7
        %v3217 = vsub.s32 %v3214, %v3216
        %v3218 = vrot.slane %v3196, %v3217
        %v3220 = vunpack.c.l.s4 1966171168
        %v3221 = vunpack.c.0.s8 %v3220
        %v3222 = vlaneseq
        %v3223 = vshrl.u32 %v3222, 7
        %v3224 = vsub.s32 %v3221, %v3223
        %v3225 = vrot.slane %v3197, %v3224
        %v3226 = vcombine.high %v3204, %v3204
        %v3227 = vcombine.high %v3211, %v3211
        %v3228 = vcombine.high %v3218, %v3218
        %v3229 = vcombine.high %v3225, %v3225
        %3238 = vst.msk [vmem:[%s257 + $0x9] sm:$0x1] %vm1734, %v3204
        %3239 = vst.msk [vmem:[%s257 + $0x19] sm:$0x1] %vm1734, %v3218
        %3240 = vst.msk [vmem:[%s257 + $0x29] sm:$0x1] %vm1734, %v3226
        %3241 = vst.msk [vmem:[%s257 + $0x39] sm:$0x1] %vm1734, %v3228
        %3242 = vst.msk [vmem:[%s257 + $0x49] sm:$0x1] %vm1734, %v3211
        %3243 = vst.msk [vmem:[%s257 + $0x59] sm:$0x1] %vm1734, %v3225
        %3244 = vst.msk [vmem:[%s257 + $0x69] sm:$0x1] %vm1734, %v3227
        %3245 = vst.msk [vmem:[%s257 + $0x79] sm:$0x1] %vm1734, %v3229
        %v3246 = vld [vmem:[#allocation2 + $0xa] sm:$0x1]
        %v3247 = vld [vmem:[#allocation2 + $0x1a] sm:$0x1]
        %v3248 = vld [vmem:[#allocation2 + $0x2a] sm:$0x1]
        %v3249 = vld [vmem:[#allocation2 + $0x3a] sm:$0x1]
        %v3250 = vld [vmem:[#allocation2 + $0x4a] sm:$0x1]
        %v3251 = vld [vmem:[#allocation2 + $0x5a] sm:$0x1]
        %v3252 = vld [vmem:[#allocation2 + $0x6a] sm:$0x1]
        %v3253 = vld [vmem:[#allocation2 + $0x7a] sm:$0x1]
        %v3262 = vrot.slane %v3247, 7
        %v3263 = vsel %vm1581, %v3262, %v3246
        %v3264 = vrot.slane %v3248, 6
        %v3265 = vsel %vm1584, %v3264, %v3263
        %v3266 = vrot.slane %v3249, 5
        %v3267 = vsel %vm1587, %v3266, %v3265
        %v3268 = vrot.slane %v3250, 4
        %v3269 = vsel %vm1590, %v3268, %v3267
        %v3270 = vrot.slane %v3251, 3
        %v3271 = vsel %vm1593, %v3270, %v3269
        %v3272 = vrot.slane %v3252, 2
        %v3273 = vsel %vm1596, %v3272, %v3271
        %v3274 = vrot.slane %v3253, 1
        %v3275 = vsel %vm1599, %v3274, %v3273
        %3277 = vmatprep.subr.mxu0 0.0
        %3278 = vmatpush1.msra.mxu0 0.0
        %3279 = vmatprep.subr.mxu0 0.0
        %3280 = vmatpush1.msra.mxu0 0.0
        %3281 = vmatprep.subr.mxu0 0.0
        %3282 = vmatpush1.msra.mxu0 0.0
        %3283 = vmatprep.subr.mxu0 0.0
        %3284 = vmatpush1.msra.mxu0 0.0
        %3285 = vmatprep.subr.mxu0 0.0
        %3286 = vmatpush1.msra.mxu0 0.0
        %3287 = vmatprep.subr.mxu0 0.0
        %3288 = vmatpush1.msra.mxu0 0.0
        %3289 = vmatprep.subr.mxu0 0.0
        %3290 = vmatpush1.msra.mxu0 0.0
        %3291 = vmatprep.subr.mxu0 0.0
        %3292 = vmatpush1.msra.mxu0 0.0
        %3293 = vmatprep.subr.mxu0 0.0
        %3294 = vmatpush1.msra.mxu0 0.0
        %3295 = vmatprep.subr.mxu0 0.0
        %3296 = vmatpush1.msra.mxu0 0.0
        %3297 = vmatprep.subr.mxu0 0.0
        %3298 = vmatpush1.msra.mxu0 0.0
        %3299 = vmatprep.subr.mxu0 0.0
        %3300 = vmatpush1.msra.mxu0 0.0
        %3301 = vmatprep.subr.mxu0 0.0
        %3302 = vmatpush1.msra.mxu0 0.0
        %3303 = vmatprep.subr.mxu0 0.0
        %3304 = vmatpush1.msra.mxu0 0.0
        %3305 = vmatprep.subr.mxu0 0.0
        %3306 = vmatpush1.msra.mxu0 0.0
        %3307 = vmatprep.subr.mxu0 0.0
        %3308 = vmatpush1.msra.mxu0 %v3275
        %3309 = vmatprep.subr.mxu0 0.0
        %3310 = vmatpush2.msra.mxu0 0.0
        %3311 = vmatprep.subr.mxu0 0.0
        %3312 = vmatpush2.msra.mxu0 0.0
        %3313 = vmatprep.subr.mxu0 0.0
        %3314 = vmatpush2.msra.mxu0 0.0
        %3315 = vmatprep.subr.mxu0 0.0
        %3316 = vmatpush2.msra.mxu0 0.0
        %3317 = vmatprep.subr.mxu0 0.0
        %3318 = vmatpush2.msra.mxu0 0.0
        %3319 = vmatprep.subr.mxu0 0.0
        %3320 = vmatpush2.msra.mxu0 0.0
        %3321 = vmatprep.subr.mxu0 0.0
        %3322 = vmatpush2.msra.mxu0 0.0
        %3323 = vmatprep.subr.mxu0 0.0
        %3324 = vmatpush2.msra.mxu0 0.0
        %3325 = vmatprep.subr.mxu0 0.0
        %3326 = vmatpush2.msra.mxu0 0.0
        %3327 = vmatprep.subr.mxu0 0.0
        %3328 = vmatpush2.msra.mxu0 0.0
        %3329 = vmatprep.subr.mxu0 0.0
        %3330 = vmatpush2.msra.mxu0 0.0
        %3331 = vmatprep.subr.mxu0 0.0
        %3332 = vmatpush2.msra.mxu0 0.0
        %3333 = vmatprep.subr.mxu0 0.0
        %3334 = vmatpush2.msra.mxu0 0.0
        %3335 = vmatprep.subr.mxu0 0.0
        %3336 = vmatpush2.msra.mxu0 0.0
        %3337 = vmatprep.subr.mxu0 0.0
        %3338 = vmatpush2.msra.mxu0 0.0
        %3339 = vmatprep.subr.mxu0 0.0
        %3340 = vmatpush2.msra.mxu0 0.0
        %3341 = vmatprep.mubr.f32.mxu0 0.0
        %3342 = vmatmul.mubr.f32.gmra.mxu0 %v1604
        %v3343 = vpop.f32.mrf.mxu0
        %v3344 = vadd.f32 0.0, %v3343
        %v3345 = vpop.f32.mrf.mxu0
        %3346 = vdwg.mxu0
        %v3348 = vcombine.high %v3344, %v3344
        %v3350 = vunpack.c.l.s4 1966171168
        %v3351 = vunpack.c.0.s8 %v3350
        %v3352 = vlaneseq
        %v3353 = vshrl.u32 %v3352, 7
        %v3354 = vsub.s32 %v3351, %v3353
        %v3355 = vrot.slane %v3344, %v3354
        %v3357 = vunpack.c.l.s4 1966171168
        %v3358 = vunpack.c.0.s8 %v3357
        %v3359 = vlaneseq
        %v3360 = vshrl.u32 %v3359, 7
        %v3361 = vsub.s32 %v3358, %v3360
        %v3362 = vrot.slane %v3348, %v3361
        %v3363 = vcombine.high %v3355, %v3355
        %v3364 = vcombine.high %v3362, %v3362
        %v3366 = vunpack.c.l.s4 1966171168
        %v3367 = vunpack.c.0.s8 %v3366
        %v3368 = vlaneseq
        %v3369 = vshrl.u32 %v3368, 7
        %v3370 = vsub.s32 %v3367, %v3369
        %v3371 = vrot.slane %v3355, %v3370
        %v3373 = vunpack.c.l.s4 1966171168
        %v3374 = vunpack.c.0.s8 %v3373
        %v3375 = vlaneseq
        %v3376 = vshrl.u32 %v3375, 7
        %v3377 = vsub.s32 %v3374, %v3376
        %v3378 = vrot.slane %v3362, %v3377
        %v3380 = vunpack.c.l.s4 1966171168
        %v3381 = vunpack.c.0.s8 %v3380
        %v3382 = vlaneseq
        %v3383 = vshrl.u32 %v3382, 7
        %v3384 = vsub.s32 %v3381, %v3383
        %v3385 = vrot.slane %v3363, %v3384
        %v3387 = vunpack.c.l.s4 1966171168
        %v3388 = vunpack.c.0.s8 %v3387
        %v3389 = vlaneseq
        %v3390 = vshrl.u32 %v3389, 7
        %v3391 = vsub.s32 %v3388, %v3390
        %v3392 = vrot.slane %v3364, %v3391
        %v3393 = vcombine.high %v3371, %v3371
        %v3394 = vcombine.high %v3378, %v3378
        %v3395 = vcombine.high %v3385, %v3385
        %v3396 = vcombine.high %v3392, %v3392
        %3405 = vst.msk [vmem:[%s257 + $0xa] sm:$0x1] %vm1734, %v3371
        %3406 = vst.msk [vmem:[%s257 + $0x1a] sm:$0x1] %vm1734, %v3385
        %3407 = vst.msk [vmem:[%s257 + $0x2a] sm:$0x1] %vm1734, %v3393
        %3408 = vst.msk [vmem:[%s257 + $0x3a] sm:$0x1] %vm1734, %v3395
        %3409 = vst.msk [vmem:[%s257 + $0x4a] sm:$0x1] %vm1734, %v3378
        %3410 = vst.msk [vmem:[%s257 + $0x5a] sm:$0x1] %vm1734, %v3392
        %3411 = vst.msk [vmem:[%s257 + $0x6a] sm:$0x1] %vm1734, %v3394
        %3412 = vst.msk [vmem:[%s257 + $0x7a] sm:$0x1] %vm1734, %v3396
        %v3413 = vld [vmem:[#allocation2 + $0xb] sm:$0x1]
        %v3414 = vld [vmem:[#allocation2 + $0x1b] sm:$0x1]
        %v3415 = vld [vmem:[#allocation2 + $0x2b] sm:$0x1]
        %v3416 = vld [vmem:[#allocation2 + $0x3b] sm:$0x1]
        %v3417 = vld [vmem:[#allocation2 + $0x4b] sm:$0x1]
        %v3418 = vld [vmem:[#allocation2 + $0x5b] sm:$0x1]
        %v3419 = vld [vmem:[#allocation2 + $0x6b] sm:$0x1]
        %v3420 = vld [vmem:[#allocation2 + $0x7b] sm:$0x1]
        %v3429 = vrot.slane %v3414, 7
        %v3430 = vsel %vm1581, %v3429, %v3413
        %v3431 = vrot.slane %v3415, 6
        %v3432 = vsel %vm1584, %v3431, %v3430
        %v3433 = vrot.slane %v3416, 5
        %v3434 = vsel %vm1587, %v3433, %v3432
        %v3435 = vrot.slane %v3417, 4
        %v3436 = vsel %vm1590, %v3435, %v3434
        %v3437 = vrot.slane %v3418, 3
        %v3438 = vsel %vm1593, %v3437, %v3436
        %v3439 = vrot.slane %v3419, 2
        %v3440 = vsel %vm1596, %v3439, %v3438
        %v3441 = vrot.slane %v3420, 1
        %v3442 = vsel %vm1599, %v3441, %v3440
        %3444 = vmatprep.subr.mxu0 0.0
        %3445 = vmatpush1.msra.mxu0 0.0
        %3446 = vmatprep.subr.mxu0 0.0
        %3447 = vmatpush1.msra.mxu0 0.0
        %3448 = vmatprep.subr.mxu0 0.0
        %3449 = vmatpush1.msra.mxu0 0.0
        %3450 = vmatprep.subr.mxu0 0.0
        %3451 = vmatpush1.msra.mxu0 0.0
        %3452 = vmatprep.subr.mxu0 0.0
        %3453 = vmatpush1.msra.mxu0 0.0
        %3454 = vmatprep.subr.mxu0 0.0
        %3455 = vmatpush1.msra.mxu0 0.0
        %3456 = vmatprep.subr.mxu0 0.0
        %3457 = vmatpush1.msra.mxu0 0.0
        %3458 = vmatprep.subr.mxu0 0.0
        %3459 = vmatpush1.msra.mxu0 0.0
        %3460 = vmatprep.subr.mxu0 0.0
        %3461 = vmatpush1.msra.mxu0 0.0
        %3462 = vmatprep.subr.mxu0 0.0
        %3463 = vmatpush1.msra.mxu0 0.0
        %3464 = vmatprep.subr.mxu0 0.0
        %3465 = vmatpush1.msra.mxu0 0.0
        %3466 = vmatprep.subr.mxu0 0.0
        %3467 = vmatpush1.msra.mxu0 0.0
        %3468 = vmatprep.subr.mxu0 0.0
        %3469 = vmatpush1.msra.mxu0 0.0
        %3470 = vmatprep.subr.mxu0 0.0
        %3471 = vmatpush1.msra.mxu0 0.0
        %3472 = vmatprep.subr.mxu0 0.0
        %3473 = vmatpush1.msra.mxu0 0.0
        %3474 = vmatprep.subr.mxu0 0.0
        %3475 = vmatpush1.msra.mxu0 %v3442
        %3476 = vmatprep.subr.mxu0 0.0
        %3477 = vmatpush2.msra.mxu0 0.0
        %3478 = vmatprep.subr.mxu0 0.0
        %3479 = vmatpush2.msra.mxu0 0.0
        %3480 = vmatprep.subr.mxu0 0.0
        %3481 = vmatpush2.msra.mxu0 0.0
        %3482 = vmatprep.subr.mxu0 0.0
        %3483 = vmatpush2.msra.mxu0 0.0
        %3484 = vmatprep.subr.mxu0 0.0
        %3485 = vmatpush2.msra.mxu0 0.0
        %3486 = vmatprep.subr.mxu0 0.0
        %3487 = vmatpush2.msra.mxu0 0.0
        %3488 = vmatprep.subr.mxu0 0.0
        %3489 = vmatpush2.msra.mxu0 0.0
        %3490 = vmatprep.subr.mxu0 0.0
        %3491 = vmatpush2.msra.mxu0 0.0
        %3492 = vmatprep.subr.mxu0 0.0
        %3493 = vmatpush2.msra.mxu0 0.0
        %3494 = vmatprep.subr.mxu0 0.0
        %3495 = vmatpush2.msra.mxu0 0.0
        %3496 = vmatprep.subr.mxu0 0.0
        %3497 = vmatpush2.msra.mxu0 0.0
        %3498 = vmatprep.subr.mxu0 0.0
        %3499 = vmatpush2.msra.mxu0 0.0
        %3500 = vmatprep.subr.mxu0 0.0
        %3501 = vmatpush2.msra.mxu0 0.0
        %3502 = vmatprep.subr.mxu0 0.0
        %3503 = vmatpush2.msra.mxu0 0.0
        %3504 = vmatprep.subr.mxu0 0.0
        %3505 = vmatpush2.msra.mxu0 0.0
        %3506 = vmatprep.subr.mxu0 0.0
        %3507 = vmatpush2.msra.mxu0 0.0
        %3508 = vmatprep.mubr.f32.mxu0 0.0
        %3509 = vmatmul.mubr.f32.gmra.mxu0 %v1604
        %v3510 = vpop.f32.mrf.mxu0
        %v3511 = vadd.f32 0.0, %v3510
        %v3512 = vpop.f32.mrf.mxu0
        %3513 = vdwg.mxu0
        %v3515 = vcombine.high %v3511, %v3511
        %v3517 = vunpack.c.l.s4 1966171168
        %v3518 = vunpack.c.0.s8 %v3517
        %v3519 = vlaneseq
        %v3520 = vshrl.u32 %v3519, 7
        %v3521 = vsub.s32 %v3518, %v3520
        %v3522 = vrot.slane %v3511, %v3521
        %v3524 = vunpack.c.l.s4 1966171168
        %v3525 = vunpack.c.0.s8 %v3524
        %v3526 = vlaneseq
        %v3527 = vshrl.u32 %v3526, 7
        %v3528 = vsub.s32 %v3525, %v3527
        %v3529 = vrot.slane %v3515, %v3528
        %v3530 = vcombine.high %v3522, %v3522
        %v3531 = vcombine.high %v3529, %v3529
        %v3533 = vunpack.c.l.s4 1966171168
        %v3534 = vunpack.c.0.s8 %v3533
        %v3535 = vlaneseq
        %v3536 = vshrl.u32 %v3535, 7
        %v3537 = vsub.s32 %v3534, %v3536
        %v3538 = vrot.slane %v3522, %v3537
        %v3540 = vunpack.c.l.s4 1966171168
        %v3541 = vunpack.c.0.s8 %v3540
        %v3542 = vlaneseq
        %v3543 = vshrl.u32 %v3542, 7
        %v3544 = vsub.s32 %v3541, %v3543
        %v3545 = vrot.slane %v3529, %v3544
        %v3547 = vunpack.c.l.s4 1966171168
        %v3548 = vunpack.c.0.s8 %v3547
        %v3549 = vlaneseq
        %v3550 = vshrl.u32 %v3549, 7
        %v3551 = vsub.s32 %v3548, %v3550
        %v3552 = vrot.slane %v3530, %v3551
        %v3554 = vunpack.c.l.s4 1966171168
        %v3555 = vunpack.c.0.s8 %v3554
        %v3556 = vlaneseq
        %v3557 = vshrl.u32 %v3556, 7
        %v3558 = vsub.s32 %v3555, %v3557
        %v3559 = vrot.slane %v3531, %v3558
        %v3560 = vcombine.high %v3538, %v3538
        %v3561 = vcombine.high %v3545, %v3545
        %v3562 = vcombine.high %v3552, %v3552
        %v3563 = vcombine.high %v3559, %v3559
        %3572 = vst.msk [vmem:[%s257 + $0xb] sm:$0x1] %vm1734, %v3538
        %3573 = vst.msk [vmem:[%s257 + $0x1b] sm:$0x1] %vm1734, %v3552
        %3574 = vst.msk [vmem:[%s257 + $0x2b] sm:$0x1] %vm1734, %v3560
        %3575 = vst.msk [vmem:[%s257 + $0x3b] sm:$0x1] %vm1734, %v3562
        %3576 = vst.msk [vmem:[%s257 + $0x4b] sm:$0x1] %vm1734, %v3545
        %3577 = vst.msk [vmem:[%s257 + $0x5b] sm:$0x1] %vm1734, %v3559
        %3578 = vst.msk [vmem:[%s257 + $0x6b] sm:$0x1] %vm1734, %v3561
        %3579 = vst.msk [vmem:[%s257 + $0x7b] sm:$0x1] %vm1734, %v3563
        %v3580 = vld [vmem:[#allocation2 + $0xc] sm:$0x1]
        %v3581 = vld [vmem:[#allocation2 + $0x1c] sm:$0x1]
        %v3582 = vld [vmem:[#allocation2 + $0x2c] sm:$0x1]
        %v3583 = vld [vmem:[#allocation2 + $0x3c] sm:$0x1]
        %v3584 = vld [vmem:[#allocation2 + $0x4c] sm:$0x1]
        %v3585 = vld [vmem:[#allocation2 + $0x5c] sm:$0x1]
        %v3586 = vld [vmem:[#allocation2 + $0x6c] sm:$0x1]
        %v3587 = vld [vmem:[#allocation2 + $0x7c] sm:$0x1]
        %v3596 = vrot.slane %v3581, 7
        %v3597 = vsel %vm1581, %v3596, %v3580
        %v3598 = vrot.slane %v3582, 6
        %v3599 = vsel %vm1584, %v3598, %v3597
        %v3600 = vrot.slane %v3583, 5
        %v3601 = vsel %vm1587, %v3600, %v3599
        %v3602 = vrot.slane %v3584, 4
        %v3603 = vsel %vm1590, %v3602, %v3601
        %v3604 = vrot.slane %v3585, 3
        %v3605 = vsel %vm1593, %v3604, %v3603
        %v3606 = vrot.slane %v3586, 2
        %v3607 = vsel %vm1596, %v3606, %v3605
        %v3608 = vrot.slane %v3587, 1
        %v3609 = vsel %vm1599, %v3608, %v3607
        %3611 = vmatprep.subr.mxu0 0.0
        %3612 = vmatpush1.msra.mxu0 0.0
        %3613 = vmatprep.subr.mxu0 0.0
        %3614 = vmatpush1.msra.mxu0 0.0
        %3615 = vmatprep.subr.mxu0 0.0
        %3616 = vmatpush1.msra.mxu0 0.0
        %3617 = vmatprep.subr.mxu0 0.0
        %3618 = vmatpush1.msra.mxu0 0.0
        %3619 = vmatprep.subr.mxu0 0.0
        %3620 = vmatpush1.msra.mxu0 0.0
        %3621 = vmatprep.subr.mxu0 0.0
        %3622 = vmatpush1.msra.mxu0 0.0
        %3623 = vmatprep.subr.mxu0 0.0
        %3624 = vmatpush1.msra.mxu0 0.0
        %3625 = vmatprep.subr.mxu0 0.0
        %3626 = vmatpush1.msra.mxu0 0.0
        %3627 = vmatprep.subr.mxu0 0.0
        %3628 = vmatpush1.msra.mxu0 0.0
        %3629 = vmatprep.subr.mxu0 0.0
        %3630 = vmatpush1.msra.mxu0 0.0
        %3631 = vmatprep.subr.mxu0 0.0
        %3632 = vmatpush1.msra.mxu0 0.0
        %3633 = vmatprep.subr.mxu0 0.0
        %3634 = vmatpush1.msra.mxu0 0.0
        %3635 = vmatprep.subr.mxu0 0.0
        %3636 = vmatpush1.msra.mxu0 0.0
        %3637 = vmatprep.subr.mxu0 0.0
        %3638 = vmatpush1.msra.mxu0 0.0
        %3639 = vmatprep.subr.mxu0 0.0
        %3640 = vmatpush1.msra.mxu0 0.0
        %3641 = vmatprep.subr.mxu0 0.0
        %3642 = vmatpush1.msra.mxu0 %v3609
        %3643 = vmatprep.subr.mxu0 0.0
        %3644 = vmatpush2.msra.mxu0 0.0
        %3645 = vmatprep.subr.mxu0 0.0
        %3646 = vmatpush2.msra.mxu0 0.0
        %3647 = vmatprep.subr.mxu0 0.0
        %3648 = vmatpush2.msra.mxu0 0.0
        %3649 = vmatprep.subr.mxu0 0.0
        %3650 = vmatpush2.msra.mxu0 0.0
        %3651 = vmatprep.subr.mxu0 0.0
        %3652 = vmatpush2.msra.mxu0 0.0
        %3653 = vmatprep.subr.mxu0 0.0
        %3654 = vmatpush2.msra.mxu0 0.0
        %3655 = vmatprep.subr.mxu0 0.0
        %3656 = vmatpush2.msra.mxu0 0.0
        %3657 = vmatprep.subr.mxu0 0.0
        %3658 = vmatpush2.msra.mxu0 0.0
        %3659 = vmatprep.subr.mxu0 0.0
        %3660 = vmatpush2.msra.mxu0 0.0
        %3661 = vmatprep.subr.mxu0 0.0
        %3662 = vmatpush2.msra.mxu0 0.0
        %3663 = vmatprep.subr.mxu0 0.0
        %3664 = vmatpush2.msra.mxu0 0.0
        %3665 = vmatprep.subr.mxu0 0.0
        %3666 = vmatpush2.msra.mxu0 0.0
        %3667 = vmatprep.subr.mxu0 0.0
        %3668 = vmatpush2.msra.mxu0 0.0
        %3669 = vmatprep.subr.mxu0 0.0
        %3670 = vmatpush2.msra.mxu0 0.0
        %3671 = vmatprep.subr.mxu0 0.0
        %3672 = vmatpush2.msra.mxu0 0.0
        %3673 = vmatprep.subr.mxu0 0.0
        %3674 = vmatpush2.msra.mxu0 0.0
        %3675 = vmatprep.mubr.f32.mxu0 0.0
        %3676 = vmatmul.mubr.f32.gmra.mxu0 %v1604
        %v3677 = vpop.f32.mrf.mxu0
        %v3678 = vadd.f32 0.0, %v3677
        %v3679 = vpop.f32.mrf.mxu0
        %3680 = vdwg.mxu0
        %v3682 = vcombine.high %v3678, %v3678
        %v3684 = vunpack.c.l.s4 1966171168
        %v3685 = vunpack.c.0.s8 %v3684
        %v3686 = vlaneseq
        %v3687 = vshrl.u32 %v3686, 7
        %v3688 = vsub.s32 %v3685, %v3687
        %v3689 = vrot.slane %v3678, %v3688
        %v3691 = vunpack.c.l.s4 1966171168
        %v3692 = vunpack.c.0.s8 %v3691
        %v3693 = vlaneseq
        %v3694 = vshrl.u32 %v3693, 7
        %v3695 = vsub.s32 %v3692, %v3694
        %v3696 = vrot.slane %v3682, %v3695
        %v3697 = vcombine.high %v3689, %v3689
        %v3698 = vcombine.high %v3696, %v3696
        %v3700 = vunpack.c.l.s4 1966171168
        %v3701 = vunpack.c.0.s8 %v3700
        %v3702 = vlaneseq
        %v3703 = vshrl.u32 %v3702, 7
        %v3704 = vsub.s32 %v3701, %v3703
        %v3705 = vrot.slane %v3689, %v3704
        %v3707 = vunpack.c.l.s4 1966171168
        %v3708 = vunpack.c.0.s8 %v3707
        %v3709 = vlaneseq
        %v3710 = vshrl.u32 %v3709, 7
        %v3711 = vsub.s32 %v3708, %v3710
        %v3712 = vrot.slane %v3696, %v3711
        %v3714 = vunpack.c.l.s4 1966171168
        %v3715 = vunpack.c.0.s8 %v3714
        %v3716 = vlaneseq
        %v3717 = vshrl.u32 %v3716, 7
        %v3718 = vsub.s32 %v3715, %v3717
        %v3719 = vrot.slane %v3697, %v3718
        %v3721 = vunpack.c.l.s4 1966171168
        %v3722 = vunpack.c.0.s8 %v3721
        %v3723 = vlaneseq
        %v3724 = vshrl.u32 %v3723, 7
        %v3725 = vsub.s32 %v3722, %v3724
        %v3726 = vrot.slane %v3698, %v3725
        %v3727 = vcombine.high %v3705, %v3705
        %v3728 = vcombine.high %v3712, %v3712
        %v3729 = vcombine.high %v3719, %v3719
        %v3730 = vcombine.high %v3726, %v3726
        %3739 = vst.msk [vmem:[%s257 + $0xc] sm:$0x1] %vm1734, %v3705
        %3740 = vst.msk [vmem:[%s257 + $0x1c] sm:$0x1] %vm1734, %v3719
        %3741 = vst.msk [vmem:[%s257 + $0x2c] sm:$0x1] %vm1734, %v3727
        %3742 = vst.msk [vmem:[%s257 + $0x3c] sm:$0x1] %vm1734, %v3729
        %3743 = vst.msk [vmem:[%s257 + $0x4c] sm:$0x1] %vm1734, %v3712
        %3744 = vst.msk [vmem:[%s257 + $0x5c] sm:$0x1] %vm1734, %v3726
        %3745 = vst.msk [vmem:[%s257 + $0x6c] sm:$0x1] %vm1734, %v3728
        %3746 = vst.msk [vmem:[%s257 + $0x7c] sm:$0x1] %vm1734, %v3730
        %v3747 = vld [vmem:[#allocation2 + $0xd] sm:$0x1]
        %v3748 = vld [vmem:[#allocation2 + $0x1d] sm:$0x1]
        %v3749 = vld [vmem:[#allocation2 + $0x2d] sm:$0x1]
        %v3750 = vld [vmem:[#allocation2 + $0x3d] sm:$0x1]
        %v3751 = vld [vmem:[#allocation2 + $0x4d] sm:$0x1]
        %v3752 = vld [vmem:[#allocation2 + $0x5d] sm:$0x1]
        %v3753 = vld [vmem:[#allocation2 + $0x6d] sm:$0x1]
        %v3754 = vld [vmem:[#allocation2 + $0x7d] sm:$0x1]
        %v3763 = vrot.slane %v3748, 7
        %v3764 = vsel %vm1581, %v3763, %v3747
        %v3765 = vrot.slane %v3749, 6
        %v3766 = vsel %vm1584, %v3765, %v3764
        %v3767 = vrot.slane %v3750, 5
        %v3768 = vsel %vm1587, %v3767, %v3766
        %v3769 = vrot.slane %v3751, 4
        %v3770 = vsel %vm1590, %v3769, %v3768
        %v3771 = vrot.slane %v3752, 3
        %v3772 = vsel %vm1593, %v3771, %v3770
        %v3773 = vrot.slane %v3753, 2
        %v3774 = vsel %vm1596, %v3773, %v3772
        %v3775 = vrot.slane %v3754, 1
        %v3776 = vsel %vm1599, %v3775, %v3774
        %3778 = vmatprep.subr.mxu0 0.0
        %3779 = vmatpush1.msra.mxu0 0.0
        %3780 = vmatprep.subr.mxu0 0.0
        %3781 = vmatpush1.msra.mxu0 0.0
        %3782 = vmatprep.subr.mxu0 0.0
        %3783 = vmatpush1.msra.mxu0 0.0
        %3784 = vmatprep.subr.mxu0 0.0
        %3785 = vmatpush1.msra.mxu0 0.0
        %3786 = vmatprep.subr.mxu0 0.0
        %3787 = vmatpush1.msra.mxu0 0.0
        %3788 = vmatprep.subr.mxu0 0.0
        %3789 = vmatpush1.msra.mxu0 0.0
        %3790 = vmatprep.subr.mxu0 0.0
        %3791 = vmatpush1.msra.mxu0 0.0
        %3792 = vmatprep.subr.mxu0 0.0
        %3793 = vmatpush1.msra.mxu0 0.0
        %3794 = vmatprep.subr.mxu0 0.0
        %3795 = vmatpush1.msra.mxu0 0.0
        %3796 = vmatprep.subr.mxu0 0.0
        %3797 = vmatpush1.msra.mxu0 0.0
        %3798 = vmatprep.subr.mxu0 0.0
        %3799 = vmatpush1.msra.mxu0 0.0
        %3800 = vmatprep.subr.mxu0 0.0
        %3801 = vmatpush1.msra.mxu0 0.0
        %3802 = vmatprep.subr.mxu0 0.0
        %3803 = vmatpush1.msra.mxu0 0.0
        %3804 = vmatprep.subr.mxu0 0.0
        %3805 = vmatpush1.msra.mxu0 0.0
        %3806 = vmatprep.subr.mxu0 0.0
        %3807 = vmatpush1.msra.mxu0 0.0
        %3808 = vmatprep.subr.mxu0 0.0
        %3809 = vmatpush1.msra.mxu0 %v3776
        %3810 = vmatprep.subr.mxu0 0.0
        %3811 = vmatpush2.msra.mxu0 0.0
        %3812 = vmatprep.subr.mxu0 0.0
        %3813 = vmatpush2.msra.mxu0 0.0
        %3814 = vmatprep.subr.mxu0 0.0
        %3815 = vmatpush2.msra.mxu0 0.0
        %3816 = vmatprep.subr.mxu0 0.0
        %3817 = vmatpush2.msra.mxu0 0.0
        %3818 = vmatprep.subr.mxu0 0.0
        %3819 = vmatpush2.msra.mxu0 0.0
        %3820 = vmatprep.subr.mxu0 0.0
        %3821 = vmatpush2.msra.mxu0 0.0
        %3822 = vmatprep.subr.mxu0 0.0
        %3823 = vmatpush2.msra.mxu0 0.0
        %3824 = vmatprep.subr.mxu0 0.0
        %3825 = vmatpush2.msra.mxu0 0.0
        %3826 = vmatprep.subr.mxu0 0.0
        %3827 = vmatpush2.msra.mxu0 0.0
        %3828 = vmatprep.subr.mxu0 0.0
        %3829 = vmatpush2.msra.mxu0 0.0
        %3830 = vmatprep.subr.mxu0 0.0
        %3831 = vmatpush2.msra.mxu0 0.0
        %3832 = vmatprep.subr.mxu0 0.0
        %3833 = vmatpush2.msra.mxu0 0.0
        %3834 = vmatprep.subr.mxu0 0.0
        %3835 = vmatpush2.msra.mxu0 0.0
        %3836 = vmatprep.subr.mxu0 0.0
        %3837 = vmatpush2.msra.mxu0 0.0
        %3838 = vmatprep.subr.mxu0 0.0
        %3839 = vmatpush2.msra.mxu0 0.0
        %3840 = vmatprep.subr.mxu0 0.0
        %3841 = vmatpush2.msra.mxu0 0.0
        %3842 = vmatprep.mubr.f32.mxu0 0.0
        %3843 = vmatmul.mubr.f32.gmra.mxu0 %v1604
        %v3844 = vpop.f32.mrf.mxu0
        %v3845 = vadd.f32 0.0, %v3844
        %v3846 = vpop.f32.mrf.mxu0
        %3847 = vdwg.mxu0
        %v3849 = vcombine.high %v3845, %v3845
        %v3851 = vunpack.c.l.s4 1966171168
        %v3852 = vunpack.c.0.s8 %v3851
        %v3853 = vlaneseq
        %v3854 = vshrl.u32 %v3853, 7
        %v3855 = vsub.s32 %v3852, %v3854
        %v3856 = vrot.slane %v3845, %v3855
        %v3858 = vunpack.c.l.s4 1966171168
        %v3859 = vunpack.c.0.s8 %v3858
        %v3860 = vlaneseq
        %v3861 = vshrl.u32 %v3860, 7
        %v3862 = vsub.s32 %v3859, %v3861
        %v3863 = vrot.slane %v3849, %v3862
        %v3864 = vcombine.high %v3856, %v3856
        %v3865 = vcombine.high %v3863, %v3863
        %v3867 = vunpack.c.l.s4 1966171168
        %v3868 = vunpack.c.0.s8 %v3867
        %v3869 = vlaneseq
        %v3870 = vshrl.u32 %v3869, 7
        %v3871 = vsub.s32 %v3868, %v3870
        %v3872 = vrot.slane %v3856, %v3871
        %v3874 = vunpack.c.l.s4 1966171168
        %v3875 = vunpack.c.0.s8 %v3874
        %v3876 = vlaneseq
        %v3877 = vshrl.u32 %v3876, 7
        %v3878 = vsub.s32 %v3875, %v3877
        %v3879 = vrot.slane %v3863, %v3878
        %v3881 = vunpack.c.l.s4 1966171168
        %v3882 = vunpack.c.0.s8 %v3881
        %v3883 = vlaneseq
        %v3884 = vshrl.u32 %v3883, 7
        %v3885 = vsub.s32 %v3882, %v3884
        %v3886 = vrot.slane %v3864, %v3885
        %v3888 = vunpack.c.l.s4 1966171168
        %v3889 = vunpack.c.0.s8 %v3888
        %v3890 = vlaneseq
        %v3891 = vshrl.u32 %v3890, 7
        %v3892 = vsub.s32 %v3889, %v3891
        %v3893 = vrot.slane %v3865, %v3892
        %v3894 = vcombine.high %v3872, %v3872
        %v3895 = vcombine.high %v3879, %v3879
        %v3896 = vcombine.high %v3886, %v3886
        %v3897 = vcombine.high %v3893, %v3893
        %3906 = vst.msk [vmem:[%s257 + $0xd] sm:$0x1] %vm1734, %v3872
        %3907 = vst.msk [vmem:[%s257 + $0x1d] sm:$0x1] %vm1734, %v3886
        %3908 = vst.msk [vmem:[%s257 + $0x2d] sm:$0x1] %vm1734, %v3894
        %3909 = vst.msk [vmem:[%s257 + $0x3d] sm:$0x1] %vm1734, %v3896
        %3910 = vst.msk [vmem:[%s257 + $0x4d] sm:$0x1] %vm1734, %v3879
        %3911 = vst.msk [vmem:[%s257 + $0x5d] sm:$0x1] %vm1734, %v3893
        %3912 = vst.msk [vmem:[%s257 + $0x6d] sm:$0x1] %vm1734, %v3895
        %3913 = vst.msk [vmem:[%s257 + $0x7d] sm:$0x1] %vm1734, %v3897
        %v3914 = vld [vmem:[#allocation2 + $0xe] sm:$0x1]
        %v3915 = vld [vmem:[#allocation2 + $0x1e] sm:$0x1]
        %v3916 = vld [vmem:[#allocation2 + $0x2e] sm:$0x1]
        %v3917 = vld [vmem:[#allocation2 + $0x3e] sm:$0x1]
        %v3918 = vld [vmem:[#allocation2 + $0x4e] sm:$0x1]
        %v3919 = vld [vmem:[#allocation2 + $0x5e] sm:$0x1]
        %v3920 = vld [vmem:[#allocation2 + $0x6e] sm:$0x1]
        %v3921 = vld [vmem:[#allocation2 + $0x7e] sm:$0x1]
        %v3930 = vrot.slane %v3915, 7
        %v3931 = vsel %vm1581, %v3930, %v3914
        %v3932 = vrot.slane %v3916, 6
        %v3933 = vsel %vm1584, %v3932, %v3931
        %v3934 = vrot.slane %v3917, 5
        %v3935 = vsel %vm1587, %v3934, %v3933
        %v3936 = vrot.slane %v3918, 4
        %v3937 = vsel %vm1590, %v3936, %v3935
        %v3938 = vrot.slane %v3919, 3
        %v3939 = vsel %vm1593, %v3938, %v3937
        %v3940 = vrot.slane %v3920, 2
        %v3941 = vsel %vm1596, %v3940, %v3939
        %v3942 = vrot.slane %v3921, 1
        %v3943 = vsel %vm1599, %v3942, %v3941
        %3945 = vmatprep.subr.mxu0 0.0
        %3946 = vmatpush1.msra.mxu0 0.0
        %3947 = vmatprep.subr.mxu0 0.0
        %3948 = vmatpush1.msra.mxu0 0.0
        %3949 = vmatprep.subr.mxu0 0.0
        %3950 = vmatpush1.msra.mxu0 0.0
        %3951 = vmatprep.subr.mxu0 0.0
        %3952 = vmatpush1.msra.mxu0 0.0
        %3953 = vmatprep.subr.mxu0 0.0
        %3954 = vmatpush1.msra.mxu0 0.0
        %3955 = vmatprep.subr.mxu0 0.0
        %3956 = vmatpush1.msra.mxu0 0.0
        %3957 = vmatprep.subr.mxu0 0.0
        %3958 = vmatpush1.msra.mxu0 0.0
        %3959 = vmatprep.subr.mxu0 0.0
        %3960 = vmatpush1.msra.mxu0 0.0
        %3961 = vmatprep.subr.mxu0 0.0
        %3962 = vmatpush1.msra.mxu0 0.0
        %3963 = vmatprep.subr.mxu0 0.0
        %3964 = vmatpush1.msra.mxu0 0.0
        %3965 = vmatprep.subr.mxu0 0.0
        %3966 = vmatpush1.msra.mxu0 0.0
        %3967 = vmatprep.subr.mxu0 0.0
        %3968 = vmatpush1.msra.mxu0 0.0
        %3969 = vmatprep.subr.mxu0 0.0
        %3970 = vmatpush1.msra.mxu0 0.0
        %3971 = vmatprep.subr.mxu0 0.0
        %3972 = vmatpush1.msra.mxu0 0.0
        %3973 = vmatprep.subr.mxu0 0.0
        %3974 = vmatpush1.msra.mxu0 0.0
        %3975 = vmatprep.subr.mxu0 0.0
        %3976 = vmatpush1.msra.mxu0 %v3943
        %3977 = vmatprep.subr.mxu0 0.0
        %3978 = vmatpush2.msra.mxu0 0.0
        %3979 = vmatprep.subr.mxu0 0.0
        %3980 = vmatpush2.msra.mxu0 0.0
        %3981 = vmatprep.subr.mxu0 0.0
        %3982 = vmatpush2.msra.mxu0 0.0
        %3983 = vmatprep.subr.mxu0 0.0
        %3984 = vmatpush2.msra.mxu0 0.0
        %3985 = vmatprep.subr.mxu0 0.0
        %3986 = vmatpush2.msra.mxu0 0.0
        %3987 = vmatprep.subr.mxu0 0.0
        %3988 = vmatpush2.msra.mxu0 0.0
        %3989 = vmatprep.subr.mxu0 0.0
        %3990 = vmatpush2.msra.mxu0 0.0
        %3991 = vmatprep.subr.mxu0 0.0
        %3992 = vmatpush2.msra.mxu0 0.0
        %3993 = vmatprep.subr.mxu0 0.0
        %3994 = vmatpush2.msra.mxu0 0.0
        %3995 = vmatprep.subr.mxu0 0.0
        %3996 = vmatpush2.msra.mxu0 0.0
        %3997 = vmatprep.subr.mxu0 0.0
        %3998 = vmatpush2.msra.mxu0 0.0
        %3999 = vmatprep.subr.mxu0 0.0
        %4000 = vmatpush2.msra.mxu0 0.0
        %4001 = vmatprep.subr.mxu0 0.0
        %4002 = vmatpush2.msra.mxu0 0.0
        %4003 = vmatprep.subr.mxu0 0.0
        %4004 = vmatpush2.msra.mxu0 0.0
        %4005 = vmatprep.subr.mxu0 0.0
        %4006 = vmatpush2.msra.mxu0 0.0
        %4007 = vmatprep.subr.mxu0 0.0
        %4008 = vmatpush2.msra.mxu0 0.0
        %4009 = vmatprep.mubr.f32.mxu0 0.0
        %4010 = vmatmul.mubr.f32.gmra.mxu0 %v1604
        %v4011 = vpop.f32.mrf.mxu0
        %v4012 = vadd.f32 0.0, %v4011
        %v4013 = vpop.f32.mrf.mxu0
        %4014 = vdwg.mxu0
        %v4016 = vcombine.high %v4012, %v4012
        %v4018 = vunpack.c.l.s4 1966171168
        %v4019 = vunpack.c.0.s8 %v4018
        %v4020 = vlaneseq
        %v4021 = vshrl.u32 %v4020, 7
        %v4022 = vsub.s32 %v4019, %v4021
        %v4023 = vrot.slane %v4012, %v4022
        %v4025 = vunpack.c.l.s4 1966171168
        %v4026 = vunpack.c.0.s8 %v4025
        %v4027 = vlaneseq
        %v4028 = vshrl.u32 %v4027, 7
        %v4029 = vsub.s32 %v4026, %v4028
        %v4030 = vrot.slane %v4016, %v4029
        %v4031 = vcombine.high %v4023, %v4023
        %v4032 = vcombine.high %v4030, %v4030
        %v4034 = vunpack.c.l.s4 1966171168
        %v4035 = vunpack.c.0.s8 %v4034
        %v4036 = vlaneseq
        %v4037 = vshrl.u32 %v4036, 7
        %v4038 = vsub.s32 %v4035, %v4037
        %v4039 = vrot.slane %v4023, %v4038
        %v4041 = vunpack.c.l.s4 1966171168
        %v4042 = vunpack.c.0.s8 %v4041
        %v4043 = vlaneseq
        %v4044 = vshrl.u32 %v4043, 7
        %v4045 = vsub.s32 %v4042, %v4044
        %v4046 = vrot.slane %v4030, %v4045
        %v4048 = vunpack.c.l.s4 1966171168
        %v4049 = vunpack.c.0.s8 %v4048
        %v4050 = vlaneseq
        %v4051 = vshrl.u32 %v4050, 7
        %v4052 = vsub.s32 %v4049, %v4051
        %v4053 = vrot.slane %v4031, %v4052
        %v4055 = vunpack.c.l.s4 1966171168
        %v4056 = vunpack.c.0.s8 %v4055
        %v4057 = vlaneseq
        %v4058 = vshrl.u32 %v4057, 7
        %v4059 = vsub.s32 %v4056, %v4058
        %v4060 = vrot.slane %v4032, %v4059
        %v4061 = vcombine.high %v4039, %v4039
        %v4062 = vcombine.high %v4046, %v4046
        %v4063 = vcombine.high %v4053, %v4053
        %v4064 = vcombine.high %v4060, %v4060
        %4073 = vst.msk [vmem:[%s257 + $0xe] sm:$0x1] %vm1734, %v4039
        %4074 = vst.msk [vmem:[%s257 + $0x1e] sm:$0x1] %vm1734, %v4053
        %4075 = vst.msk [vmem:[%s257 + $0x2e] sm:$0x1] %vm1734, %v4061
        %4076 = vst.msk [vmem:[%s257 + $0x3e] sm:$0x1] %vm1734, %v4063
        %4077 = vst.msk [vmem:[%s257 + $0x4e] sm:$0x1] %vm1734, %v4046
        %4078 = vst.msk [vmem:[%s257 + $0x5e] sm:$0x1] %vm1734, %v4060
        %4079 = vst.msk [vmem:[%s257 + $0x6e] sm:$0x1] %vm1734, %v4062
        %4080 = vst.msk [vmem:[%s257 + $0x7e] sm:$0x1] %vm1734, %v4064
        %v4081 = vld [vmem:[#allocation2 + $0xf] sm:$0x1]
        %v4082 = vld [vmem:[#allocation2 + $0x1f] sm:$0x1]
        %v4083 = vld [vmem:[#allocation2 + $0x2f] sm:$0x1]
        %v4084 = vld [vmem:[#allocation2 + $0x3f] sm:$0x1]
        %v4085 = vld [vmem:[#allocation2 + $0x4f] sm:$0x1]
        %v4086 = vld [vmem:[#allocation2 + $0x5f] sm:$0x1]
        %v4087 = vld [vmem:[#allocation2 + $0x6f] sm:$0x1]
        %v4088 = vld [vmem:[#allocation2 + $0x7f] sm:$0x1]
        %v4097 = vrot.slane %v4082, 7
        %v4098 = vsel %vm1581, %v4097, %v4081
        %v4099 = vrot.slane %v4083, 6
        %v4100 = vsel %vm1584, %v4099, %v4098
        %v4101 = vrot.slane %v4084, 5
        %v4102 = vsel %vm1587, %v4101, %v4100
        %v4103 = vrot.slane %v4085, 4
        %v4104 = vsel %vm1590, %v4103, %v4102
        %v4105 = vrot.slane %v4086, 3
        %v4106 = vsel %vm1593, %v4105, %v4104
        %v4107 = vrot.slane %v4087, 2
        %v4108 = vsel %vm1596, %v4107, %v4106
        %v4109 = vrot.slane %v4088, 1
        %v4110 = vsel %vm1599, %v4109, %v4108
        %4112 = vmatprep.subr.mxu0 0.0
        %4113 = vmatpush1.msra.mxu0 0.0
        %4114 = vmatprep.subr.mxu0 0.0
        %4115 = vmatpush1.msra.mxu0 0.0
        %4116 = vmatprep.subr.mxu0 0.0
        %4117 = vmatpush1.msra.mxu0 0.0
        %4118 = vmatprep.subr.mxu0 0.0
        %4119 = vmatpush1.msra.mxu0 0.0
        %4120 = vmatprep.subr.mxu0 0.0
        %4121 = vmatpush1.msra.mxu0 0.0
        %4122 = vmatprep.subr.mxu0 0.0
        %4123 = vmatpush1.msra.mxu0 0.0
        %4124 = vmatprep.subr.mxu0 0.0
        %4125 = vmatpush1.msra.mxu0 0.0
        %4126 = vmatprep.subr.mxu0 0.0
        %4127 = vmatpush1.msra.mxu0 0.0
        %4128 = vmatprep.subr.mxu0 0.0
        %4129 = vmatpush1.msra.mxu0 0.0
        %4130 = vmatprep.subr.mxu0 0.0
        %4131 = vmatpush1.msra.mxu0 0.0
        %4132 = vmatprep.subr.mxu0 0.0
        %4133 = vmatpush1.msra.mxu0 0.0
        %4134 = vmatprep.subr.mxu0 0.0
        %4135 = vmatpush1.msra.mxu0 0.0
        %4136 = vmatprep.subr.mxu0 0.0
        %4137 = vmatpush1.msra.mxu0 0.0
        %4138 = vmatprep.subr.mxu0 0.0
        %4139 = vmatpush1.msra.mxu0 0.0
        %4140 = vmatprep.subr.mxu0 0.0
        %4141 = vmatpush1.msra.mxu0 0.0
        %4142 = vmatprep.subr.mxu0 0.0
        %4143 = vmatpush1.msra.mxu0 %v4110
        %4144 = vmatprep.subr.mxu0 0.0
        %4145 = vmatpush2.msra.mxu0 0.0
        %4146 = vmatprep.subr.mxu0 0.0
        %4147 = vmatpush2.msra.mxu0 0.0
        %4148 = vmatprep.subr.mxu0 0.0
        %4149 = vmatpush2.msra.mxu0 0.0
        %4150 = vmatprep.subr.mxu0 0.0
        %4151 = vmatpush2.msra.mxu0 0.0
        %4152 = vmatprep.subr.mxu0 0.0
        %4153 = vmatpush2.msra.mxu0 0.0
        %4154 = vmatprep.subr.mxu0 0.0
        %4155 = vmatpush2.msra.mxu0 0.0
        %4156 = vmatprep.subr.mxu0 0.0
        %4157 = vmatpush2.msra.mxu0 0.0
        %4158 = vmatprep.subr.mxu0 0.0
        %4159 = vmatpush2.msra.mxu0 0.0
        %4160 = vmatprep.subr.mxu0 0.0
        %4161 = vmatpush2.msra.mxu0 0.0
        %4162 = vmatprep.subr.mxu0 0.0
        %4163 = vmatpush2.msra.mxu0 0.0
        %4164 = vmatprep.subr.mxu0 0.0
        %4165 = vmatpush2.msra.mxu0 0.0
        %4166 = vmatprep.subr.mxu0 0.0
        %4167 = vmatpush2.msra.mxu0 0.0
        %4168 = vmatprep.subr.mxu0 0.0
        %4169 = vmatpush2.msra.mxu0 0.0
        %4170 = vmatprep.subr.mxu0 0.0
        %4171 = vmatpush2.msra.mxu0 0.0
        %4172 = vmatprep.subr.mxu0 0.0
        %4173 = vmatpush2.msra.mxu0 0.0
        %4174 = vmatprep.subr.mxu0 0.0
        %4175 = vmatpush2.msra.mxu0 0.0
        %4176 = vmatprep.mubr.f32.mxu0 0.0
        %4177 = vmatmul.mubr.f32.gmra.mxu0 %v1604
        %v4178 = vpop.f32.mrf.mxu0
        %v4179 = vadd.f32 0.0, %v4178
        %v4180 = vpop.f32.mrf.mxu0
        %4181 = vdwg.mxu0
        %v4183 = vcombine.high %v4179, %v4179
        %v4185 = vunpack.c.l.s4 1966171168
        %v4186 = vunpack.c.0.s8 %v4185
        %v4187 = vlaneseq
        %v4188 = vshrl.u32 %v4187, 7
        %v4189 = vsub.s32 %v4186, %v4188
        %v4190 = vrot.slane %v4179, %v4189
        %v4192 = vunpack.c.l.s4 1966171168
        %v4193 = vunpack.c.0.s8 %v4192
        %v4194 = vlaneseq
        %v4195 = vshrl.u32 %v4194, 7
        %v4196 = vsub.s32 %v4193, %v4195
        %v4197 = vrot.slane %v4183, %v4196
        %v4198 = vcombine.high %v4190, %v4190
        %v4199 = vcombine.high %v4197, %v4197
        %v4201 = vunpack.c.l.s4 1966171168
        %v4202 = vunpack.c.0.s8 %v4201
        %v4203 = vlaneseq
        %v4204 = vshrl.u32 %v4203, 7
        %v4205 = vsub.s32 %v4202, %v4204
        %v4206 = vrot.slane %v4190, %v4205
        %v4208 = vunpack.c.l.s4 1966171168
        %v4209 = vunpack.c.0.s8 %v4208
        %v4210 = vlaneseq
        %v4211 = vshrl.u32 %v4210, 7
        %v4212 = vsub.s32 %v4209, %v4211
        %v4213 = vrot.slane %v4197, %v4212
        %v4215 = vunpack.c.l.s4 1966171168
        %v4216 = vunpack.c.0.s8 %v4215
        %v4217 = vlaneseq
        %v4218 = vshrl.u32 %v4217, 7
        %v4219 = vsub.s32 %v4216, %v4218
        %v4220 = vrot.slane %v4198, %v4219
        %v4222 = vunpack.c.l.s4 1966171168
        %v4223 = vunpack.c.0.s8 %v4222
        %v4224 = vlaneseq
        %v4225 = vshrl.u32 %v4224, 7
        %v4226 = vsub.s32 %v4223, %v4225
        %v4227 = vrot.slane %v4199, %v4226
        %v4228 = vcombine.high %v4206, %v4206
        %v4229 = vcombine.high %v4213, %v4213
        %v4230 = vcombine.high %v4220, %v4220
        %v4231 = vcombine.high %v4227, %v4227
        %4240 = vst.msk [vmem:[%s257 + $0xf] sm:$0x1] %vm1734, %v4206
        %4241 = vst.msk [vmem:[%s257 + $0x1f] sm:$0x1] %vm1734, %v4220
        %4242 = vst.msk [vmem:[%s257 + $0x2f] sm:$0x1] %vm1734, %v4228
        %4243 = vst.msk [vmem:[%s257 + $0x3f] sm:$0x1] %vm1734, %v4230
        %4244 = vst.msk [vmem:[%s257 + $0x4f] sm:$0x1] %vm1734, %v4213
        %4245 = vst.msk [vmem:[%s257 + $0x5f] sm:$0x1] %vm1734, %v4227
        %4246 = vst.msk [vmem:[%s257 + $0x6f] sm:$0x1] %vm1734, %v4229
        %4247 = vst.msk [vmem:[%s257 + $0x7f] sm:$0x1] %vm1734, %v4231
        %s4248 = sand.u32 %s120, 1
        %s4249 = scalar_lea.sflag [#allocation5], %s4248
        %s4250 = sand.u32 %s120, 1
        %s4251 = smul.addr %s4250, 128
        %s4252 = scalar_lea.vmem [#allocation11], %s4251
        // Predicated region
        $region53: #{gaussian_3d_blur.1} parent=35 // pred_check
          %p4253 = pneg %p130
        $region54: #{gaussian_3d_blur.1} parent=35 // pred_check_branch
          %4255 = sbr.rel (%p4253) target = $region56
        $region55: #{gaussian_3d_blur.1} parent=35 // pred_region
          %s4257 = ssub.s32 2048, 2048
          %4258 = vsyncadd %s4249, %s4257
          %s4259 = smul.addr %s23, 16
          %s4260 = smul.addr %s4259, 128
          %s4261 = scalar_lea.hbm %s4, %s4260
          %s4262 = sshll.u32 %s4252, 4
          %s4263 = int_to_ptr.vmem [resolvable:$true] %s4262
          %4268 = dma.vmem_to_hbm [thread:$0]  %s4263, 2048, %s4261, %s4249, 128, 128, 8
        $region56: #{gaussian_3d_blur.1} parent=35 // pred_fallthru
          _
      $region36: #{gaussian_3d_blur.1} parent=5 // pred_fallthru
        _
      %p4269 = scmp.le.s32.totalorder 2, %s18
      // Predicated region
      $region57: #{gaussian_3d_blur.1} parent=5 // pred_check
        %p4270 = pneg %p4269
      $region58: #{gaussian_3d_blur.1} parent=5 // pred_check_branch
        %4272 = sbr.rel (%p4270) target = $region60
      $region59: #{gaussian_3d_blur.1} parent=5 // pred_region
        %s4273 = ssub.s32 %s18, 2
        // Predicated region
        $region61: #{gaussian_3d_blur.1} parent=59 // pred_check
          %p4274 = pneg %p136
        $region62: #{gaussian_3d_blur.1} parent=59 // pred_check_branch
          %4276 = sbr.rel (%p4274) target = $region64
        $region63: #{gaussian_3d_blur.1} parent=59 // pred_region
          %s4277 = sand.u32 %s121, 1
          %s4278 = scalar_lea.sflag [#allocation5], %s4277
          %s4279 = sand.u32 %s121, 1
          %s4280 = smul.addr %s4279, 128
          %s4281 = scalar_lea.vmem [#allocation11], %s4280
          %4282 = dma.done %s4278, 2048
        $region64: #{gaussian_3d_blur.1} parent=59 // pred_fallthru
          _
      $region60: #{gaussian_3d_blur.1} parent=5 // pred_fallthru
        _
    $region6: #{gaussian_3d_blur.1} parent=1 // loop_footer
      %s22 = sadd.s32 1, %s18
    $region7: #{gaussian_3d_blur.1} parent=1 // loop_footer_branch
      %17 = sbr.rel target = $region3
    $region8: #{gaussian_3d_blur.1} parent=1 // loop_exit
      _
    %4283 = vsyncpa [#allocation4], 1
    %s4284 = scalar_lea.sflag [#allocation4], 1
    %4285 = vsyncpa %s4284, 1
    %4286 = vsyncpa [#allocation7], 1
    %4287 = vsyncpa [#allocation10], 1
    %4288 = vsyncpa [#allocation5], 1
    %s4289 = scalar_lea.sflag [#allocation5], 1
    %4290 = vsyncpa %s4289, 1

</llo_original>
